<compile_context>
chip_gen: v7x
topology: tpu7x:2x2x1
jax: 0.10.0
libtpu: 0.0.40
codegen_flags: <defaults>
</compile_context>

<pallas_src>
import functools

import jax
import jax.numpy as jnp
from jax import lax
from jax.experimental import pallas as pl
from jax.experimental.pallas import tpu as pltpu


# ------------------------------ fused kernel -------------------------------

def _conv_block_kernel(xs_ref, w1_ref, w2_ref, w3_ref, wsc_ref, mask_ref,
                       g1_ref, b1_ref, g2_ref, b2_ref, g3_ref, b3_ref,
                       gsc_ref, bsc_ref, o_ref, *, f, pad, Ws, eps):
    Ms = xs_ref.shape[0]
    F2 = w2_ref.shape[2]

    def bn_scale_shift(y, g_ref, b_ref):
        # Training-mode BatchNorm2d: batch mean, biased variance, eps=1e-5.
        mean = jnp.mean(y, axis=0, keepdims=True)
        var = jnp.maximum(jnp.mean(y * y, axis=0, keepdims=True) - mean * mean, 0.0)
        scale = g_ref[...] * lax.rsqrt(var + eps)
        shift = b_ref[...] - mean * scale
        return scale, shift

    xs = xs_ref[...]                                            # (Ms, Cin) bf16

    # ---- shortcut: 1x1 conv (stride folded into xs) -> BN (ReLU after the add) ----
    y_sc = jnp.dot(xs, wsc_ref[...], preferred_element_type=jnp.float32)
    s_sc, sh_sc = bn_scale_shift(y_sc, gsc_ref, bsc_ref)
    sc = y_sc * s_sc + sh_sc

    # ---- conv1: 1x1, stride s (folded into xs) -> BN -> ReLU ----
    y1 = jnp.dot(xs, w1_ref[...], preferred_element_type=jnp.float32)
    s1, sh1 = bn_scale_shift(y1, g1_ref, b1_ref)
    a1 = jnp.maximum(y1 * s1 + sh1, 0.0)                        # (Ms, F1) f32, VMEM-resident

    # ---- conv2: f x f, stride 1, zero-pad=1, as f*f accumulated shifted matmuls ----
    y2 = jnp.zeros((Ms, F2), jnp.float32)
    for di in range(f):
        for dj in range(f):
            k = di * f + dj
            off = (di - pad) * Ws + (dj - pad)                  # flat row shift of this tap
            shifted = a1 if off == 0 else pltpu.roll(a1, shift=(-off) % Ms, axis=0)
            tap = (shifted * mask_ref[k]).astype(jnp.bfloat16)  # mask kills wrap + pad rows
            y2 = y2 + jnp.dot(tap, w2_ref[k], preferred_element_type=jnp.float32)
    s2, sh2 = bn_scale_shift(y2, g2_ref, b2_ref)
    a2 = jnp.maximum(y2 * s2 + sh2, 0.0)

    # ---- conv3: 1x1 -> BN, add BN(shortcut), final ReLU ----
    y3 = jnp.dot(a2.astype(jnp.bfloat16), w3_ref[...], preferred_element_type=jnp.float32)
    s3, sh3 = bn_scale_shift(y3, g3_ref, b3_ref)
    o_ref[...] = jnp.maximum(y3 * s3 + sh3 + sc, 0.0)


# ------------------------------- JAX wrapper --------------------------------

def conv_block_forward(x_nchw, params, f, s):
    pad = 1  # PyTorch padding=True == padding=1
    x = jnp.transpose(x_nchw, (0, 2, 3, 1)).astype(jnp.float32)     # NHWC
    N, H, W, Cin = x.shape
    F1 = params["w1"].shape[1]
    F2 = params["w2"].shape[1]
    F3 = params["w3"].shape[1]

    # stride-s subsample shared by conv1 and the shortcut (both 1x1, stride s)
    xs = x[:, ::s, ::s, :]
    Hs, Ws = xs.shape[1], xs.shape[2]
    Ms = N * Hs * Ws
    xs_flat = xs.reshape(Ms, Cin).astype(jnp.bfloat16)

    Ho = Hs + 2 * pad - f + 1
    Wo = Ws + 2 * pad - f + 1
    assert (Ho, Wo) == (Hs, Ws), "residual add requires a same-size conv2 (f=3, pad=1)"

    # Per-tap validity masks for the zero-padded f x f conv (tiny, computed once in JAX).
    r = jnp.arange(Ms)
    wo = r % Ws
    ho = (r // Ws) % Hs
    masks = []
    for di in range(f):
        for dj in range(f):
            hh = ho + (di - pad)
            ww = wo + (dj - pad)
            masks.append(((hh >= 0) & (hh < Hs) & (ww >= 0) & (ww < Ws)).astype(jnp.float32))
    tap_mask = jnp.stack(masks, axis=0)[:, :, None]                  # (f*f, Ms, 1)

    # Fully-fused path: all activations are VMEM-resident (comfortably so at these sizes,
    # and well under the v7x 64 MiB / default scoped limits).
    approx_vmem = 4 * Ms * (Cin + 2 * F1 + 2 * F2 + 3 * F3 + f * f)
    assert approx_vmem < 8 * 1024 * 1024, "fused ConvBlock path assumes activations fit VMEM"

    kernel = functools.partial(_conv_block_kernel, f=f, pad=pad, Ws=Ws, eps=1e-5)
    vmem = pl.BlockSpec(memory_space=pltpu.MemorySpace.VMEM)
    out_flat = pl.pallas_call(
        kernel,
        out_shape=jax.ShapeDtypeStruct((Ms, F3), jnp.float32),
        in_specs=[vmem] * 14,
        out_specs=vmem,
    )(
        xs_flat,
        params["w1"].astype(jnp.bfloat16),                           # (Cin, F1)
        params["w2"].reshape(f * f, F1, F2).astype(jnp.bfloat16),    # (f*f, F1, F2)
        params["w3"].astype(jnp.bfloat16),                           # (F2, F3)
        params["w_sc"].astype(jnp.bfloat16),                         # (Cin, F3)
        tap_mask,
        params["g1"].reshape(1, F1), params["b1"].reshape(1, F1),
        params["g2"].reshape(1, F2), params["b2"].reshape(1, F2),
        params["g3"].reshape(1, F3), params["b3"].reshape(1, F3),
        params["g_sc"].reshape(1, F3), params["b_sc"].reshape(1, F3),
    )

    out = out_flat.reshape(N, Hs, Ws, F3)
    return jnp.transpose(out, (0, 3, 1, 2))  # back to NCHW


def init_params(key, in_channel, f, filters):
    """PyTorch-like uniform(+-1/sqrt(fan_in)) conv init; BN gamma=1, beta=0.
    Conv weights stored in matmul layout:
      1x1 convs: (Cin, Cout); fxf conv: (f*f*F1, F2) with tap-major (kh, kw), channel-minor
      row ordering (same ordering the kernel's tap loop uses)."""
    F1, F2, F3 = filters
    keys = jax.random.split(key, 4)

    def u(k, shape, fan_in):
        bound = 1.0 / jnp.sqrt(jnp.float32(fan_in))
        return jax.random.uniform(k, shape, jnp.float32, -bound, bound)

    return {
        "w1": u(keys[0], (in_channel, F1), in_channel),          # Conv2d(in, F1, 1, stride=s)
        "w2": u(keys[1], (f * f * F1, F2), f * f * F1),          # Conv2d(F1, F2, f, pad=1)
        "w3": u(keys[2], (F2, F3), F2),                          # Conv2d(F2, F3, 1)
        "w_sc": u(keys[3], (in_channel, F3), in_channel),        # shortcut Conv2d(in, F3, 1, stride=s)
        "g1": jnp.ones((F1,), jnp.float32), "b1": jnp.zeros((F1,), jnp.float32),
        "g2": jnp.ones((F2,), jnp.float32), "b2": jnp.zeros((F2,), jnp.float32),
        "g3": jnp.ones((F3,), jnp.float32), "b3": jnp.zeros((F3,), jnp.float32),
        "g_sc": jnp.ones((F3,), jnp.float32), "b_sc": jnp.zeros((F3,), jnp.float32),
    }


if __name__ == "__main__":
    # Small shapes consistent with the module: NCHW input (2, 4, 16, 16),
    # filters (F1, F2, F3) = (4, 4, 8), kernel f=3, stride s=2.
    in_channel, f, filters, s = 4, 3, (4, 4, 8), 2

    key = jax.random.PRNGKey(0)
    k_x, k_p = jax.random.split(key)
    x = jax.random.normal(k_x, (2, in_channel, 16, 16), dtype=jnp.float32)
    params = init_params(k_p, in_channel, f, filters)

    fwd = jax.jit(functools.partial(conv_block_forward, f=f, s=s))
    out = fwd(x, params)
    out = jax.block_until_ready(out)

    assert out.shape == (2, filters[2], 8, 8), out.shape
    assert bool(jnp.all(out >= 0.0))  # final ReLU
    print("KERNEL_OK")
</pallas_src>

<mosaic_0001>
module attributes {stable_mosaic.version = 11 : i64} {
  func.func @_conv_block_kernel(%arg0: memref<128x4xbf16, #tpu.memory_space<vmem>>, %arg1: memref<4x4xbf16, #tpu.memory_space<vmem>>, %arg2: memref<9x4x4xbf16, #tpu.memory_space<vmem>>, %arg3: memref<4x8xbf16, #tpu.memory_space<vmem>>, %arg4: memref<4x8xbf16, #tpu.memory_space<vmem>>, %arg5: memref<9x128x1xf32, #tpu.memory_space<vmem>>, %arg6: memref<1x4xf32, #tpu.memory_space<vmem>>, %arg7: memref<1x4xf32, #tpu.memory_space<vmem>>, %arg8: memref<1x4xf32, #tpu.memory_space<vmem>>, %arg9: memref<1x4xf32, #tpu.memory_space<vmem>>, %arg10: memref<1x8xf32, #tpu.memory_space<vmem>>, %arg11: memref<1x8xf32, #tpu.memory_space<vmem>>, %arg12: memref<1x8xf32, #tpu.memory_space<vmem>>, %arg13: memref<1x8xf32, #tpu.memory_space<vmem>>, %arg14: memref<128x8xf32, #tpu.memory_space<vmem>>) attributes {dimension_semantics = [], scalar_prefetch = 0 : i64, scratch_operands = 0 : i64, tpu.core_type = #tpu.core_type<tc>} {
    %c0 = arith.constant 0 : index
    %c0_0 = arith.constant 0 : index
    %0 = vector.load %arg0[%c0, %c0_0] : memref<128x4xbf16, #tpu.memory_space<vmem>>, vector<128x4xbf16>
    %c0_1 = arith.constant 0 : index
    %c0_2 = arith.constant 0 : index
    %1 = vector.load %arg4[%c0_1, %c0_2] : memref<4x8xbf16, #tpu.memory_space<vmem>>, vector<4x8xbf16>
    %cst = arith.constant dense<0.000000e+00> : vector<128x8xf32>
    %2 = tpu.matmul %0, %1, %cst {dimension_numbers = #tpu.dot_dimension_numbers<[1], [0], [0], [1], [0, 0, 1, 1], [], []>} : vector<128x4xbf16>, vector<4x8xbf16>, vector<128x8xf32> -> vector<128x8xf32>
    %cst_3 = arith.constant dense<0.000000e+00> : vector<8xf32>
    %3 = vector.multi_reduction <add>, %2, %cst_3 [0] : vector<128x8xf32> to vector<8xf32>
    %4 = vector.shape_cast %3 : vector<8xf32> to vector<1x8xf32>
    %cst_4 = arith.constant 1.280000e+02 : f32
    %5 = vector.broadcast %cst_4 : f32 to vector<1x8xf32>
    %6 = arith.divf %4, %5 : vector<1x8xf32>
    %7 = arith.mulf %2, %2 : vector<128x8xf32>
    %cst_5 = arith.constant dense<0.000000e+00> : vector<8xf32>
    %8 = vector.multi_reduction <add>, %7, %cst_5 [0] : vector<128x8xf32> to vector<8xf32>
    %9 = vector.shape_cast %8 : vector<8xf32> to vector<1x8xf32>
    %cst_6 = arith.constant 1.280000e+02 : f32
    %10 = vector.broadcast %cst_6 : f32 to vector<1x8xf32>
    %11 = arith.divf %9, %10 : vector<1x8xf32>
    %12 = arith.mulf %6, %6 : vector<1x8xf32>
    %13 = arith.subf %11, %12 : vector<1x8xf32>
    %cst_7 = arith.constant 0.000000e+00 : f32
    %14 = vector.broadcast %cst_7 : f32 to vector<1x8xf32>
    %15 = arith.maximumf %13, %14 : vector<1x8xf32>
    %c0_8 = arith.constant 0 : index
    %c0_9 = arith.constant 0 : index
    %16 = vector.load %arg12[%c0_8, %c0_9] : memref<1x8xf32, #tpu.memory_space<vmem>>, vector<1x8xf32>
    %cst_10 = arith.constant 9.99999974E-6 : f32
    %17 = vector.broadcast %cst_10 : f32 to vector<1x8xf32>
    %18 = arith.addf %15, %17 : vector<1x8xf32>
    %19 = math.rsqrt %18 : vector<1x8xf32>
    %20 = arith.mulf %16, %19 : vector<1x8xf32>
    %c0_11 = arith.constant 0 : index
    %c0_12 = arith.constant 0 : index
    %21 = vector.load %arg13[%c0_11, %c0_12] : memref<1x8xf32, #tpu.memory_space<vmem>>, vector<1x8xf32>
    %22 = arith.mulf %6, %20 : vector<1x8xf32>
    %23 = arith.subf %21, %22 : vector<1x8xf32>
    %24 = vector.broadcast %20 : vector<1x8xf32> to vector<128x8xf32>
    %25 = arith.mulf %2, %24 : vector<128x8xf32>
    %26 = vector.broadcast %23 : vector<1x8xf32> to vector<128x8xf32>
    %27 = arith.addf %25, %26 : vector<128x8xf32>
    %c0_13 = arith.constant 0 : index
    %c0_14 = arith.constant 0 : index
    %28 = vector.load %arg1[%c0_13, %c0_14] : memref<4x4xbf16, #tpu.memory_space<vmem>>, vector<4x4xbf16>
    %cst_15 = arith.constant dense<0.000000e+00> : vector<128x4xf32>
    %29 = tpu.matmul %0, %28, %cst_15 {dimension_numbers = #tpu.dot_dimension_numbers<[1], [0], [0], [1], [0, 0, 1, 1], [], []>} : vector<128x4xbf16>, vector<4x4xbf16>, vector<128x4xf32> -> vector<128x4xf32>
    %cst_16 = arith.constant dense<0.000000e+00> : vector<4xf32>
    %30 = vector.multi_reduction <add>, %29, %cst_16 [0] : vector<128x4xf32> to vector<4xf32>
    %31 = vector.shape_cast %30 : vector<4xf32> to vector<1x4xf32>
    %cst_17 = arith.constant 1.280000e+02 : f32
    %32 = vector.broadcast %cst_17 : f32 to vector<1x4xf32>
    %33 = arith.divf %31, %32 : vector<1x4xf32>
    %34 = arith.mulf %29, %29 : vector<128x4xf32>
    %cst_18 = arith.constant dense<0.000000e+00> : vector<4xf32>
    %35 = vector.multi_reduction <add>, %34, %cst_18 [0] : vector<128x4xf32> to vector<4xf32>
    %36 = vector.shape_cast %35 : vector<4xf32> to vector<1x4xf32>
    %cst_19 = arith.constant 1.280000e+02 : f32
    %37 = vector.broadcast %cst_19 : f32 to vector<1x4xf32>
    %38 = arith.divf %36, %37 : vector<1x4xf32>
    %39 = arith.mulf %33, %33 : vector<1x4xf32>
    %40 = arith.subf %38, %39 : vector<1x4xf32>
    %cst_20 = arith.constant 0.000000e+00 : f32
    %41 = vector.broadcast %cst_20 : f32 to vector<1x4xf32>
    %42 = arith.maximumf %40, %41 : vector<1x4xf32>
    %c0_21 = arith.constant 0 : index
    %c0_22 = arith.constant 0 : index
    %43 = vector.load %arg6[%c0_21, %c0_22] : memref<1x4xf32, #tpu.memory_space<vmem>>, vector<1x4xf32>
    %cst_23 = arith.constant 9.99999974E-6 : f32
    %44 = vector.broadcast %cst_23 : f32 to vector<1x4xf32>
    %45 = arith.addf %42, %44 : vector<1x4xf32>
    %46 = math.rsqrt %45 : vector<1x4xf32>
    %47 = arith.mulf %43, %46 : vector<1x4xf32>
    %c0_24 = arith.constant 0 : index
    %c0_25 = arith.constant 0 : index
    %48 = vector.load %arg7[%c0_24, %c0_25] : memref<1x4xf32, #tpu.memory_space<vmem>>, vector<1x4xf32>
    %49 = arith.mulf %33, %47 : vector<1x4xf32>
    %50 = arith.subf %48, %49 : vector<1x4xf32>
    %51 = vector.broadcast %47 : vector<1x4xf32> to vector<128x4xf32>
    %52 = arith.mulf %29, %51 : vector<128x4xf32>
    %53 = vector.broadcast %50 : vector<1x4xf32> to vector<128x4xf32>
    %54 = arith.addf %52, %53 : vector<128x4xf32>
    %cst_26 = arith.constant 0.000000e+00 : f32
    %55 = vector.broadcast %cst_26 : f32 to vector<128x4xf32>
    %56 = arith.maximumf %54, %55 : vector<128x4xf32>
    %cst_27 = arith.constant 0.000000e+00 : f32
    %57 = vector.broadcast %cst_27 : f32 to vector<128x4xf32>
    %c9_i32 = arith.constant 9 : i32
    %58 = tpu.dynamic_rotate %56 by %c9_i32 dim 0 : vector<128x4xf32>, i32 -> vector<128x4xf32>
    %c0_28 = arith.constant 0 : index
    %c0_29 = arith.constant 0 : index
    %c0_30 = arith.constant 0 : index
    %59 = vector.load %arg5[%c0_28, %c0_29, %c0_30] : memref<9x128x1xf32, #tpu.memory_space<vmem>>, vector<1x128x1xf32>
    %60 = vector.shape_cast %59 : vector<1x128x1xf32> to vector<128x1xf32>
    %61 = vector.broadcast %60 : vector<128x1xf32> to vector<128x4xf32>
    %62 = arith.mulf %58, %61 : vector<128x4xf32>
    %63 = arith.truncf %62 : vector<128x4xf32> to vector<128x4xbf16>
    %c0_31 = arith.constant 0 : index
    %c0_32 = arith.constant 0 : index
    %c0_33 = arith.constant 0 : index
    %64 = vector.load %arg2[%c0_31, %c0_32, %c0_33] : memref<9x4x4xbf16, #tpu.memory_space<vmem>>, vector<1x4x4xbf16>
    %65 = vector.shape_cast %64 : vector<1x4x4xbf16> to vector<4x4xbf16>
    %cst_34 = arith.constant dense<0.000000e+00> : vector<128x4xf32>
    %66 = tpu.matmul %63, %65, %cst_34 {dimension_numbers = #tpu.dot_dimension_numbers<[1], [0], [0], [1], [0, 0, 1, 1], [], []>} : vector<128x4xbf16>, vector<4x4xbf16>, vector<128x4xf32> -> vector<128x4xf32>
    %67 = arith.addf %57, %66 : vector<128x4xf32>
    %c8_i32 = arith.constant 8 : i32
    %68 = tpu.dynamic_rotate %56 by %c8_i32 dim 0 : vector<128x4xf32>, i32 -> vector<128x4xf32>
    %c1 = arith.constant 1 : index
    %c0_35 = arith.constant 0 : index
    %c0_36 = arith.constant 0 : index
    %69 = vector.load %arg5[%c1, %c0_35, %c0_36] : memref<9x128x1xf32, #tpu.memory_space<vmem>>, vector<1x128x1xf32>
    %70 = vector.shape_cast %69 : vector<1x128x1xf32> to vector<128x1xf32>
    %71 = vector.broadcast %70 : vector<128x1xf32> to vector<128x4xf32>
    %72 = arith.mulf %68, %71 : vector<128x4xf32>
    %73 = arith.truncf %72 : vector<128x4xf32> to vector<128x4xbf16>
    %c1_37 = arith.constant 1 : index
    %c0_38 = arith.constant 0 : index
    %c0_39 = arith.constant 0 : index
    %74 = vector.load %arg2[%c1_37, %c0_38, %c0_39] : memref<9x4x4xbf16, #tpu.memory_space<vmem>>, vector<1x4x4xbf16>
    %75 = vector.shape_cast %74 : vector<1x4x4xbf16> to vector<4x4xbf16>
    %cst_40 = arith.constant dense<0.000000e+00> : vector<128x4xf32>
    %76 = tpu.matmul %73, %75, %cst_40 {dimension_numbers = #tpu.dot_dimension_numbers<[1], [0], [0], [1], [0, 0, 1, 1], [], []>} : vector<128x4xbf16>, vector<4x4xbf16>, vector<128x4xf32> -> vector<128x4xf32>
    %77 = arith.addf %67, %76 : vector<128x4xf32>
    %c7_i32 = arith.constant 7 : i32
    %78 = tpu.dynamic_rotate %56 by %c7_i32 dim 0 : vector<128x4xf32>, i32 -> vector<128x4xf32>
    %c2 = arith.constant 2 : index
    %c0_41 = arith.constant 0 : index
    %c0_42 = arith.constant 0 : index
    %79 = vector.load %arg5[%c2, %c0_41, %c0_42] : memref<9x128x1xf32, #tpu.memory_space<vmem>>, vector<1x128x1xf32>
    %80 = vector.shape_cast %79 : vector<1x128x1xf32> to vector<128x1xf32>
    %81 = vector.broadcast %80 : vector<128x1xf32> to vector<128x4xf32>
    %82 = arith.mulf %78, %81 : vector<128x4xf32>
    %83 = arith.truncf %82 : vector<128x4xf32> to vector<128x4xbf16>
    %c2_43 = arith.constant 2 : index
    %c0_44 = arith.constant 0 : index
    %c0_45 = arith.constant 0 : index
    %84 = vector.load %arg2[%c2_43, %c0_44, %c0_45] : memref<9x4x4xbf16, #tpu.memory_space<vmem>>, vector<1x4x4xbf16>
    %85 = vector.shape_cast %84 : vector<1x4x4xbf16> to vector<4x4xbf16>
    %cst_46 = arith.constant dense<0.000000e+00> : vector<128x4xf32>
    %86 = tpu.matmul %83, %85, %cst_46 {dimension_numbers = #tpu.dot_dimension_numbers<[1], [0], [0], [1], [0, 0, 1, 1], [], []>} : vector<128x4xbf16>, vector<4x4xbf16>, vector<128x4xf32> -> vector<128x4xf32>
    %87 = arith.addf %77, %86 : vector<128x4xf32>
    %c1_i32 = arith.constant 1 : i32
    %88 = tpu.dynamic_rotate %56 by %c1_i32 dim 0 : vector<128x4xf32>, i32 -> vector<128x4xf32>
    %c3 = arith.constant 3 : index
    %c0_47 = arith.constant 0 : index
    %c0_48 = arith.constant 0 : index
    %89 = vector.load %arg5[%c3, %c0_47, %c0_48] : memref<9x128x1xf32, #tpu.memory_space<vmem>>, vector<1x128x1xf32>
    %90 = vector.shape_cast %89 : vector<1x128x1xf32> to vector<128x1xf32>
    %91 = vector.broadcast %90 : vector<128x1xf32> to vector<128x4xf32>
    %92 = arith.mulf %88, %91 : vector<128x4xf32>
    %93 = arith.truncf %92 : vector<128x4xf32> to vector<128x4xbf16>
    %c3_49 = arith.constant 3 : index
    %c0_50 = arith.constant 0 : index
    %c0_51 = arith.constant 0 : index
    %94 = vector.load %arg2[%c3_49, %c0_50, %c0_51] : memref<9x4x4xbf16, #tpu.memory_space<vmem>>, vector<1x4x4xbf16>
    %95 = vector.shape_cast %94 : vector<1x4x4xbf16> to vector<4x4xbf16>
    %cst_52 = arith.constant dense<0.000000e+00> : vector<128x4xf32>
    %96 = tpu.matmul %93, %95, %cst_52 {dimension_numbers = #tpu.dot_dimension_numbers<[1], [0], [0], [1], [0, 0, 1, 1], [], []>} : vector<128x4xbf16>, vector<4x4xbf16>, vector<128x4xf32> -> vector<128x4xf32>
    %97 = arith.addf %87, %96 : vector<128x4xf32>
    %c4 = arith.constant 4 : index
    %c0_53 = arith.constant 0 : index
    %c0_54 = arith.constant 0 : index
    %98 = vector.load %arg5[%c4, %c0_53, %c0_54] : memref<9x128x1xf32, #tpu.memory_space<vmem>>, vector<1x128x1xf32>
    %99 = vector.shape_cast %98 : vector<1x128x1xf32> to vector<128x1xf32>
    %100 = vector.broadcast %99 : vector<128x1xf32> to vector<128x4xf32>
    %101 = arith.mulf %56, %100 : vector<128x4xf32>
    %102 = arith.truncf %101 : vector<128x4xf32> to vector<128x4xbf16>
    %c4_55 = arith.constant 4 : index
    %c0_56 = arith.constant 0 : index
    %c0_57 = arith.constant 0 : index
    %103 = vector.load %arg2[%c4_55, %c0_56, %c0_57] : memref<9x4x4xbf16, #tpu.memory_space<vmem>>, vector<1x4x4xbf16>
    %104 = vector.shape_cast %103 : vector<1x4x4xbf16> to vector<4x4xbf16>
    %cst_58 = arith.constant dense<0.000000e+00> : vector<128x4xf32>
    %105 = tpu.matmul %102, %104, %cst_58 {dimension_numbers = #tpu.dot_dimension_numbers<[1], [0], [0], [1], [0, 0, 1, 1], [], []>} : vector<128x4xbf16>, vector<4x4xbf16>, vector<128x4xf32> -> vector<128x4xf32>
    %106 = arith.addf %97, %105 : vector<128x4xf32>
    %c127_i32 = arith.constant 127 : i32
    %107 = tpu.dynamic_rotate %56 by %c127_i32 dim 0 : vector<128x4xf32>, i32 -> vector<128x4xf32>
    %c5 = arith.constant 5 : index
    %c0_59 = arith.constant 0 : index
    %c0_60 = arith.constant 0 : index
    %108 = vector.load %arg5[%c5, %c0_59, %c0_60] : memref<9x128x1xf32, #tpu.memory_space<vmem>>, vector<1x128x1xf32>
    %109 = vector.shape_cast %108 : vector<1x128x1xf32> to vector<128x1xf32>
    %110 = vector.broadcast %109 : vector<128x1xf32> to vector<128x4xf32>
    %111 = arith.mulf %107, %110 : vector<128x4xf32>
    %112 = arith.truncf %111 : vector<128x4xf32> to vector<128x4xbf16>
    %c5_61 = arith.constant 5 : index
    %c0_62 = arith.constant 0 : index
    %c0_63 = arith.constant 0 : index
    %113 = vector.load %arg2[%c5_61, %c0_62, %c0_63] : memref<9x4x4xbf16, #tpu.memory_space<vmem>>, vector<1x4x4xbf16>
    %114 = vector.shape_cast %113 : vector<1x4x4xbf16> to vector<4x4xbf16>
    %cst_64 = arith.constant dense<0.000000e+00> : vector<128x4xf32>
    %115 = tpu.matmul %112, %114, %cst_64 {dimension_numbers = #tpu.dot_dimension_numbers<[1], [0], [0], [1], [0, 0, 1, 1], [], []>} : vector<128x4xbf16>, vector<4x4xbf16>, vector<128x4xf32> -> vector<128x4xf32>
    %116 = arith.addf %106, %115 : vector<128x4xf32>
    %c121_i32 = arith.constant 121 : i32
    %117 = tpu.dynamic_rotate %56 by %c121_i32 dim 0 : vector<128x4xf32>, i32 -> vector<128x4xf32>
    %c6 = arith.constant 6 : index
    %c0_65 = arith.constant 0 : index
    %c0_66 = arith.constant 0 : index
    %118 = vector.load %arg5[%c6, %c0_65, %c0_66] : memref<9x128x1xf32, #tpu.memory_space<vmem>>, vector<1x128x1xf32>
    %119 = vector.shape_cast %118 : vector<1x128x1xf32> to vector<128x1xf32>
    %120 = vector.broadcast %119 : vector<128x1xf32> to vector<128x4xf32>
    %121 = arith.mulf %117, %120 : vector<128x4xf32>
    %122 = arith.truncf %121 : vector<128x4xf32> to vector<128x4xbf16>
    %c6_67 = arith.constant 6 : index
    %c0_68 = arith.constant 0 : index
    %c0_69 = arith.constant 0 : index
    %123 = vector.load %arg2[%c6_67, %c0_68, %c0_69] : memref<9x4x4xbf16, #tpu.memory_space<vmem>>, vector<1x4x4xbf16>
    %124 = vector.shape_cast %123 : vector<1x4x4xbf16> to vector<4x4xbf16>
    %cst_70 = arith.constant dense<0.000000e+00> : vector<128x4xf32>
    %125 = tpu.matmul %122, %124, %cst_70 {dimension_numbers = #tpu.dot_dimension_numbers<[1], [0], [0], [1], [0, 0, 1, 1], [], []>} : vector<128x4xbf16>, vector<4x4xbf16>, vector<128x4xf32> -> vector<128x4xf32>
    %126 = arith.addf %116, %125 : vector<128x4xf32>
    %c120_i32 = arith.constant 120 : i32
    %127 = tpu.dynamic_rotate %56 by %c120_i32 dim 0 : vector<128x4xf32>, i32 -> vector<128x4xf32>
    %c7 = arith.constant 7 : index
    %c0_71 = arith.constant 0 : index
    %c0_72 = arith.constant 0 : index
    %128 = vector.load %arg5[%c7, %c0_71, %c0_72] : memref<9x128x1xf32, #tpu.memory_space<vmem>>, vector<1x128x1xf32>
    %129 = vector.shape_cast %128 : vector<1x128x1xf32> to vector<128x1xf32>
    %130 = vector.broadcast %129 : vector<128x1xf32> to vector<128x4xf32>
    %131 = arith.mulf %127, %130 : vector<128x4xf32>
    %132 = arith.truncf %131 : vector<128x4xf32> to vector<128x4xbf16>
    %c7_73 = arith.constant 7 : index
    %c0_74 = arith.constant 0 : index
    %c0_75 = arith.constant 0 : index
    %133 = vector.load %arg2[%c7_73, %c0_74, %c0_75] : memref<9x4x4xbf16, #tpu.memory_space<vmem>>, vector<1x4x4xbf16>
    %134 = vector.shape_cast %133 : vector<1x4x4xbf16> to vector<4x4xbf16>
    %cst_76 = arith.constant dense<0.000000e+00> : vector<128x4xf32>
    %135 = tpu.matmul %132, %134, %cst_76 {dimension_numbers = #tpu.dot_dimension_numbers<[1], [0], [0], [1], [0, 0, 1, 1], [], []>} : vector<128x4xbf16>, vector<4x4xbf16>, vector<128x4xf32> -> vector<128x4xf32>
    %136 = arith.addf %126, %135 : vector<128x4xf32>
    %c119_i32 = arith.constant 119 : i32
    %137 = tpu.dynamic_rotate %56 by %c119_i32 dim 0 : vector<128x4xf32>, i32 -> vector<128x4xf32>
    %c8 = arith.constant 8 : index
    %c0_77 = arith.constant 0 : index
    %c0_78 = arith.constant 0 : index
    %138 = vector.load %arg5[%c8, %c0_77, %c0_78] : memref<9x128x1xf32, #tpu.memory_space<vmem>>, vector<1x128x1xf32>
    %139 = vector.shape_cast %138 : vector<1x128x1xf32> to vector<128x1xf32>
    %140 = vector.broadcast %139 : vector<128x1xf32> to vector<128x4xf32>
    %141 = arith.mulf %137, %140 : vector<128x4xf32>
    %142 = arith.truncf %141 : vector<128x4xf32> to vector<128x4xbf16>
    %c8_79 = arith.constant 8 : index
    %c0_80 = arith.constant 0 : index
    %c0_81 = arith.constant 0 : index
    %143 = vector.load %arg2[%c8_79, %c0_80, %c0_81] : memref<9x4x4xbf16, #tpu.memory_space<vmem>>, vector<1x4x4xbf16>
    %144 = vector.shape_cast %143 : vector<1x4x4xbf16> to vector<4x4xbf16>
    %cst_82 = arith.constant dense<0.000000e+00> : vector<128x4xf32>
    %145 = tpu.matmul %142, %144, %cst_82 {dimension_numbers = #tpu.dot_dimension_numbers<[1], [0], [0], [1], [0, 0, 1, 1], [], []>} : vector<128x4xbf16>, vector<4x4xbf16>, vector<128x4xf32> -> vector<128x4xf32>
    %146 = arith.addf %136, %145 : vector<128x4xf32>
    %cst_83 = arith.constant dense<0.000000e+00> : vector<4xf32>
    %147 = vector.multi_reduction <add>, %146, %cst_83 [0] : vector<128x4xf32> to vector<4xf32>
    %148 = vector.shape_cast %147 : vector<4xf32> to vector<1x4xf32>
    %cst_84 = arith.constant 1.280000e+02 : f32
    %149 = vector.broadcast %cst_84 : f32 to vector<1x4xf32>
    %150 = arith.divf %148, %149 : vector<1x4xf32>
    %151 = arith.mulf %146, %146 : vector<128x4xf32>
    %cst_85 = arith.constant dense<0.000000e+00> : vector<4xf32>
    %152 = vector.multi_reduction <add>, %151, %cst_85 [0] : vector<128x4xf32> to vector<4xf32>
    %153 = vector.shape_cast %152 : vector<4xf32> to vector<1x4xf32>
    %cst_86 = arith.constant 1.280000e+02 : f32
    %154 = vector.broadcast %cst_86 : f32 to vector<1x4xf32>
    %155 = arith.divf %153, %154 : vector<1x4xf32>
    %156 = arith.mulf %150, %150 : vector<1x4xf32>
    %157 = arith.subf %155, %156 : vector<1x4xf32>
    %cst_87 = arith.constant 0.000000e+00 : f32
    %158 = vector.broadcast %cst_87 : f32 to vector<1x4xf32>
    %159 = arith.maximumf %157, %158 : vector<1x4xf32>
    %c0_88 = arith.constant 0 : index
    %c0_89 = arith.constant 0 : index
    %160 = vector.load %arg8[%c0_88, %c0_89] : memref<1x4xf32, #tpu.memory_space<vmem>>, vector<1x4xf32>
    %cst_90 = arith.constant 9.99999974E-6 : f32
    %161 = vector.broadcast %cst_90 : f32 to vector<1x4xf32>
    %162 = arith.addf %159, %161 : vector<1x4xf32>
    %163 = math.rsqrt %162 : vector<1x4xf32>
    %164 = arith.mulf %160, %163 : vector<1x4xf32>
    %c0_91 = arith.constant 0 : index
    %c0_92 = arith.constant 0 : index
    %165 = vector.load %arg9[%c0_91, %c0_92] : memref<1x4xf32, #tpu.memory_space<vmem>>, vector<1x4xf32>
    %166 = arith.mulf %150, %164 : vector<1x4xf32>
    %167 = arith.subf %165, %166 : vector<1x4xf32>
    %168 = vector.broadcast %164 : vector<1x4xf32> to vector<128x4xf32>
    %169 = arith.mulf %146, %168 : vector<128x4xf32>
    %170 = vector.broadcast %167 : vector<1x4xf32> to vector<128x4xf32>
    %171 = arith.addf %169, %170 : vector<128x4xf32>
    %cst_93 = arith.constant 0.000000e+00 : f32
    %172 = vector.broadcast %cst_93 : f32 to vector<128x4xf32>
    %173 = arith.maximumf %171, %172 : vector<128x4xf32>
    %174 = arith.truncf %173 : vector<128x4xf32> to vector<128x4xbf16>
    %c0_94 = arith.constant 0 : index
    %c0_95 = arith.constant 0 : index
    %175 = vector.load %arg3[%c0_94, %c0_95] : memref<4x8xbf16, #tpu.memory_space<vmem>>, vector<4x8xbf16>
    %cst_96 = arith.constant dense<0.000000e+00> : vector<128x8xf32>
    %176 = tpu.matmul %174, %175, %cst_96 {dimension_numbers = #tpu.dot_dimension_numbers<[1], [0], [0], [1], [0, 0, 1, 1], [], []>} : vector<128x4xbf16>, vector<4x8xbf16>, vector<128x8xf32> -> vector<128x8xf32>
    %cst_97 = arith.constant dense<0.000000e+00> : vector<8xf32>
    %177 = vector.multi_reduction <add>, %176, %cst_97 [0] : vector<128x8xf32> to vector<8xf32>
    %178 = vector.shape_cast %177 : vector<8xf32> to vector<1x8xf32>
    %cst_98 = arith.constant 1.280000e+02 : f32
    %179 = vector.broadcast %cst_98 : f32 to vector<1x8xf32>
    %180 = arith.divf %178, %179 : vector<1x8xf32>
    %181 = arith.mulf %176, %176 : vector<128x8xf32>
    %cst_99 = arith.constant dense<0.000000e+00> : vector<8xf32>
    %182 = vector.multi_reduction <add>, %181, %cst_99 [0] : vector<128x8xf32> to vector<8xf32>
    %183 = vector.shape_cast %182 : vector<8xf32> to vector<1x8xf32>
    %cst_100 = arith.constant 1.280000e+02 : f32
    %184 = vector.broadcast %cst_100 : f32 to vector<1x8xf32>
    %185 = arith.divf %183, %184 : vector<1x8xf32>
    %186 = arith.mulf %180, %180 : vector<1x8xf32>
    %187 = arith.subf %185, %186 : vector<1x8xf32>
    %cst_101 = arith.constant 0.000000e+00 : f32
    %188 = vector.broadcast %cst_101 : f32 to vector<1x8xf32>
    %189 = arith.maximumf %187, %188 : vector<1x8xf32>
    %c0_102 = arith.constant 0 : index
    %c0_103 = arith.constant 0 : index
    %190 = vector.load %arg10[%c0_102, %c0_103] : memref<1x8xf32, #tpu.memory_space<vmem>>, vector<1x8xf32>
    %cst_104 = arith.constant 9.99999974E-6 : f32
    %191 = vector.broadcast %cst_104 : f32 to vector<1x8xf32>
    %192 = arith.addf %189, %191 : vector<1x8xf32>
    %193 = math.rsqrt %192 : vector<1x8xf32>
    %194 = arith.mulf %190, %193 : vector<1x8xf32>
    %c0_105 = arith.constant 0 : index
    %c0_106 = arith.constant 0 : index
    %195 = vector.load %arg11[%c0_105, %c0_106] : memref<1x8xf32, #tpu.memory_space<vmem>>, vector<1x8xf32>
    %196 = arith.mulf %180, %194 : vector<1x8xf32>
    %197 = arith.subf %195, %196 : vector<1x8xf32>
    %198 = vector.broadcast %194 : vector<1x8xf32> to vector<128x8xf32>
    %199 = arith.mulf %176, %198 : vector<128x8xf32>
    %200 = vector.broadcast %197 : vector<1x8xf32> to vector<128x8xf32>
    %201 = arith.addf %199, %200 : vector<128x8xf32>
    %202 = arith.addf %201, %27 : vector<128x8xf32>
    %cst_107 = arith.constant 0.000000e+00 : f32
    %203 = vector.broadcast %cst_107 : f32 to vector<128x8xf32>
    %204 = arith.maximumf %202, %203 : vector<128x8xf32>
    %c0_108 = arith.constant 0 : index
    %c0_109 = arith.constant 0 : index
    %205 = vector.load %arg14[%c0_108, %c0_109] : memref<128x8xf32, #tpu.memory_space<vmem>>, vector<128x8xf32>
    tpu.vector_store %arg14[%c0_108, %c0_109], %204 {strides = array<i32>} : memref<128x8xf32, #tpu.memory_space<vmem>>, vector<128x8xf32>,
    return
  }
}

</mosaic_0001>

<llo_original>
// kernel: conv_block_forward.1
$region0: #{conv_block_forward.1}
  #allocation0 [shape = 'u32[]', space=smem, size = 0x4, offset = 0x4, fixed_abs, tag = 'smem constant byte address 0x4 - core index']
  #allocation1 [shape = 'u32[144,128]{1,0:T(1,128)}', space=vmem, size = 0x12000, scoped, tag = 'internal scratch']
  %s0 = inlined_call_operand.vmem [shape: bf16[128,4], index: 0, kind: input, shape index: {}]
  %s1 = inlined_call_operand.vmem [shape: bf16[4,4], index: 1, kind: input, shape index: {}]
  %s2 = inlined_call_operand.vmem [shape: bf16[9,4,4], index: 2, kind: input, shape index: {}]
  %s3 = inlined_call_operand.vmem [shape: bf16[4,8], index: 3, kind: input, shape index: {}]
  %s4 = inlined_call_operand.vmem [shape: bf16[4,8], index: 4, kind: input, shape index: {}]
  %s5 = inlined_call_operand.vmem [shape: f32[9,128,1], index: 5, kind: input, shape index: {}]
  %s6 = inlined_call_operand.vmem [shape: f32[1,4], index: 6, kind: input, shape index: {}]
  %s7 = inlined_call_operand.vmem [shape: f32[1,4], index: 7, kind: input, shape index: {}]
  %s8 = inlined_call_operand.vmem [shape: f32[1,4], index: 8, kind: input, shape index: {}]
  %s9 = inlined_call_operand.vmem [shape: f32[1,4], index: 9, kind: input, shape index: {}]
  %s10 = inlined_call_operand.vmem [shape: f32[1,8], index: 10, kind: input, shape index: {}]
  %s11 = inlined_call_operand.vmem [shape: f32[1,8], index: 11, kind: input, shape index: {}]
  %s12 = inlined_call_operand.vmem [shape: f32[1,8], index: 12, kind: input, shape index: {}]
  %s13 = inlined_call_operand.vmem [shape: f32[1,8], index: 13, kind: input, shape index: {}]
  %s14 = inlined_call_operand.vmem [shape: f32[128,8], index: 14, kind: output, shape index: {}]
  %s15 = sld [smem:[#allocation0]]
  $region66: #{conv_block_forward.1} parent=0
    _
  %s17 = ssub.s32 1, %s15
  %s18 = scalar_select 0, %s17, %s15
  // Predicated region
  $region2: #{conv_block_forward.1} parent=0 // pred_check
    _
  $region3: #{conv_block_forward.1} parent=0 // pred_check_branch
    %20 = sbr.rel (0) target = $region5
  $region4: #{conv_block_forward.1} parent=0 // pred_region
    _
  $region5: #{conv_block_forward.1} parent=0 // pred_fallthru
    _
  // Predicated region
  $region6: #{conv_block_forward.1} parent=0 // pred_check
    _
  $region7: #{conv_block_forward.1} parent=0 // pred_check_branch
    %22 = sbr.rel (0) target = $region9
  $region8: #{conv_block_forward.1} parent=0 // pred_region
    _
  $region9: #{conv_block_forward.1} parent=0 // pred_fallthru
    _
  // Predicated region
  $region10: #{conv_block_forward.1} parent=0 // pred_check
    _
  $region11: #{conv_block_forward.1} parent=0 // pred_check_branch
    %24 = sbr.rel (0) target = $region13
  $region12: #{conv_block_forward.1} parent=0 // pred_region
    _
  $region13: #{conv_block_forward.1} parent=0 // pred_fallthru
    _
  // Predicated region
  $region14: #{conv_block_forward.1} parent=0 // pred_check
    _
  $region15: #{conv_block_forward.1} parent=0 // pred_check_branch
    %26 = sbr.rel (0) target = $region17
  $region16: #{conv_block_forward.1} parent=0 // pred_region
    _
  $region17: #{conv_block_forward.1} parent=0 // pred_fallthru
    _
  // Predicated region
  $region18: #{conv_block_forward.1} parent=0 // pred_check
    _
  $region19: #{conv_block_forward.1} parent=0 // pred_check_branch
    %28 = sbr.rel (0) target = $region21
  $region20: #{conv_block_forward.1} parent=0 // pred_region
    _
  $region21: #{conv_block_forward.1} parent=0 // pred_fallthru
    _
  // Predicated region
  $region22: #{conv_block_forward.1} parent=0 // pred_check
    _
  $region23: #{conv_block_forward.1} parent=0 // pred_check_branch
    %30 = sbr.rel (0) target = $region25
  $region24: #{conv_block_forward.1} parent=0 // pred_region
    _
  $region25: #{conv_block_forward.1} parent=0 // pred_fallthru
    _
  // Predicated region
  $region26: #{conv_block_forward.1} parent=0 // pred_check
    _
  $region27: #{conv_block_forward.1} parent=0 // pred_check_branch
    %32 = sbr.rel (0) target = $region29
  $region28: #{conv_block_forward.1} parent=0 // pred_region
    _
  $region29: #{conv_block_forward.1} parent=0 // pred_fallthru
    _
  // Predicated region
  $region30: #{conv_block_forward.1} parent=0 // pred_check
    _
  $region31: #{conv_block_forward.1} parent=0 // pred_check_branch
    %34 = sbr.rel (0) target = $region33
  $region32: #{conv_block_forward.1} parent=0 // pred_region
    _
  $region33: #{conv_block_forward.1} parent=0 // pred_fallthru
    _
  // Predicated region
  $region34: #{conv_block_forward.1} parent=0 // pred_check
    _
  $region35: #{conv_block_forward.1} parent=0 // pred_check_branch
    %36 = sbr.rel (0) target = $region37
  $region36: #{conv_block_forward.1} parent=0 // pred_region
    _
  $region37: #{conv_block_forward.1} parent=0 // pred_fallthru
    _
  // Predicated region
  $region38: #{conv_block_forward.1} parent=0 // pred_check
    _
  $region39: #{conv_block_forward.1} parent=0 // pred_check_branch
    %38 = sbr.rel (0) target = $region41
  $region40: #{conv_block_forward.1} parent=0 // pred_region
    _
  $region41: #{conv_block_forward.1} parent=0 // pred_fallthru
    _
  // Predicated region
  $region42: #{conv_block_forward.1} parent=0 // pred_check
    _
  $region43: #{conv_block_forward.1} parent=0 // pred_check_branch
    %40 = sbr.rel (0) target = $region45
  $region44: #{conv_block_forward.1} parent=0 // pred_region
    _
  $region45: #{conv_block_forward.1} parent=0 // pred_fallthru
    _
  // Predicated region
  $region46: #{conv_block_forward.1} parent=0 // pred_check
    _
  $region47: #{conv_block_forward.1} parent=0 // pred_check_branch
    %42 = sbr.rel (0) target = $region49
  $region48: #{conv_block_forward.1} parent=0 // pred_region
    _
  $region49: #{conv_block_forward.1} parent=0 // pred_fallthru
    _
  // Predicated region
  $region50: #{conv_block_forward.1} parent=0 // pred_check
    _
  $region51: #{conv_block_forward.1} parent=0 // pred_check_branch
    %44 = sbr.rel (0) target = $region53
  $region52: #{conv_block_forward.1} parent=0 // pred_region
    _
  $region53: #{conv_block_forward.1} parent=0 // pred_fallthru
    _
  // Predicated region
  $region54: #{conv_block_forward.1} parent=0 // pred_check
    _
  $region55: #{conv_block_forward.1} parent=0 // pred_check_branch
    %46 = sbr.rel (0) target = $region57
  $region56: #{conv_block_forward.1} parent=0 // pred_region
    _
  $region57: #{conv_block_forward.1} parent=0 // pred_fallthru
    _
  %v48 = vld [vmem:[%s0] sm:$0xf]
  %v49 = vld [vmem:[%s0 + $0x4] sm:$0xf]
  %v50 = vld [vmem:[%s0 + $0x8] sm:$0xf]
  %v51 = vld [vmem:[%s0 + $0xc] sm:$0xf]
  %v52 = vld [vmem:[%s0 + $0x10] sm:$0xf]
  %v53 = vld [vmem:[%s0 + $0x14] sm:$0xf]
  %v54 = vld [vmem:[%s0 + $0x18] sm:$0xf]
  %v55 = vld [vmem:[%s0 + $0x1c] sm:$0xf]
  %v56 = vld [vmem:[%s0 + $0x20] sm:$0xf]
  %v57 = vld [vmem:[%s0 + $0x24] sm:$0xf]
  %v58 = vld [vmem:[%s0 + $0x28] sm:$0xf]
  %v59 = vld [vmem:[%s0 + $0x2c] sm:$0xf]
  %v60 = vld [vmem:[%s0 + $0x30] sm:$0xf]
  %v61 = vld [vmem:[%s0 + $0x34] sm:$0xf]
  %v62 = vld [vmem:[%s0 + $0x38] sm:$0xf]
  %v63 = vld [vmem:[%s0 + $0x3c] sm:$0xf]
  %v64 = vld [vmem:[%s4] sm:$0x3]
  %v81 = vunpack.c.l.b16 %v48
  %v82 = vunpack.c.l.b16 %v49
  %v83 = vunpack.c.l.b16 %v50
  %v84 = vunpack.c.l.b16 %v51
  %v85 = vunpack.c.l.b16 %v52
  %v86 = vunpack.c.l.b16 %v53
  %v87 = vunpack.c.l.b16 %v54
  %v88 = vunpack.c.l.b16 %v55
  %v89 = vunpack.c.l.b16 %v56
  %v90 = vunpack.c.l.b16 %v57
  %v91 = vunpack.c.l.b16 %v58
  %v92 = vunpack.c.l.b16 %v59
  %v93 = vunpack.c.l.b16 %v60
  %v94 = vunpack.c.l.b16 %v61
  %v95 = vunpack.c.l.b16 %v62
  %v96 = vunpack.c.l.b16 %v63
  %v97 = vpack.c.b16 %v82, %v81
  %v98 = vpack.c.b16 %v84, %v83
  %v99 = vpack.c.b16 %v86, %v85
  %v100 = vpack.c.b16 %v88, %v87
  %v101 = vpack.c.b16 %v90, %v89
  %v102 = vpack.c.b16 %v92, %v91
  %v103 = vpack.c.b16 %v94, %v93
  %v104 = vpack.c.b16 %v96, %v95
  %vm105 = vcmask 31744
  %v107 = vsel %vm105, %v97, 0
  %v110 = vsel %vm105, %v98, 0
  %v113 = vsel %vm105, %v99, 0
  %v116 = vsel %vm105, %v100, 0
  %v119 = vsel %vm105, %v101, 0
  %v122 = vsel %vm105, %v102, 0
  %v125 = vsel %vm105, %v103, 0
  %v128 = vsel %vm105, %v104, 0
  %vm130 = vcmask 1041408
  %v132 = vsel %vm130, %v64, 0
  %134 = vmatprep.subr.bf16.mxu0 0
  %135 = vmatpush1.bf16.msra.mxu0 %v132
  %136 = vmatprep.subr.bf16.mxu0 0
  %137 = vmatpush1.bf16.msra.mxu0 0
  %138 = vmatprep.subr.bf16.mxu0 0
  %139 = vmatpush1.bf16.msra.mxu0 0
  %140 = vmatprep.subr.bf16.mxu0 0
  %141 = vmatpush1.bf16.msra.mxu0 0
  %142 = vmatprep.subr.bf16.mxu0 0
  %143 = vmatpush1.bf16.msra.mxu0 0
  %144 = vmatprep.subr.bf16.mxu0 0
  %145 = vmatpush1.bf16.msra.mxu0 0
  %146 = vmatprep.subr.bf16.mxu0 0
  %147 = vmatpush1.bf16.msra.mxu0 0
  %148 = vmatprep.subr.bf16.mxu0 0
  %149 = vmatpush1.bf16.msra.mxu0 0
  %150 = vmatprep.subr.bf16.mxu0 0
  %151 = vmatpush1.bf16.msra.mxu0 0
  %152 = vmatprep.subr.bf16.mxu0 0
  %153 = vmatpush1.bf16.msra.mxu0 0
  %154 = vmatprep.subr.bf16.mxu0 0
  %155 = vmatpush1.bf16.msra.mxu0 0
  %156 = vmatprep.subr.bf16.mxu0 0
  %157 = vmatpush1.bf16.msra.mxu0 0
  %158 = vmatprep.subr.bf16.mxu0 0
  %159 = vmatpush1.bf16.msra.mxu0 0
  %160 = vmatprep.subr.bf16.mxu0 0
  %161 = vmatpush1.bf16.msra.mxu0 0
  %162 = vmatprep.subr.bf16.mxu0 0
  %163 = vmatpush1.bf16.msra.mxu0 0
  %164 = vmatprep.subr.bf16.mxu0 0
  %165 = vmatpush1.bf16.msra.mxu0 0
  %166 = vmatprep.mubr.bf16.mxu0 0
  %167 = vmatmul.mubr.bf16.gmra.mrb[0].mxu0 %v107
  %v168 = vpop.f32.mrb[0].mxu0
  %v169 = vadd.f32 0.0, %v168
  %v170 = vpop.f32.mrb[0].mxu0
  %v171 = vpop.f32.mrb[0].mxu0
  %v172 = vadd.f32 0.0, %v171
  %v173 = vpop.f32.mrb[0].mxu0
  %174 = vmatprep.mubr.bf16.mxu0 0
  %175 = vmatmul.mubr.bf16.gmra.mrb[0].mxu0 %v110
  %v176 = vpop.f32.mrb[0].mxu0
  %v177 = vadd.f32 0.0, %v176
  %v178 = vpop.f32.mrb[0].mxu0
  %v179 = vpop.f32.mrb[0].mxu0
  %v180 = vadd.f32 0.0, %v179
  %v181 = vpop.f32.mrb[0].mxu0
  %182 = vmatprep.mubr.bf16.mxu0 0
  %183 = vmatmul.mubr.bf16.gmra.mrb[0].mxu0 %v113
  %v184 = vpop.f32.mrb[0].mxu0
  %v185 = vadd.f32 0.0, %v184
  %v186 = vpop.f32.mrb[0].mxu0
  %v187 = vpop.f32.mrb[0].mxu0
  %v188 = vadd.f32 0.0, %v187
  %v189 = vpop.f32.mrb[0].mxu0
  %190 = vmatprep.mubr.bf16.mxu0 0
  %191 = vmatmul.mubr.bf16.gmra.mrb[0].mxu0 %v116
  %v192 = vpop.f32.mrb[0].mxu0
  %v193 = vadd.f32 0.0, %v192
  %v194 = vpop.f32.mrb[0].mxu0
  %v195 = vpop.f32.mrb[0].mxu0
  %v196 = vadd.f32 0.0, %v195
  %v197 = vpop.f32.mrb[0].mxu0
  %198 = vmatprep.mubr.bf16.mxu0 0
  %199 = vmatmul.mubr.bf16.gmra.mrb[0].mxu0 %v119
  %v200 = vpop.f32.mrb[0].mxu0
  %v201 = vadd.f32 0.0, %v200
  %v202 = vpop.f32.mrb[0].mxu0
  %v203 = vpop.f32.mrb[0].mxu0
  %v204 = vadd.f32 0.0, %v203
  %v205 = vpop.f32.mrb[0].mxu0
  %206 = vmatprep.mubr.bf16.mxu0 0
  %207 = vmatmul.mubr.bf16.gmra.mrb[0].mxu0 %v122
  %v208 = vpop.f32.mrb[0].mxu0
  %v209 = vadd.f32 0.0, %v208
  %v210 = vpop.f32.mrb[0].mxu0
  %v211 = vpop.f32.mrb[0].mxu0
  %v212 = vadd.f32 0.0, %v211
  %v213 = vpop.f32.mrb[0].mxu0
  %214 = vmatprep.mubr.bf16.mxu0 0
  %215 = vmatmul.mubr.bf16.gmra.mrb[0].mxu0 %v125
  %v216 = vpop.f32.mrb[0].mxu0
  %v217 = vadd.f32 0.0, %v216
  %v218 = vpop.f32.mrb[0].mxu0
  %v219 = vpop.f32.mrb[0].mxu0
  %v220 = vadd.f32 0.0, %v219
  %v221 = vpop.f32.mrb[0].mxu0
  %222 = vmatprep.mubr.bf16.mxu0 0
  %223 = vmatmul.mubr.bf16.gmra.mrb[0].mxu0 %v128
  %v224 = vpop.f32.mrb[0].mxu0
  %v225 = vadd.f32 0.0, %v224
  %v226 = vpop.f32.mrb[0].mxu0
  %v227 = vpop.f32.mrb[0].mxu0
  %v228 = vadd.f32 0.0, %v227
  %v229 = vpop.f32.mrb[0].mxu0
  %230 = vdwg.mxu0
  %vm231 = vcmask 64512
  %v232 = vsel %vm231, %v169, 0.0
  %v233 = vsel %vm231, %v172, 0.0
  %v234 = vadd.f32 %v232, %v233
  %v235 = vsel %vm231, %v177, 0.0
  %v236 = vadd.f32 %v234, %v235
  %v237 = vsel %vm231, %v180, 0.0
  %v238 = vadd.f32 %v236, %v237
  %v239 = vsel %vm231, %v185, 0.0
  %v240 = vadd.f32 %v238, %v239
  %v241 = vsel %vm231, %v188, 0.0
  %v242 = vadd.f32 %v240, %v241
  %v243 = vsel %vm231, %v193, 0.0
  %v244 = vadd.f32 %v242, %v243
  %v245 = vsel %vm231, %v196, 0.0
  %v246 = vadd.f32 %v244, %v245
  %v247 = vsel %vm231, %v201, 0.0
  %v248 = vadd.f32 %v246, %v247
  %v249 = vsel %vm231, %v204, 0.0
  %v250 = vadd.f32 %v248, %v249
  %v251 = vsel %vm231, %v209, 0.0
  %v252 = vadd.f32 %v250, %v251
  %v253 = vsel %vm231, %v212, 0.0
  %v254 = vadd.f32 %v252, %v253
  %v255 = vsel %vm231, %v217, 0.0
  %v256 = vadd.f32 %v254, %v255
  %v257 = vsel %vm231, %v220, 0.0
  %v258 = vadd.f32 %v256, %v257
  %v259 = vsel %vm231, %v225, 0.0
  %v260 = vadd.f32 %v258, %v259
  %v261 = vsel %vm231, %v228, 0.0
  %v262 = vadd.f32 %v260, %v261
  %v263 = vrot.slane %v262, 4
  %v264 = vadd.f32 %v262, %v263
  %v265 = vrot.slane %v264, 2
  %v266 = vadd.f32 %v264, %v265
  %v267 = vrot.slane %v266, 1
  %v268 = vadd.f32 %v266, %v267
  %v269 = vrcp.pop 128.0
  %v270 = vmul.f32 %v268, %v269
  %v271 = vmul.f32 %v169, %v169
  %v272 = vmul.f32 %v172, %v172
  %v273 = vmul.f32 %v177, %v177
  %v274 = vmul.f32 %v180, %v180
  %v275 = vmul.f32 %v185, %v185
  %v276 = vmul.f32 %v188, %v188
  %v277 = vmul.f32 %v193, %v193
  %v278 = vmul.f32 %v196, %v196
  %v279 = vmul.f32 %v201, %v201
  %v280 = vmul.f32 %v204, %v204
  %v281 = vmul.f32 %v209, %v209
  %v282 = vmul.f32 %v212, %v212
  %v283 = vmul.f32 %v217, %v217
  %v284 = vmul.f32 %v220, %v220
  %v285 = vmul.f32 %v225, %v225
  %v286 = vmul.f32 %v228, %v228
  %v287 = vsel %vm231, %v271, 0.0
  %v288 = vsel %vm231, %v272, 0.0
  %v289 = vadd.f32 %v287, %v288
  %v290 = vsel %vm231, %v273, 0.0
  %v291 = vadd.f32 %v289, %v290
  %v292 = vsel %vm231, %v274, 0.0
  %v293 = vadd.f32 %v291, %v292
  %v294 = vsel %vm231, %v275, 0.0
  %v295 = vadd.f32 %v293, %v294
  %v296 = vsel %vm231, %v276, 0.0
  %v297 = vadd.f32 %v295, %v296
  %v298 = vsel %vm231, %v277, 0.0
  %v299 = vadd.f32 %v297, %v298
  %v300 = vsel %vm231, %v278, 0.0
  %v301 = vadd.f32 %v299, %v300
  %v302 = vsel %vm231, %v279, 0.0
  %v303 = vadd.f32 %v301, %v302
  %v304 = vsel %vm231, %v280, 0.0
  %v305 = vadd.f32 %v303, %v304
  %v306 = vsel %vm231, %v281, 0.0
  %v307 = vadd.f32 %v305, %v306
  %v308 = vsel %vm231, %v282, 0.0
  %v309 = vadd.f32 %v307, %v308
  %v310 = vsel %vm231, %v283, 0.0
  %v311 = vadd.f32 %v309, %v310
  %v312 = vsel %vm231, %v284, 0.0
  %v313 = vadd.f32 %v311, %v312
  %v314 = vsel %vm231, %v285, 0.0
  %v315 = vadd.f32 %v313, %v314
  %v316 = vsel %vm231, %v286, 0.0
  %v317 = vadd.f32 %v315, %v316
  %v318 = vrot.slane %v317, 4
  %v319 = vadd.f32 %v317, %v318
  %v320 = vrot.slane %v319, 2
  %v321 = vadd.f32 %v319, %v320
  %v322 = vrot.slane %v321, 1
  %v323 = vadd.f32 %v321, %v322
  %v324 = vmul.f32 %v323, %v269
  %v325 = vmul.f32 %v270, %v270
  %v326 = vsub.f32 %v324, %v325
  %v327 = vmax.f32 %v326, 0.0
  %v328 = vld [vmem:[%s12] sm:$0x1]
  %v329 = vadd.f32 %v327, 1e-05
  %v330 = vrsqrt.pop %v329
  %v331 = vmul.f32 %v328, %v330
  %v332 = vld [vmem:[%s13] sm:$0x1]
  %v333 = vmul.f32 %v270, %v331
  %v334 = vsub.f32 %v332, %v333
  %v336 = vlaneseq
  %v337 = vshrl.u32 %v336, 7
  %v338 = vsub.s32 0, %v337
  %v339 = vrot.slane %v331, %v338
  %v341 = vmul.f32 %v169, %v339
  %v342 = vmul.f32 %v172, %v339
  %v343 = vmul.f32 %v177, %v339
  %v344 = vmul.f32 %v180, %v339
  %v345 = vmul.f32 %v185, %v339
  %v346 = vmul.f32 %v188, %v339
  %v347 = vmul.f32 %v193, %v339
  %v348 = vmul.f32 %v196, %v339
  %v349 = vmul.f32 %v201, %v339
  %v350 = vmul.f32 %v204, %v339
  %v351 = vmul.f32 %v209, %v339
  %v352 = vmul.f32 %v212, %v339
  %v353 = vmul.f32 %v217, %v339
  %v354 = vmul.f32 %v220, %v339
  %v355 = vmul.f32 %v225, %v339
  %v356 = vmul.f32 %v228, %v339
  %v358 = vlaneseq
  %v359 = vshrl.u32 %v358, 7
  %v360 = vsub.s32 0, %v359
  %v361 = vrot.slane %v334, %v360
  %v363 = vadd.f32 %v341, %v361
  %v364 = vadd.f32 %v342, %v361
  %v365 = vadd.f32 %v343, %v361
  %v366 = vadd.f32 %v344, %v361
  %v367 = vadd.f32 %v345, %v361
  %v368 = vadd.f32 %v346, %v361
  %v369 = vadd.f32 %v347, %v361
  %v370 = vadd.f32 %v348, %v361
  %v371 = vadd.f32 %v349, %v361
  %v372 = vadd.f32 %v350, %v361
  %v373 = vadd.f32 %v351, %v361
  %v374 = vadd.f32 %v352, %v361
  %v375 = vadd.f32 %v353, %v361
  %v376 = vadd.f32 %v354, %v361
  %v377 = vadd.f32 %v355, %v361
  %v378 = vadd.f32 %v356, %v361
  %v379 = vld [vmem:[%s1] sm:$0x3]
  %v381 = vsel %vm130, %v379, 0
  %383 = vmatprep.subr.bf16.mxu0 0
  %384 = vmatpush1.bf16.msra.mxu0 %v381
  %385 = vmatprep.subr.bf16.mxu0 0
  %386 = vmatpush1.bf16.msra.mxu0 0
  %387 = vmatprep.subr.bf16.mxu0 0
  %388 = vmatpush1.bf16.msra.mxu0 0
  %389 = vmatprep.subr.bf16.mxu0 0
  %390 = vmatpush1.bf16.msra.mxu0 0
  %391 = vmatprep.subr.bf16.mxu0 0
  %392 = vmatpush1.bf16.msra.mxu0 0
  %393 = vmatprep.subr.bf16.mxu0 0
  %394 = vmatpush1.bf16.msra.mxu0 0
  %395 = vmatprep.subr.bf16.mxu0 0
  %396 = vmatpush1.bf16.msra.mxu0 0
  %397 = vmatprep.subr.bf16.mxu0 0
  %398 = vmatpush1.bf16.msra.mxu0 0
  %399 = vmatprep.subr.bf16.mxu0 0
  %400 = vmatpush1.bf16.msra.mxu0 0
  %401 = vmatprep.subr.bf16.mxu0 0
  %402 = vmatpush1.bf16.msra.mxu0 0
  %403 = vmatprep.subr.bf16.mxu0 0
  %404 = vmatpush1.bf16.msra.mxu0 0
  %405 = vmatprep.subr.bf16.mxu0 0
  %406 = vmatpush1.bf16.msra.mxu0 0
  %407 = vmatprep.subr.bf16.mxu0 0
  %408 = vmatpush1.bf16.msra.mxu0 0
  %409 = vmatprep.subr.bf16.mxu0 0
  %410 = vmatpush1.bf16.msra.mxu0 0
  %411 = vmatprep.subr.bf16.mxu0 0
  %412 = vmatpush1.bf16.msra.mxu0 0
  %413 = vmatprep.subr.bf16.mxu0 0
  %414 = vmatpush1.bf16.msra.mxu0 0
  %415 = vmatprep.mubr.bf16.mxu0 0
  %416 = vmatmul.mubr.bf16.gmra.mrb[0].mxu0 %v107
  %v417 = vpop.f32.mrb[0].mxu0
  %v418 = vadd.f32 0.0, %v417
  %v419 = vpop.f32.mrb[0].mxu0
  %v420 = vpop.f32.mrb[0].mxu0
  %v421 = vadd.f32 0.0, %v420
  %v422 = vpop.f32.mrb[0].mxu0
  %423 = vmatprep.mubr.bf16.mxu0 0
  %424 = vmatmul.mubr.bf16.gmra.mrb[0].mxu0 %v110
  %v425 = vpop.f32.mrb[0].mxu0
  %v426 = vadd.f32 0.0, %v425
  %v427 = vpop.f32.mrb[0].mxu0
  %v428 = vpop.f32.mrb[0].mxu0
  %v429 = vadd.f32 0.0, %v428
  %v430 = vpop.f32.mrb[0].mxu0
  %431 = vmatprep.mubr.bf16.mxu0 0
  %432 = vmatmul.mubr.bf16.gmra.mrb[0].mxu0 %v113
  %v433 = vpop.f32.mrb[0].mxu0
  %v434 = vadd.f32 0.0, %v433
  %v435 = vpop.f32.mrb[0].mxu0
  %v436 = vpop.f32.mrb[0].mxu0
  %v437 = vadd.f32 0.0, %v436
  %v438 = vpop.f32.mrb[0].mxu0
  %439 = vmatprep.mubr.bf16.mxu0 0
  %440 = vmatmul.mubr.bf16.gmra.mrb[0].mxu0 %v116
  %v441 = vpop.f32.mrb[0].mxu0
  %v442 = vadd.f32 0.0, %v441
  %v443 = vpop.f32.mrb[0].mxu0
  %v444 = vpop.f32.mrb[0].mxu0
  %v445 = vadd.f32 0.0, %v444
  %v446 = vpop.f32.mrb[0].mxu0
  %447 = vmatprep.mubr.bf16.mxu0 0
  %448 = vmatmul.mubr.bf16.gmra.mrb[0].mxu0 %v119
  %v449 = vpop.f32.mrb[0].mxu0
  %v450 = vadd.f32 0.0, %v449
  %v451 = vpop.f32.mrb[0].mxu0
  %v452 = vpop.f32.mrb[0].mxu0
  %v453 = vadd.f32 0.0, %v452
  %v454 = vpop.f32.mrb[0].mxu0
  %455 = vmatprep.mubr.bf16.mxu0 0
  %456 = vmatmul.mubr.bf16.gmra.mrb[0].mxu0 %v122
  %v457 = vpop.f32.mrb[0].mxu0
  %v458 = vadd.f32 0.0, %v457
  %v459 = vpop.f32.mrb[0].mxu0
  %v460 = vpop.f32.mrb[0].mxu0
  %v461 = vadd.f32 0.0, %v460
  %v462 = vpop.f32.mrb[0].mxu0
  %463 = vmatprep.mubr.bf16.mxu0 0
  %464 = vmatmul.mubr.bf16.gmra.mrb[0].mxu0 %v125
  %v465 = vpop.f32.mrb[0].mxu0
  %v466 = vadd.f32 0.0, %v465
  %v467 = vpop.f32.mrb[0].mxu0
  %v468 = vpop.f32.mrb[0].mxu0
  %v469 = vadd.f32 0.0, %v468
  %v470 = vpop.f32.mrb[0].mxu0
  %471 = vmatprep.mubr.bf16.mxu0 0
  %472 = vmatmul.mubr.bf16.gmra.mrb[0].mxu0 %v128
  %v473 = vpop.f32.mrb[0].mxu0
  %v474 = vadd.f32 0.0, %v473
  %v475 = vpop.f32.mrb[0].mxu0
  %v476 = vpop.f32.mrb[0].mxu0
  %v477 = vadd.f32 0.0, %v476
  %v478 = vpop.f32.mrb[0].mxu0
  %479 = vdwg.mxu0
  %v480 = vsel %vm105, %v418, 0.0
  %v481 = vsel %vm105, %v421, 0.0
  %v482 = vadd.f32 %v480, %v481
  %v483 = vsel %vm105, %v426, 0.0
  %v484 = vadd.f32 %v482, %v483
  %v485 = vsel %vm105, %v429, 0.0
  %v486 = vadd.f32 %v484, %v485
  %v487 = vsel %vm105, %v434, 0.0
  %v488 = vadd.f32 %v486, %v487
  %v489 = vsel %vm105, %v437, 0.0
  %v490 = vadd.f32 %v488, %v489
  %v491 = vsel %vm105, %v442, 0.0
  %v492 = vadd.f32 %v490, %v491
  %v493 = vsel %vm105, %v445, 0.0
  %v494 = vadd.f32 %v492, %v493
  %v495 = vsel %vm105, %v450, 0.0
  %v496 = vadd.f32 %v494, %v495
  %v497 = vsel %vm105, %v453, 0.0
  %v498 = vadd.f32 %v496, %v497
  %v499 = vsel %vm105, %v458, 0.0
  %v500 = vadd.f32 %v498, %v499
  %v501 = vsel %vm105, %v461, 0.0
  %v502 = vadd.f32 %v500, %v501
  %v503 = vsel %vm105, %v466, 0.0
  %v504 = vadd.f32 %v502, %v503
  %v505 = vsel %vm105, %v469, 0.0
  %v506 = vadd.f32 %v504, %v505
  %v507 = vsel %vm105, %v474, 0.0
  %v508 = vadd.f32 %v506, %v507
  %v509 = vsel %vm105, %v477, 0.0
  %v510 = vadd.f32 %v508, %v509
  %v511 = vrot.slane %v510, 4
  %v512 = vadd.f32 %v510, %v511
  %v513 = vrot.slane %v512, 2
  %v514 = vadd.f32 %v512, %v513
  %v515 = vrot.slane %v514, 1
  %v516 = vadd.f32 %v514, %v515
  %v517 = vmul.f32 %v516, %v269
  %v518 = vmul.f32 %v418, %v418
  %v519 = vmul.f32 %v421, %v421
  %v520 = vmul.f32 %v426, %v426
  %v521 = vmul.f32 %v429, %v429
  %v522 = vmul.f32 %v434, %v434
  %v523 = vmul.f32 %v437, %v437
  %v524 = vmul.f32 %v442, %v442
  %v525 = vmul.f32 %v445, %v445
  %v526 = vmul.f32 %v450, %v450
  %v527 = vmul.f32 %v453, %v453
  %v528 = vmul.f32 %v458, %v458
  %v529 = vmul.f32 %v461, %v461
  %v530 = vmul.f32 %v466, %v466
  %v531 = vmul.f32 %v469, %v469
  %v532 = vmul.f32 %v474, %v474
  %v533 = vmul.f32 %v477, %v477
  %v534 = vsel %vm105, %v518, 0.0
  %v535 = vsel %vm105, %v519, 0.0
  %v536 = vadd.f32 %v534, %v535
  %v537 = vsel %vm105, %v520, 0.0
  %v538 = vadd.f32 %v536, %v537
  %v539 = vsel %vm105, %v521, 0.0
  %v540 = vadd.f32 %v538, %v539
  %v541 = vsel %vm105, %v522, 0.0
  %v542 = vadd.f32 %v540, %v541
  %v543 = vsel %vm105, %v523, 0.0
  %v544 = vadd.f32 %v542, %v543
  %v545 = vsel %vm105, %v524, 0.0
  %v546 = vadd.f32 %v544, %v545
  %v547 = vsel %vm105, %v525, 0.0
  %v548 = vadd.f32 %v546, %v547
  %v549 = vsel %vm105, %v526, 0.0
  %v550 = vadd.f32 %v548, %v549
  %v551 = vsel %vm105, %v527, 0.0
  %v552 = vadd.f32 %v550, %v551
  %v553 = vsel %vm105, %v528, 0.0
  %v554 = vadd.f32 %v552, %v553
  %v555 = vsel %vm105, %v529, 0.0
  %v556 = vadd.f32 %v554, %v555
  %v557 = vsel %vm105, %v530, 0.0
  %v558 = vadd.f32 %v556, %v557
  %v559 = vsel %vm105, %v531, 0.0
  %v560 = vadd.f32 %v558, %v559
  %v561 = vsel %vm105, %v532, 0.0
  %v562 = vadd.f32 %v560, %v561
  %v563 = vsel %vm105, %v533, 0.0
  %v564 = vadd.f32 %v562, %v563
  %v565 = vrot.slane %v564, 4
  %v566 = vadd.f32 %v564, %v565
  %v567 = vrot.slane %v566, 2
  %v568 = vadd.f32 %v566, %v567
  %v569 = vrot.slane %v568, 1
  %v570 = vadd.f32 %v568, %v569
  %v571 = vmul.f32 %v570, %v269
  %v572 = vmul.f32 %v517, %v517
  %v573 = vsub.f32 %v571, %v572
  %v574 = vmax.f32 %v573, 0.0
  %v575 = vld [vmem:[%s6] sm:$0x1]
  %v576 = vadd.f32 %v574, 1e-05
  %v577 = vrsqrt.pop %v576
  %v578 = vmul.f32 %v575, %v577
  %v579 = vld [vmem:[%s7] sm:$0x1]
  %v580 = vmul.f32 %v517, %v578
  %v581 = vsub.f32 %v579, %v580
  %v583 = vlaneseq
  %v584 = vshrl.u32 %v583, 7
  %v585 = vsub.s32 0, %v584
  %v586 = vrot.slane %v578, %v585
  %v588 = vmul.f32 %v418, %v586
  %v589 = vmul.f32 %v421, %v586
  %v590 = vmul.f32 %v426, %v586
  %v591 = vmul.f32 %v429, %v586
  %v592 = vmul.f32 %v434, %v586
  %v593 = vmul.f32 %v437, %v586
  %v594 = vmul.f32 %v442, %v586
  %v595 = vmul.f32 %v445, %v586
  %v596 = vmul.f32 %v450, %v586
  %v597 = vmul.f32 %v453, %v586
  %v598 = vmul.f32 %v458, %v586
  %v599 = vmul.f32 %v461, %v586
  %v600 = vmul.f32 %v466, %v586
  %v601 = vmul.f32 %v469, %v586
  %v602 = vmul.f32 %v474, %v586
  %v603 = vmul.f32 %v477, %v586
  %v605 = vlaneseq
  %v606 = vshrl.u32 %v605, 7
  %v607 = vsub.s32 0, %v606
  %v608 = vrot.slane %v581, %v607
  %v610 = vadd.f32 %v588, %v608
  %v611 = vadd.f32 %v589, %v608
  %v612 = vadd.f32 %v590, %v608
  %v613 = vadd.f32 %v591, %v608
  %v614 = vadd.f32 %v592, %v608
  %v615 = vadd.f32 %v593, %v608
  %v616 = vadd.f32 %v594, %v608
  %v617 = vadd.f32 %v595, %v608
  %v618 = vadd.f32 %v596, %v608
  %v619 = vadd.f32 %v597, %v608
  %v620 = vadd.f32 %v598, %v608
  %v621 = vadd.f32 %v599, %v608
  %v622 = vadd.f32 %v600, %v608
  %v623 = vadd.f32 %v601, %v608
  %v624 = vadd.f32 %v602, %v608
  %v625 = vadd.f32 %v603, %v608
  %v626 = vmax.f32 %v610, 0.0
  %v627 = vmax.f32 %v611, 0.0
  %v628 = vmax.f32 %v612, 0.0
  %v629 = vmax.f32 %v613, 0.0
  %v630 = vmax.f32 %v614, 0.0
  %v631 = vmax.f32 %v615, 0.0
  %v632 = vmax.f32 %v616, 0.0
  %v633 = vmax.f32 %v617, 0.0
  %v634 = vmax.f32 %v618, 0.0
  %v635 = vmax.f32 %v619, 0.0
  %v636 = vmax.f32 %v620, 0.0
  %v637 = vmax.f32 %v621, 0.0
  %v638 = vmax.f32 %v622, 0.0
  %v639 = vmax.f32 %v623, 0.0
  %v640 = vmax.f32 %v624, 0.0
  %v641 = vmax.f32 %v625, 0.0
  %v642 = vrot.slane %v626, 7
  %v643 = vrot.slane %v627, 7
  %v644 = vrot.slane %v628, 7
  %v645 = vrot.slane %v629, 7
  %v646 = vrot.slane %v630, 7
  %v647 = vrot.slane %v631, 7
  %v648 = vrot.slane %v632, 7
  %v649 = vrot.slane %v633, 7
  %v650 = vrot.slane %v634, 7
  %v651 = vrot.slane %v635, 7
  %v652 = vrot.slane %v636, 7
  %v653 = vrot.slane %v637, 7
  %v654 = vrot.slane %v638, 7
  %v655 = vrot.slane %v639, 7
  %v656 = vrot.slane %v640, 7
  %v657 = vrot.slane %v641, 7
  %v658 = vlaneseq
  %v659 = vshrl.u32 %v658, 7
  %vm660 = vcmp.lt.s32.totalorder %v659, 1
  %v661 = vsel %vm660, %v656, %v657
  %v662 = vsel %vm660, %v655, %v656
  %v663 = vsel %vm660, %v654, %v655
  %v664 = vsel %vm660, %v653, %v654
  %v665 = vsel %vm660, %v652, %v653
  %v666 = vsel %vm660, %v651, %v652
  %v667 = vsel %vm660, %v650, %v651
  %v668 = vsel %vm660, %v649, %v650
  %v669 = vsel %vm660, %v648, %v649
  %v670 = vsel %vm660, %v647, %v648
  %v671 = vsel %vm660, %v646, %v647
  %v672 = vsel %vm660, %v645, %v646
  %v673 = vsel %vm660, %v644, %v645
  %v674 = vsel %vm660, %v643, %v644
  %v675 = vsel %vm660, %v642, %v643
  %v676 = vsel %vm660, %v657, %v642
  %v677 = vld [vmem:[%s5] sm:$0xff]
  %v678 = vld [vmem:[%s5 + $0x8] sm:$0xff]
  %v679 = vld [vmem:[%s5 + $0x10] sm:$0xff]
  %v680 = vld [vmem:[%s5 + $0x18] sm:$0xff]
  %v681 = vld [vmem:[%s5 + $0x20] sm:$0xff]
  %v682 = vld [vmem:[%s5 + $0x28] sm:$0xff]
  %v683 = vld [vmem:[%s5 + $0x30] sm:$0xff]
  %v684 = vld [vmem:[%s5 + $0x38] sm:$0xff]
  %v685 = vld [vmem:[%s5 + $0x40] sm:$0xff]
  %v686 = vld [vmem:[%s5 + $0x48] sm:$0xff]
  %v687 = vld [vmem:[%s5 + $0x50] sm:$0xff]
  %v688 = vld [vmem:[%s5 + $0x58] sm:$0xff]
  %v689 = vld [vmem:[%s5 + $0x60] sm:$0xff]
  %v690 = vld [vmem:[%s5 + $0x68] sm:$0xff]
  %v691 = vld [vmem:[%s5 + $0x70] sm:$0xff]
  %v692 = vld [vmem:[%s5 + $0x78] sm:$0xff]
  %694 = vset.pattern.permute.xlu0 0
  %695 = vperm.xlu0 %694, %v677
  %v696 = vpop.permute.xlu0 %695
  %699 = vset.pattern.permute.xlu0 0
  %700 = vperm.xlu0 %699, %v678
  %v701 = vpop.permute.xlu0 %700
  %704 = vset.pattern.permute.xlu0 0
  %705 = vperm.xlu0 %704, %v679
  %v706 = vpop.permute.xlu0 %705
  %709 = vset.pattern.permute.xlu0 0
  %710 = vperm.xlu0 %709, %v680
  %v711 = vpop.permute.xlu0 %710
  %714 = vset.pattern.permute.xlu0 0
  %715 = vperm.xlu0 %714, %v681
  %v716 = vpop.permute.xlu0 %715
  %719 = vset.pattern.permute.xlu0 0
  %720 = vperm.xlu0 %719, %v682
  %v721 = vpop.permute.xlu0 %720
  %724 = vset.pattern.permute.xlu0 0
  %725 = vperm.xlu0 %724, %v683
  %v726 = vpop.permute.xlu0 %725
  %729 = vset.pattern.permute.xlu0 0
  %730 = vperm.xlu0 %729, %v684
  %v731 = vpop.permute.xlu0 %730
  %734 = vset.pattern.permute.xlu0 0
  %735 = vperm.xlu0 %734, %v685
  %v736 = vpop.permute.xlu0 %735
  %739 = vset.pattern.permute.xlu0 0
  %740 = vperm.xlu0 %739, %v686
  %v741 = vpop.permute.xlu0 %740
  %744 = vset.pattern.permute.xlu0 0
  %745 = vperm.xlu0 %744, %v687
  %v746 = vpop.permute.xlu0 %745
  %749 = vset.pattern.permute.xlu0 0
  %750 = vperm.xlu0 %749, %v688
  %v751 = vpop.permute.xlu0 %750
  %754 = vset.pattern.permute.xlu0 0
  %755 = vperm.xlu0 %754, %v689
  %v756 = vpop.permute.xlu0 %755
  %759 = vset.pattern.permute.xlu0 0
  %760 = vperm.xlu0 %759, %v690
  %v761 = vpop.permute.xlu0 %760
  %764 = vset.pattern.permute.xlu0 0
  %765 = vperm.xlu0 %764, %v691
  %v766 = vpop.permute.xlu0 %765
  %769 = vset.pattern.permute.xlu0 0
  %770 = vperm.xlu0 %769, %v692
  %v771 = vpop.permute.xlu0 %770
  %v773 = vmul.f32 %v661, %v696
  %v774 = vmul.f32 %v676, %v701
  %v775 = vmul.f32 %v675, %v706
  %v776 = vmul.f32 %v674, %v711
  %v777 = vmul.f32 %v673, %v716
  %v778 = vmul.f32 %v672, %v721
  %v779 = vmul.f32 %v671, %v726
  %v780 = vmul.f32 %v670, %v731
  %v781 = vmul.f32 %v669, %v736
  %v782 = vmul.f32 %v668, %v741
  %v783 = vmul.f32 %v667, %v746
  %v784 = vmul.f32 %v666, %v751
  %v785 = vmul.f32 %v665, %v756
  %v786 = vmul.f32 %v664, %v761
  %v787 = vmul.f32 %v663, %v766
  %v788 = vmul.f32 %v662, %v771
  %v789 = vpack.c.bf16 %v774, %v773
  %v790 = vpack.c.bf16 %v776, %v775
  %v791 = vpack.c.bf16 %v778, %v777
  %v792 = vpack.c.bf16 %v780, %v779
  %v793 = vpack.c.bf16 %v782, %v781
  %v794 = vpack.c.bf16 %v784, %v783
  %v795 = vpack.c.bf16 %v786, %v785
  %v796 = vpack.c.bf16 %v788, %v787
  %v797 = vld [vmem:[%s2] sm:$0x3]
  %s798 = scalar_lea.vmem %s5, 128
  %v799 = vld [vmem:[%s798] sm:$0xff]
  %v800 = vld [vmem:[%s798 + $0x8] sm:$0xff]
  %v801 = vld [vmem:[%s798 + $0x10] sm:$0xff]
  %v802 = vld [vmem:[%s798 + $0x18] sm:$0xff]
  %v803 = vld [vmem:[%s798 + $0x20] sm:$0xff]
  %v804 = vld [vmem:[%s798 + $0x28] sm:$0xff]
  %v805 = vld [vmem:[%s798 + $0x30] sm:$0xff]
  %v806 = vld [vmem:[%s798 + $0x38] sm:$0xff]
  %v807 = vld [vmem:[%s798 + $0x40] sm:$0xff]
  %v808 = vld [vmem:[%s798 + $0x48] sm:$0xff]
  %v809 = vld [vmem:[%s798 + $0x50] sm:$0xff]
  %v810 = vld [vmem:[%s798 + $0x58] sm:$0xff]
  %v811 = vld [vmem:[%s798 + $0x60] sm:$0xff]
  %v812 = vld [vmem:[%s798 + $0x68] sm:$0xff]
  %v813 = vld [vmem:[%s798 + $0x70] sm:$0xff]
  %v814 = vld [vmem:[%s798 + $0x78] sm:$0xff]
  %816 = vset.pattern.permute.xlu0 0
  %817 = vperm.xlu0 %816, %v799
  %v818 = vpop.permute.xlu0 %817
  %821 = vset.pattern.permute.xlu0 0
  %822 = vperm.xlu0 %821, %v800
  %v823 = vpop.permute.xlu0 %822
  %826 = vset.pattern.permute.xlu0 0
  %827 = vperm.xlu0 %826, %v801
  %v828 = vpop.permute.xlu0 %827
  %831 = vset.pattern.permute.xlu0 0
  %832 = vperm.xlu0 %831, %v802
  %v833 = vpop.permute.xlu0 %832
  %836 = vset.pattern.permute.xlu0 0
  %837 = vperm.xlu0 %836, %v803
  %v838 = vpop.permute.xlu0 %837
  %841 = vset.pattern.permute.xlu0 0
  %842 = vperm.xlu0 %841, %v804
  %v843 = vpop.permute.xlu0 %842
  %846 = vset.pattern.permute.xlu0 0
  %847 = vperm.xlu0 %846, %v805
  %v848 = vpop.permute.xlu0 %847
  %851 = vset.pattern.permute.xlu0 0
  %852 = vperm.xlu0 %851, %v806
  %v853 = vpop.permute.xlu0 %852
  %856 = vset.pattern.permute.xlu0 0
  %857 = vperm.xlu0 %856, %v807
  %v858 = vpop.permute.xlu0 %857
  %861 = vset.pattern.permute.xlu0 0
  %862 = vperm.xlu0 %861, %v808
  %v863 = vpop.permute.xlu0 %862
  %866 = vset.pattern.permute.xlu0 0
  %867 = vperm.xlu0 %866, %v809
  %v868 = vpop.permute.xlu0 %867
  %871 = vset.pattern.permute.xlu0 0
  %872 = vperm.xlu0 %871, %v810
  %v873 = vpop.permute.xlu0 %872
  %876 = vset.pattern.permute.xlu0 0
  %877 = vperm.xlu0 %876, %v811
  %v878 = vpop.permute.xlu0 %877
  %881 = vset.pattern.permute.xlu0 0
  %882 = vperm.xlu0 %881, %v812
  %v883 = vpop.permute.xlu0 %882
  %886 = vset.pattern.permute.xlu0 0
  %887 = vperm.xlu0 %886, %v813
  %v888 = vpop.permute.xlu0 %887
  %891 = vset.pattern.permute.xlu0 0
  %892 = vperm.xlu0 %891, %v814
  %v893 = vpop.permute.xlu0 %892
  %v895 = vmul.f32 %v641, %v818
  %v896 = vmul.f32 %v626, %v823
  %v897 = vmul.f32 %v627, %v828
  %v898 = vmul.f32 %v628, %v833
  %v899 = vmul.f32 %v629, %v838
  %v900 = vmul.f32 %v630, %v843
  %v901 = vmul.f32 %v631, %v848
  %v902 = vmul.f32 %v632, %v853
  %v903 = vmul.f32 %v633, %v858
  %v904 = vmul.f32 %v634, %v863
  %v905 = vmul.f32 %v635, %v868
  %v906 = vmul.f32 %v636, %v873
  %v907 = vmul.f32 %v637, %v878
  %v908 = vmul.f32 %v638, %v883
  %v909 = vmul.f32 %v639, %v888
  %v910 = vmul.f32 %v640, %v893
  %v911 = vpack.c.bf16 %v896, %v895
  %v912 = vpack.c.bf16 %v898, %v897
  %v913 = vpack.c.bf16 %v900, %v899
  %v914 = vpack.c.bf16 %v902, %v901
  %v915 = vpack.c.bf16 %v904, %v903
  %v916 = vpack.c.bf16 %v906, %v905
  %v917 = vpack.c.bf16 %v908, %v907
  %v918 = vpack.c.bf16 %v910, %v909
  %s919 = scalar_lea.vmem %s2, 2
  %v920 = vld [vmem:[%s919] sm:$0x3]
  %v922 = vsel %vm105, %v911, 0
  %v925 = vsel %vm105, %v912, 0
  %v928 = vsel %vm105, %v913, 0
  %v931 = vsel %vm105, %v914, 0
  %v934 = vsel %vm105, %v915, 0
  %v937 = vsel %vm105, %v916, 0
  %v940 = vsel %vm105, %v917, 0
  %v943 = vsel %vm105, %v918, 0
  %v946 = vsel %vm130, %v920, 0
  %948 = vmatprep.subr.bf16.mxu0 0
  %949 = vmatpush1.bf16.msra.mxu0 %v946
  %950 = vmatprep.subr.bf16.mxu0 0
  %951 = vmatpush1.bf16.msra.mxu0 0
  %952 = vmatprep.subr.bf16.mxu0 0
  %953 = vmatpush1.bf16.msra.mxu0 0
  %954 = vmatprep.subr.bf16.mxu0 0
  %955 = vmatpush1.bf16.msra.mxu0 0
  %956 = vmatprep.subr.bf16.mxu0 0
  %957 = vmatpush1.bf16.msra.mxu0 0
  %958 = vmatprep.subr.bf16.mxu0 0
  %959 = vmatpush1.bf16.msra.mxu0 0
  %960 = vmatprep.subr.bf16.mxu0 0
  %961 = vmatpush1.bf16.msra.mxu0 0
  %962 = vmatprep.subr.bf16.mxu0 0
  %963 = vmatpush1.bf16.msra.mxu0 0
  %964 = vmatprep.subr.bf16.mxu0 0
  %965 = vmatpush1.bf16.msra.mxu0 0
  %966 = vmatprep.subr.bf16.mxu0 0
  %967 = vmatpush1.bf16.msra.mxu0 0
  %968 = vmatprep.subr.bf16.mxu0 0
  %969 = vmatpush1.bf16.msra.mxu0 0
  %970 = vmatprep.subr.bf16.mxu0 0
  %971 = vmatpush1.bf16.msra.mxu0 0
  %972 = vmatprep.subr.bf16.mxu0 0
  %973 = vmatpush1.bf16.msra.mxu0 0
  %974 = vmatprep.subr.bf16.mxu0 0
  %975 = vmatpush1.bf16.msra.mxu0 0
  %976 = vmatprep.subr.bf16.mxu0 0
  %977 = vmatpush1.bf16.msra.mxu0 0
  %978 = vmatprep.subr.bf16.mxu0 0
  %979 = vmatpush1.bf16.msra.mxu0 0
  %980 = vmatprep.mubr.bf16.mxu0 0
  %981 = vmatmul.mubr.bf16.gmra.mrb[0].mxu0 %v922
  %v982 = vpop.f32.mrb[0].mxu0
  %v983 = vadd.f32 0.0, %v982
  %v984 = vpop.f32.mrb[0].mxu0
  %v985 = vpop.f32.mrb[0].mxu0
  %v986 = vadd.f32 0.0, %v985
  %v987 = vpop.f32.mrb[0].mxu0
  %988 = vmatprep.mubr.bf16.mxu0 0
  %989 = vmatmul.mubr.bf16.gmra.mrb[0].mxu0 %v925
  %v990 = vpop.f32.mrb[0].mxu0
  %v991 = vadd.f32 0.0, %v990
  %v992 = vpop.f32.mrb[0].mxu0
  %v993 = vpop.f32.mrb[0].mxu0
  %v994 = vadd.f32 0.0, %v993
  %v995 = vpop.f32.mrb[0].mxu0
  %996 = vmatprep.mubr.bf16.mxu0 0
  %997 = vmatmul.mubr.bf16.gmra.mrb[0].mxu0 %v928
  %v998 = vpop.f32.mrb[0].mxu0
  %v999 = vadd.f32 0.0, %v998
  %v1000 = vpop.f32.mrb[0].mxu0
  %v1001 = vpop.f32.mrb[0].mxu0
  %v1002 = vadd.f32 0.0, %v1001
  %v1003 = vpop.f32.mrb[0].mxu0
  %1004 = vmatprep.mubr.bf16.mxu0 0
  %1005 = vmatmul.mubr.bf16.gmra.mrb[0].mxu0 %v931
  %v1006 = vpop.f32.mrb[0].mxu0
  %v1007 = vadd.f32 0.0, %v1006
  %v1008 = vpop.f32.mrb[0].mxu0
  %v1009 = vpop.f32.mrb[0].mxu0
  %v1010 = vadd.f32 0.0, %v1009
  %v1011 = vpop.f32.mrb[0].mxu0
  %1012 = vmatprep.mubr.bf16.mxu0 0
  %1013 = vmatmul.mubr.bf16.gmra.mrb[0].mxu0 %v934
  %v1014 = vpop.f32.mrb[0].mxu0
  %v1015 = vadd.f32 0.0, %v1014
  %v1016 = vpop.f32.mrb[0].mxu0
  %v1017 = vpop.f32.mrb[0].mxu0
  %v1018 = vadd.f32 0.0, %v1017
  %v1019 = vpop.f32.mrb[0].mxu0
  %1020 = vmatprep.mubr.bf16.mxu0 0
  %1021 = vmatmul.mubr.bf16.gmra.mrb[0].mxu0 %v937
  %v1022 = vpop.f32.mrb[0].mxu0
  %v1023 = vadd.f32 0.0, %v1022
  %v1024 = vpop.f32.mrb[0].mxu0
  %v1025 = vpop.f32.mrb[0].mxu0
  %v1026 = vadd.f32 0.0, %v1025
  %v1027 = vpop.f32.mrb[0].mxu0
  %1028 = vmatprep.mubr.bf16.mxu0 0
  %1029 = vmatmul.mubr.bf16.gmra.mrb[0].mxu0 %v940
  %v1030 = vpop.f32.mrb[0].mxu0
  %v1031 = vadd.f32 0.0, %v1030
  %v1032 = vpop.f32.mrb[0].mxu0
  %v1033 = vpop.f32.mrb[0].mxu0
  %v1034 = vadd.f32 0.0, %v1033
  %v1035 = vpop.f32.mrb[0].mxu0
  %1036 = vmatprep.mubr.bf16.mxu0 0
  %1037 = vmatmul.mubr.bf16.gmra.mrb[0].mxu0 %v943
  %v1038 = vpop.f32.mrb[0].mxu0
  %v1039 = vadd.f32 0.0, %v1038
  %v1040 = vpop.f32.mrb[0].mxu0
  %v1041 = vpop.f32.mrb[0].mxu0
  %v1042 = vadd.f32 0.0, %v1041
  %v1043 = vpop.f32.mrb[0].mxu0
  %1044 = vdwg.mxu0
  %v1046 = vsel %vm105, %v789, 0
  %v1049 = vsel %vm105, %v790, 0
  %v1052 = vsel %vm105, %v791, 0
  %v1055 = vsel %vm105, %v792, 0
  %v1058 = vsel %vm105, %v793, 0
  %v1061 = vsel %vm105, %v794, 0
  %v1064 = vsel %vm105, %v795, 0
  %v1067 = vsel %vm105, %v796, 0
  %v1070 = vsel %vm130, %v797, 0
  %1072 = vmatprep.subr.bf16.mxu0 0
  %1073 = vmatpush1.bf16.msra.mxu0 %v1070
  %1074 = vmatprep.subr.bf16.mxu0 0
  %1075 = vmatpush1.bf16.msra.mxu0 0
  %1076 = vmatprep.subr.bf16.mxu0 0
  %1077 = vmatpush1.bf16.msra.mxu0 0
  %1078 = vmatprep.subr.bf16.mxu0 0
  %1079 = vmatpush1.bf16.msra.mxu0 0
  %1080 = vmatprep.subr.bf16.mxu0 0
  %1081 = vmatpush1.bf16.msra.mxu0 0
  %1082 = vmatprep.subr.bf16.mxu0 0
  %1083 = vmatpush1.bf16.msra.mxu0 0
  %1084 = vmatprep.subr.bf16.mxu0 0
  %1085 = vmatpush1.bf16.msra.mxu0 0
  %1086 = vmatprep.subr.bf16.mxu0 0
  %1087 = vmatpush1.bf16.msra.mxu0 0
  %1088 = vmatprep.subr.bf16.mxu0 0
  %1089 = vmatpush1.bf16.msra.mxu0 0
  %1090 = vmatprep.subr.bf16.mxu0 0
  %1091 = vmatpush1.bf16.msra.mxu0 0
  %1092 = vmatprep.subr.bf16.mxu0 0
  %1093 = vmatpush1.bf16.msra.mxu0 0
  %1094 = vmatprep.subr.bf16.mxu0 0
  %1095 = vmatpush1.bf16.msra.mxu0 0
  %1096 = vmatprep.subr.bf16.mxu0 0
  %1097 = vmatpush1.bf16.msra.mxu0 0
  %1098 = vmatprep.subr.bf16.mxu0 0
  %1099 = vmatpush1.bf16.msra.mxu0 0
  %1100 = vmatprep.subr.bf16.mxu0 0
  %1101 = vmatpush1.bf16.msra.mxu0 0
  %1102 = vmatprep.subr.bf16.mxu0 0
  %1103 = vmatpush1.bf16.msra.mxu0 0
  %1104 = vmatprep.mubr.bf16.mxu0 0
  %1105 = vmatmul.mubr.bf16.gmra.mrb[0].mxu0 %v1046
  %v1106 = vpop.f32.mrb[0].mxu0
  %v1107 = vadd.f32 %v983, %v1106
  %v1108 = vpop.f32.mrb[0].mxu0
  %v1109 = vpop.f32.mrb[0].mxu0
  %v1110 = vadd.f32 %v986, %v1109
  %v1111 = vpop.f32.mrb[0].mxu0
  %1112 = vmatprep.mubr.bf16.mxu0 0
  %1113 = vmatmul.mubr.bf16.gmra.mrb[0].mxu0 %v1049
  %v1114 = vpop.f32.mrb[0].mxu0
  %v1115 = vadd.f32 %v991, %v1114
  %v1116 = vpop.f32.mrb[0].mxu0
  %v1117 = vpop.f32.mrb[0].mxu0
  %v1118 = vadd.f32 %v994, %v1117
  %v1119 = vpop.f32.mrb[0].mxu0
  %1120 = vmatprep.mubr.bf16.mxu0 0
  %1121 = vmatmul.mubr.bf16.gmra.mrb[0].mxu0 %v1052
  %v1122 = vpop.f32.mrb[0].mxu0
  %v1123 = vadd.f32 %v999, %v1122
  %v1124 = vpop.f32.mrb[0].mxu0
  %v1125 = vpop.f32.mrb[0].mxu0
  %v1126 = vadd.f32 %v1002, %v1125
  %v1127 = vpop.f32.mrb[0].mxu0
  %1128 = vmatprep.mubr.bf16.mxu0 0
  %1129 = vmatmul.mubr.bf16.gmra.mrb[0].mxu0 %v1055
  %v1130 = vpop.f32.mrb[0].mxu0
  %v1131 = vadd.f32 %v1007, %v1130
  %v1132 = vpop.f32.mrb[0].mxu0
  %v1133 = vpop.f32.mrb[0].mxu0
  %v1134 = vadd.f32 %v1010, %v1133
  %v1135 = vpop.f32.mrb[0].mxu0
  %1136 = vmatprep.mubr.bf16.mxu0 0
  %1137 = vmatmul.mubr.bf16.gmra.mrb[0].mxu0 %v1058
  %v1138 = vpop.f32.mrb[0].mxu0
  %v1139 = vadd.f32 %v1015, %v1138
  %v1140 = vpop.f32.mrb[0].mxu0
  %v1141 = vpop.f32.mrb[0].mxu0
  %v1142 = vadd.f32 %v1018, %v1141
  %v1143 = vpop.f32.mrb[0].mxu0
  %1144 = vmatprep.mubr.bf16.mxu0 0
  %1145 = vmatmul.mubr.bf16.gmra.mrb[0].mxu0 %v1061
  %v1146 = vpop.f32.mrb[0].mxu0
  %v1147 = vadd.f32 %v1023, %v1146
  %v1148 = vpop.f32.mrb[0].mxu0
  %v1149 = vpop.f32.mrb[0].mxu0
  %v1150 = vadd.f32 %v1026, %v1149
  %v1151 = vpop.f32.mrb[0].mxu0
  %1152 = vmatprep.mubr.bf16.mxu0 0
  %1153 = vmatmul.mubr.bf16.gmra.mrb[0].mxu0 %v1064
  %v1154 = vpop.f32.mrb[0].mxu0
  %v1155 = vadd.f32 %v1031, %v1154
  %v1156 = vpop.f32.mrb[0].mxu0
  %v1157 = vpop.f32.mrb[0].mxu0
  %v1158 = vadd.f32 %v1034, %v1157
  %v1159 = vpop.f32.mrb[0].mxu0
  %1160 = vmatprep.mubr.bf16.mxu0 0
  %1161 = vmatmul.mubr.bf16.gmra.mrb[0].mxu0 %v1067
  %v1162 = vpop.f32.mrb[0].mxu0
  %v1163 = vadd.f32 %v1039, %v1162
  %v1164 = vpop.f32.mrb[0].mxu0
  %v1165 = vpop.f32.mrb[0].mxu0
  %v1166 = vadd.f32 %v1042, %v1165
  %v1167 = vpop.f32.mrb[0].mxu0
  %1168 = vdwg.mxu0
  %v1169 = vrot.slane %v626, 1
  %v1170 = vrot.slane %v627, 1
  %v1171 = vrot.slane %v628, 1
  %v1172 = vrot.slane %v629, 1
  %v1173 = vrot.slane %v630, 1
  %v1174 = vrot.slane %v631, 1
  %v1175 = vrot.slane %v632, 1
  %v1176 = vrot.slane %v633, 1
  %v1177 = vrot.slane %v634, 1
  %v1178 = vrot.slane %v635, 1
  %v1179 = vrot.slane %v636, 1
  %v1180 = vrot.slane %v637, 1
  %v1181 = vrot.slane %v638, 1
  %v1182 = vrot.slane %v639, 1
  %v1183 = vrot.slane %v640, 1
  %v1184 = vrot.slane %v641, 1
  %vm1185 = vcmp.lt.s32.totalorder %v659, 7
  %v1186 = vsel %vm1185, %v1183, %v1184
  %v1187 = vsel %vm1185, %v1182, %v1183
  %v1188 = vsel %vm1185, %v1181, %v1182
  %v1189 = vsel %vm1185, %v1180, %v1181
  %v1190 = vsel %vm1185, %v1179, %v1180
  %v1191 = vsel %vm1185, %v1178, %v1179
  %v1192 = vsel %vm1185, %v1177, %v1178
  %v1193 = vsel %vm1185, %v1176, %v1177
  %v1194 = vsel %vm1185, %v1175, %v1176
  %v1195 = vsel %vm1185, %v1174, %v1175
  %v1196 = vsel %vm1185, %v1173, %v1174
  %v1197 = vsel %vm1185, %v1172, %v1173
  %v1198 = vsel %vm1185, %v1171, %v1172
  %v1199 = vsel %vm1185, %v1170, %v1171
  %v1200 = vsel %vm1185, %v1169, %v1170
  %v1201 = vsel %vm1185, %v1184, %v1169
  %s1202 = scalar_lea.vmem %s5, 256
  %v1203 = vld [vmem:[%s1202] sm:$0xff]
  %v1204 = vld [vmem:[%s1202 + $0x8] sm:$0xff]
  %v1205 = vld [vmem:[%s1202 + $0x10] sm:$0xff]
  %v1206 = vld [vmem:[%s1202 + $0x18] sm:$0xff]
  %v1207 = vld [vmem:[%s1202 + $0x20] sm:$0xff]
  %v1208 = vld [vmem:[%s1202 + $0x28] sm:$0xff]
  %v1209 = vld [vmem:[%s1202 + $0x30] sm:$0xff]
  %v1210 = vld [vmem:[%s1202 + $0x38] sm:$0xff]
  %v1211 = vld [vmem:[%s1202 + $0x40] sm:$0xff]
  %v1212 = vld [vmem:[%s1202 + $0x48] sm:$0xff]
  %v1213 = vld [vmem:[%s1202 + $0x50] sm:$0xff]
  %v1214 = vld [vmem:[%s1202 + $0x58] sm:$0xff]
  %v1215 = vld [vmem:[%s1202 + $0x60] sm:$0xff]
  %v1216 = vld [vmem:[%s1202 + $0x68] sm:$0xff]
  %v1217 = vld [vmem:[%s1202 + $0x70] sm:$0xff]
  %v1218 = vld [vmem:[%s1202 + $0x78] sm:$0xff]
  %1220 = vset.pattern.permute.xlu0 0
  %1221 = vperm.xlu0 %1220, %v1203
  %v1222 = vpop.permute.xlu0 %1221
  %1225 = vset.pattern.permute.xlu0 0
  %1226 = vperm.xlu0 %1225, %v1204
  %v1227 = vpop.permute.xlu0 %1226
  %1230 = vset.pattern.permute.xlu0 0
  %1231 = vperm.xlu0 %1230, %v1205
  %v1232 = vpop.permute.xlu0 %1231
  %1235 = vset.pattern.permute.xlu0 0
  %1236 = vperm.xlu0 %1235, %v1206
  %v1237 = vpop.permute.xlu0 %1236
  %1240 = vset.pattern.permute.xlu0 0
  %1241 = vperm.xlu0 %1240, %v1207
  %v1242 = vpop.permute.xlu0 %1241
  %1245 = vset.pattern.permute.xlu0 0
  %1246 = vperm.xlu0 %1245, %v1208
  %v1247 = vpop.permute.xlu0 %1246
  %1250 = vset.pattern.permute.xlu0 0
  %1251 = vperm.xlu0 %1250, %v1209
  %v1252 = vpop.permute.xlu0 %1251
  %1255 = vset.pattern.permute.xlu0 0
  %1256 = vperm.xlu0 %1255, %v1210
  %v1257 = vpop.permute.xlu0 %1256
  %1260 = vset.pattern.permute.xlu0 0
  %1261 = vperm.xlu0 %1260, %v1211
  %v1262 = vpop.permute.xlu0 %1261
  %1265 = vset.pattern.permute.xlu0 0
  %1266 = vperm.xlu0 %1265, %v1212
  %v1267 = vpop.permute.xlu0 %1266
  %1270 = vset.pattern.permute.xlu0 0
  %1271 = vperm.xlu0 %1270, %v1213
  %v1272 = vpop.permute.xlu0 %1271
  %1275 = vset.pattern.permute.xlu0 0
  %1276 = vperm.xlu0 %1275, %v1214
  %v1277 = vpop.permute.xlu0 %1276
  %1280 = vset.pattern.permute.xlu0 0
  %1281 = vperm.xlu0 %1280, %v1215
  %v1282 = vpop.permute.xlu0 %1281
  %1285 = vset.pattern.permute.xlu0 0
  %1286 = vperm.xlu0 %1285, %v1216
  %v1287 = vpop.permute.xlu0 %1286
  %1290 = vset.pattern.permute.xlu0 0
  %1291 = vperm.xlu0 %1290, %v1217
  %v1292 = vpop.permute.xlu0 %1291
  %1295 = vset.pattern.permute.xlu0 0
  %1296 = vperm.xlu0 %1295, %v1218
  %v1297 = vpop.permute.xlu0 %1296
  %v1299 = vmul.f32 %v1201, %v1222
  %v1300 = vmul.f32 %v1200, %v1227
  %v1301 = vmul.f32 %v1199, %v1232
  %v1302 = vmul.f32 %v1198, %v1237
  %v1303 = vmul.f32 %v1197, %v1242
  %v1304 = vmul.f32 %v1196, %v1247
  %v1305 = vmul.f32 %v1195, %v1252
  %v1306 = vmul.f32 %v1194, %v1257
  %v1307 = vmul.f32 %v1193, %v1262
  %v1308 = vmul.f32 %v1192, %v1267
  %v1309 = vmul.f32 %v1191, %v1272
  %v1310 = vmul.f32 %v1190, %v1277
  %v1311 = vmul.f32 %v1189, %v1282
  %v1312 = vmul.f32 %v1188, %v1287
  %v1313 = vmul.f32 %v1187, %v1292
  %v1314 = vmul.f32 %v1186, %v1297
  %v1315 = vpack.c.bf16 %v1300, %v1299
  %v1316 = vpack.c.bf16 %v1302, %v1301
  %v1317 = vpack.c.bf16 %v1304, %v1303
  %v1318 = vpack.c.bf16 %v1306, %v1305
  %v1319 = vpack.c.bf16 %v1308, %v1307
  %v1320 = vpack.c.bf16 %v1310, %v1309
  %v1321 = vpack.c.bf16 %v1312, %v1311
  %v1322 = vpack.c.bf16 %v1314, %v1313
  %s1323 = scalar_lea.vmem %s2, 4
  %v1324 = vld [vmem:[%s1323] sm:$0x3]
  %v1326 = vsel %vm105, %v1315, 0
  %v1329 = vsel %vm105, %v1316, 0
  %v1332 = vsel %vm105, %v1317, 0
  %v1335 = vsel %vm105, %v1318, 0
  %v1338 = vsel %vm105, %v1319, 0
  %v1341 = vsel %vm105, %v1320, 0
  %v1344 = vsel %vm105, %v1321, 0
  %v1347 = vsel %vm105, %v1322, 0
  %v1350 = vsel %vm130, %v1324, 0
  %1352 = vmatprep.subr.bf16.mxu0 0
  %1353 = vmatpush1.bf16.msra.mxu0 %v1350
  %1354 = vmatprep.subr.bf16.mxu0 0
  %1355 = vmatpush1.bf16.msra.mxu0 0
  %1356 = vmatprep.subr.bf16.mxu0 0
  %1357 = vmatpush1.bf16.msra.mxu0 0
  %1358 = vmatprep.subr.bf16.mxu0 0
  %1359 = vmatpush1.bf16.msra.mxu0 0
  %1360 = vmatprep.subr.bf16.mxu0 0
  %1361 = vmatpush1.bf16.msra.mxu0 0
  %1362 = vmatprep.subr.bf16.mxu0 0
  %1363 = vmatpush1.bf16.msra.mxu0 0
  %1364 = vmatprep.subr.bf16.mxu0 0
  %1365 = vmatpush1.bf16.msra.mxu0 0
  %1366 = vmatprep.subr.bf16.mxu0 0
  %1367 = vmatpush1.bf16.msra.mxu0 0
  %1368 = vmatprep.subr.bf16.mxu0 0
  %1369 = vmatpush1.bf16.msra.mxu0 0
  %1370 = vmatprep.subr.bf16.mxu0 0
  %1371 = vmatpush1.bf16.msra.mxu0 0
  %1372 = vmatprep.subr.bf16.mxu0 0
  %1373 = vmatpush1.bf16.msra.mxu0 0
  %1374 = vmatprep.subr.bf16.mxu0 0
  %1375 = vmatpush1.bf16.msra.mxu0 0
  %1376 = vmatprep.subr.bf16.mxu0 0
  %1377 = vmatpush1.bf16.msra.mxu0 0
  %1378 = vmatprep.subr.bf16.mxu0 0
  %1379 = vmatpush1.bf16.msra.mxu0 0
  %1380 = vmatprep.subr.bf16.mxu0 0
  %1381 = vmatpush1.bf16.msra.mxu0 0
  %1382 = vmatprep.subr.bf16.mxu0 0
  %1383 = vmatpush1.bf16.msra.mxu0 0
  %1384 = vmatprep.mubr.bf16.mxu0 0
  %1385 = vmatmul.mubr.bf16.gmra.mrb[0].mxu0 %v1326
  %v1386 = vpop.f32.mrb[0].mxu0
  %v1387 = vadd.f32 0.0, %v1386
  %v1388 = vpop.f32.mrb[0].mxu0
  %v1389 = vpop.f32.mrb[0].mxu0
  %v1390 = vadd.f32 0.0, %v1389
  %v1391 = vpop.f32.mrb[0].mxu0
  %1392 = vmatprep.mubr.bf16.mxu0 0
  %1393 = vmatmul.mubr.bf16.gmra.mrb[0].mxu0 %v1329
  %v1394 = vpop.f32.mrb[0].mxu0
  %v1395 = vadd.f32 0.0, %v1394
  %v1396 = vpop.f32.mrb[0].mxu0
  %v1397 = vpop.f32.mrb[0].mxu0
  %v1398 = vadd.f32 0.0, %v1397
  %v1399 = vpop.f32.mrb[0].mxu0
  %1400 = vmatprep.mubr.bf16.mxu0 0
  %1401 = vmatmul.mubr.bf16.gmra.mrb[0].mxu0 %v1332
  %v1402 = vpop.f32.mrb[0].mxu0
  %v1403 = vadd.f32 0.0, %v1402
  %v1404 = vpop.f32.mrb[0].mxu0
  %v1405 = vpop.f32.mrb[0].mxu0
  %v1406 = vadd.f32 0.0, %v1405
  %v1407 = vpop.f32.mrb[0].mxu0
  %1408 = vmatprep.mubr.bf16.mxu0 0
  %1409 = vmatmul.mubr.bf16.gmra.mrb[0].mxu0 %v1335
  %v1410 = vpop.f32.mrb[0].mxu0
  %v1411 = vadd.f32 0.0, %v1410
  %v1412 = vpop.f32.mrb[0].mxu0
  %v1413 = vpop.f32.mrb[0].mxu0
  %v1414 = vadd.f32 0.0, %v1413
  %v1415 = vpop.f32.mrb[0].mxu0
  %1416 = vmatprep.mubr.bf16.mxu0 0
  %1417 = vmatmul.mubr.bf16.gmra.mrb[0].mxu0 %v1338
  %v1418 = vpop.f32.mrb[0].mxu0
  %v1419 = vadd.f32 0.0, %v1418
  %v1420 = vpop.f32.mrb[0].mxu0
  %v1421 = vpop.f32.mrb[0].mxu0
  %v1422 = vadd.f32 0.0, %v1421
  %v1423 = vpop.f32.mrb[0].mxu0
  %1424 = vmatprep.mubr.bf16.mxu0 0
  %1425 = vmatmul.mubr.bf16.gmra.mrb[0].mxu0 %v1341
  %v1426 = vpop.f32.mrb[0].mxu0
  %v1427 = vadd.f32 0.0, %v1426
  %v1428 = vpop.f32.mrb[0].mxu0
  %v1429 = vpop.f32.mrb[0].mxu0
  %v1430 = vadd.f32 0.0, %v1429
  %v1431 = vpop.f32.mrb[0].mxu0
  %1432 = vmatprep.mubr.bf16.mxu0 0
  %1433 = vmatmul.mubr.bf16.gmra.mrb[0].mxu0 %v1344
  %v1434 = vpop.f32.mrb[0].mxu0
  %v1435 = vadd.f32 0.0, %v1434
  %v1436 = vpop.f32.mrb[0].mxu0
  %v1437 = vpop.f32.mrb[0].mxu0
  %v1438 = vadd.f32 0.0, %v1437
  %v1439 = vpop.f32.mrb[0].mxu0
  %1440 = vmatprep.mubr.bf16.mxu0 0
  %1441 = vmatmul.mubr.bf16.gmra.mrb[0].mxu0 %v1347
  %v1442 = vpop.f32.mrb[0].mxu0
  %v1443 = vadd.f32 0.0, %v1442
  %v1444 = vpop.f32.mrb[0].mxu0
  %v1445 = vpop.f32.mrb[0].mxu0
  %v1446 = vadd.f32 0.0, %v1445
  %v1447 = vpop.f32.mrb[0].mxu0
  %1448 = vdwg.mxu0
  %v1449 = vadd.f32 %v1107, %v1387
  %v1450 = vadd.f32 %v1110, %v1390
  %v1451 = vadd.f32 %v1115, %v1395
  %v1452 = vadd.f32 %v1118, %v1398
  %v1453 = vadd.f32 %v1123, %v1403
  %v1454 = vadd.f32 %v1126, %v1406
  %v1455 = vadd.f32 %v1131, %v1411
  %v1456 = vadd.f32 %v1134, %v1414
  %v1457 = vadd.f32 %v1139, %v1419
  %v1458 = vadd.f32 %v1142, %v1422
  %v1459 = vadd.f32 %v1147, %v1427
  %v1460 = vadd.f32 %v1150, %v1430
  %v1461 = vadd.f32 %v1155, %v1435
  %v1462 = vadd.f32 %v1158, %v1438
  %v1463 = vadd.f32 %v1163, %v1443
  %v1464 = vadd.f32 %v1166, %v1446
  %s1465 = scalar_lea.vmem %s5, 384
  %v1466 = vld [vmem:[%s1465] sm:$0xff]
  %v1467 = vld [vmem:[%s1465 + $0x8] sm:$0xff]
  %v1468 = vld [vmem:[%s1465 + $0x10] sm:$0xff]
  %v1469 = vld [vmem:[%s1465 + $0x18] sm:$0xff]
  %v1470 = vld [vmem:[%s1465 + $0x20] sm:$0xff]
  %v1471 = vld [vmem:[%s1465 + $0x28] sm:$0xff]
  %v1472 = vld [vmem:[%s1465 + $0x30] sm:$0xff]
  %v1473 = vld [vmem:[%s1465 + $0x38] sm:$0xff]
  %v1474 = vld [vmem:[%s1465 + $0x40] sm:$0xff]
  %v1475 = vld [vmem:[%s1465 + $0x48] sm:$0xff]
  %v1476 = vld [vmem:[%s1465 + $0x50] sm:$0xff]
  %v1477 = vld [vmem:[%s1465 + $0x58] sm:$0xff]
  %v1478 = vld [vmem:[%s1465 + $0x60] sm:$0xff]
  %v1479 = vld [vmem:[%s1465 + $0x68] sm:$0xff]
  %v1480 = vld [vmem:[%s1465 + $0x70] sm:$0xff]
  %v1481 = vld [vmem:[%s1465 + $0x78] sm:$0xff]
  %1483 = vset.pattern.permute.xlu0 0
  %1484 = vperm.xlu0 %1483, %v1466
  %v1485 = vpop.permute.xlu0 %1484
  %1488 = vset.pattern.permute.xlu0 0
  %1489 = vperm.xlu0 %1488, %v1467
  %v1490 = vpop.permute.xlu0 %1489
  %1493 = vset.pattern.permute.xlu0 0
  %1494 = vperm.xlu0 %1493, %v1468
  %v1495 = vpop.permute.xlu0 %1494
  %1498 = vset.pattern.permute.xlu0 0
  %1499 = vperm.xlu0 %1498, %v1469
  %v1500 = vpop.permute.xlu0 %1499
  %1503 = vset.pattern.permute.xlu0 0
  %1504 = vperm.xlu0 %1503, %v1470
  %v1505 = vpop.permute.xlu0 %1504
  %1508 = vset.pattern.permute.xlu0 0
  %1509 = vperm.xlu0 %1508, %v1471
  %v1510 = vpop.permute.xlu0 %1509
  %1513 = vset.pattern.permute.xlu0 0
  %1514 = vperm.xlu0 %1513, %v1472
  %v1515 = vpop.permute.xlu0 %1514
  %1518 = vset.pattern.permute.xlu0 0
  %1519 = vperm.xlu0 %1518, %v1473
  %v1520 = vpop.permute.xlu0 %1519
  %1523 = vset.pattern.permute.xlu0 0
  %1524 = vperm.xlu0 %1523, %v1474
  %v1525 = vpop.permute.xlu0 %1524
  %1528 = vset.pattern.permute.xlu0 0
  %1529 = vperm.xlu0 %1528, %v1475
  %v1530 = vpop.permute.xlu0 %1529
  %1533 = vset.pattern.permute.xlu0 0
  %1534 = vperm.xlu0 %1533, %v1476
  %v1535 = vpop.permute.xlu0 %1534
  %1538 = vset.pattern.permute.xlu0 0
  %1539 = vperm.xlu0 %1538, %v1477
  %v1540 = vpop.permute.xlu0 %1539
  %1543 = vset.pattern.permute.xlu0 0
  %1544 = vperm.xlu0 %1543, %v1478
  %v1545 = vpop.permute.xlu0 %1544
  %1548 = vset.pattern.permute.xlu0 0
  %1549 = vperm.xlu0 %1548, %v1479
  %v1550 = vpop.permute.xlu0 %1549
  %1553 = vset.pattern.permute.xlu0 0
  %1554 = vperm.xlu0 %1553, %v1480
  %v1555 = vpop.permute.xlu0 %1554
  %1558 = vset.pattern.permute.xlu0 0
  %1559 = vperm.xlu0 %1558, %v1481
  %v1560 = vpop.permute.xlu0 %1559
  %v1562 = vmul.f32 %v676, %v1485
  %v1563 = vmul.f32 %v675, %v1490
  %v1564 = vmul.f32 %v674, %v1495
  %v1565 = vmul.f32 %v673, %v1500
  %v1566 = vmul.f32 %v672, %v1505
  %v1567 = vmul.f32 %v671, %v1510
  %v1568 = vmul.f32 %v670, %v1515
  %v1569 = vmul.f32 %v669, %v1520
  %v1570 = vmul.f32 %v668, %v1525
  %v1571 = vmul.f32 %v667, %v1530
  %v1572 = vmul.f32 %v666, %v1535
  %v1573 = vmul.f32 %v665, %v1540
  %v1574 = vmul.f32 %v664, %v1545
  %v1575 = vmul.f32 %v663, %v1550
  %v1576 = vmul.f32 %v662, %v1555
  %v1577 = vmul.f32 %v661, %v1560
  %v1578 = vpack.c.bf16 %v1563, %v1562
  %v1579 = vpack.c.bf16 %v1565, %v1564
  %v1580 = vpack.c.bf16 %v1567, %v1566
  %v1581 = vpack.c.bf16 %v1569, %v1568
  %v1582 = vpack.c.bf16 %v1571, %v1570
  %v1583 = vpack.c.bf16 %v1573, %v1572
  %v1584 = vpack.c.bf16 %v1575, %v1574
  %v1585 = vpack.c.bf16 %v1577, %v1576
  %s1586 = scalar_lea.vmem %s2, 6
  %v1587 = vld [vmem:[%s1586] sm:$0x3]
  %v1589 = vsel %vm105, %v1578, 0
  %v1592 = vsel %vm105, %v1579, 0
  %v1595 = vsel %vm105, %v1580, 0
  %v1598 = vsel %vm105, %v1581, 0
  %v1601 = vsel %vm105, %v1582, 0
  %v1604 = vsel %vm105, %v1583, 0
  %v1607 = vsel %vm105, %v1584, 0
  %v1610 = vsel %vm105, %v1585, 0
  %v1613 = vsel %vm130, %v1587, 0
  %1615 = vmatprep.subr.bf16.mxu0 0
  %1616 = vmatpush1.bf16.msra.mxu0 %v1613
  %1617 = vmatprep.subr.bf16.mxu0 0
  %1618 = vmatpush1.bf16.msra.mxu0 0
  %1619 = vmatprep.subr.bf16.mxu0 0
  %1620 = vmatpush1.bf16.msra.mxu0 0
  %1621 = vmatprep.subr.bf16.mxu0 0
  %1622 = vmatpush1.bf16.msra.mxu0 0
  %1623 = vmatprep.subr.bf16.mxu0 0
  %1624 = vmatpush1.bf16.msra.mxu0 0
  %1625 = vmatprep.subr.bf16.mxu0 0
  %1626 = vmatpush1.bf16.msra.mxu0 0
  %1627 = vmatprep.subr.bf16.mxu0 0
  %1628 = vmatpush1.bf16.msra.mxu0 0
  %1629 = vmatprep.subr.bf16.mxu0 0
  %1630 = vmatpush1.bf16.msra.mxu0 0
  %1631 = vmatprep.subr.bf16.mxu0 0
  %1632 = vmatpush1.bf16.msra.mxu0 0
  %1633 = vmatprep.subr.bf16.mxu0 0
  %1634 = vmatpush1.bf16.msra.mxu0 0
  %1635 = vmatprep.subr.bf16.mxu0 0
  %1636 = vmatpush1.bf16.msra.mxu0 0
  %1637 = vmatprep.subr.bf16.mxu0 0
  %1638 = vmatpush1.bf16.msra.mxu0 0
  %1639 = vmatprep.subr.bf16.mxu0 0
  %1640 = vmatpush1.bf16.msra.mxu0 0
  %1641 = vmatprep.subr.bf16.mxu0 0
  %1642 = vmatpush1.bf16.msra.mxu0 0
  %1643 = vmatprep.subr.bf16.mxu0 0
  %1644 = vmatpush1.bf16.msra.mxu0 0
  %1645 = vmatprep.subr.bf16.mxu0 0
  %1646 = vmatpush1.bf16.msra.mxu0 0
  %1647 = vmatprep.mubr.bf16.mxu0 0
  %1648 = vmatmul.mubr.bf16.gmra.mrb[0].mxu0 %v1589
  %v1649 = vpop.f32.mrb[0].mxu0
  %v1650 = vadd.f32 0.0, %v1649
  %v1651 = vpop.f32.mrb[0].mxu0
  %v1652 = vpop.f32.mrb[0].mxu0
  %v1653 = vadd.f32 0.0, %v1652
  %v1654 = vpop.f32.mrb[0].mxu0
  %1655 = vmatprep.mubr.bf16.mxu0 0
  %1656 = vmatmul.mubr.bf16.gmra.mrb[0].mxu0 %v1592
  %v1657 = vpop.f32.mrb[0].mxu0
  %v1658 = vadd.f32 0.0, %v1657
  %v1659 = vpop.f32.mrb[0].mxu0
  %v1660 = vpop.f32.mrb[0].mxu0
  %v1661 = vadd.f32 0.0, %v1660
  %v1662 = vpop.f32.mrb[0].mxu0
  %1663 = vmatprep.mubr.bf16.mxu0 0
  %1664 = vmatmul.mubr.bf16.gmra.mrb[0].mxu0 %v1595
  %v1665 = vpop.f32.mrb[0].mxu0
  %v1666 = vadd.f32 0.0, %v1665
  %v1667 = vpop.f32.mrb[0].mxu0
  %v1668 = vpop.f32.mrb[0].mxu0
  %v1669 = vadd.f32 0.0, %v1668
  %v1670 = vpop.f32.mrb[0].mxu0
  %1671 = vmatprep.mubr.bf16.mxu0 0
  %1672 = vmatmul.mubr.bf16.gmra.mrb[0].mxu0 %v1598
  %v1673 = vpop.f32.mrb[0].mxu0
  %v1674 = vadd.f32 0.0, %v1673
  %v1675 = vpop.f32.mrb[0].mxu0
  %v1676 = vpop.f32.mrb[0].mxu0
  %v1677 = vadd.f32 0.0, %v1676
  %v1678 = vpop.f32.mrb[0].mxu0
  %1679 = vmatprep.mubr.bf16.mxu0 0
  %1680 = vmatmul.mubr.bf16.gmra.mrb[0].mxu0 %v1601
  %v1681 = vpop.f32.mrb[0].mxu0
  %v1682 = vadd.f32 0.0, %v1681
  %v1683 = vpop.f32.mrb[0].mxu0
  %v1684 = vpop.f32.mrb[0].mxu0
  %v1685 = vadd.f32 0.0, %v1684
  %v1686 = vpop.f32.mrb[0].mxu0
  %1687 = vmatprep.mubr.bf16.mxu0 0
  %1688 = vmatmul.mubr.bf16.gmra.mrb[0].mxu0 %v1604
  %v1689 = vpop.f32.mrb[0].mxu0
  %v1690 = vadd.f32 0.0, %v1689
  %v1691 = vpop.f32.mrb[0].mxu0
  %v1692 = vpop.f32.mrb[0].mxu0
  %v1693 = vadd.f32 0.0, %v1692
  %v1694 = vpop.f32.mrb[0].mxu0
  %1695 = vmatprep.mubr.bf16.mxu0 0
  %1696 = vmatmul.mubr.bf16.gmra.mrb[0].mxu0 %v1607
  %v1697 = vpop.f32.mrb[0].mxu0
  %v1698 = vadd.f32 0.0, %v1697
  %v1699 = vpop.f32.mrb[0].mxu0
  %v1700 = vpop.f32.mrb[0].mxu0
  %v1701 = vadd.f32 0.0, %v1700
  %v1702 = vpop.f32.mrb[0].mxu0
  %1703 = vmatprep.mubr.bf16.mxu0 0
  %1704 = vmatmul.mubr.bf16.gmra.mrb[0].mxu0 %v1610
  %v1705 = vpop.f32.mrb[0].mxu0
  %v1706 = vadd.f32 0.0, %v1705
  %v1707 = vpop.f32.mrb[0].mxu0
  %v1708 = vpop.f32.mrb[0].mxu0
  %v1709 = vadd.f32 0.0, %v1708
  %v1710 = vpop.f32.mrb[0].mxu0
  %1711 = vdwg.mxu0
  %v1712 = vadd.f32 %v1449, %v1650
  %v1713 = vadd.f32 %v1450, %v1653
  %v1714 = vadd.f32 %v1451, %v1658
  %v1715 = vadd.f32 %v1452, %v1661
  %v1716 = vadd.f32 %v1453, %v1666
  %v1717 = vadd.f32 %v1454, %v1669
  %v1718 = vadd.f32 %v1455, %v1674
  %v1719 = vadd.f32 %v1456, %v1677
  %v1720 = vadd.f32 %v1457, %v1682
  %v1721 = vadd.f32 %v1458, %v1685
  %v1722 = vadd.f32 %v1459, %v1690
  %v1723 = vadd.f32 %v1460, %v1693
  %v1724 = vadd.f32 %v1461, %v1698
  %v1725 = vadd.f32 %v1462, %v1701
  %v1726 = vadd.f32 %v1463, %v1706
  %v1727 = vadd.f32 %v1464, %v1709
  %s1728 = scalar_lea.vmem %s5, 512
  %v1729 = vld [vmem:[%s1728] sm:$0xff]
  %v1730 = vld [vmem:[%s1728 + $0x8] sm:$0xff]
  %v1731 = vld [vmem:[%s1728 + $0x10] sm:$0xff]
  %v1732 = vld [vmem:[%s1728 + $0x18] sm:$0xff]
  %v1733 = vld [vmem:[%s1728 + $0x20] sm:$0xff]
  %v1734 = vld [vmem:[%s1728 + $0x28] sm:$0xff]
  %v1735 = vld [vmem:[%s1728 + $0x30] sm:$0xff]
  %v1736 = vld [vmem:[%s1728 + $0x38] sm:$0xff]
  %v1737 = vld [vmem:[%s1728 + $0x40] sm:$0xff]
  %v1738 = vld [vmem:[%s1728 + $0x48] sm:$0xff]
  %v1739 = vld [vmem:[%s1728 + $0x50] sm:$0xff]
  %v1740 = vld [vmem:[%s1728 + $0x58] sm:$0xff]
  %v1741 = vld [vmem:[%s1728 + $0x60] sm:$0xff]
  %v1742 = vld [vmem:[%s1728 + $0x68] sm:$0xff]
  %v1743 = vld [vmem:[%s1728 + $0x70] sm:$0xff]
  %v1744 = vld [vmem:[%s1728 + $0x78] sm:$0xff]
  %1746 = vset.pattern.permute.xlu0 0
  %1747 = vperm.xlu0 %1746, %v1729
  %v1748 = vpop.permute.xlu0 %1747
  %1751 = vset.pattern.permute.xlu0 0
  %1752 = vperm.xlu0 %1751, %v1730
  %v1753 = vpop.permute.xlu0 %1752
  %1756 = vset.pattern.permute.xlu0 0
  %1757 = vperm.xlu0 %1756, %v1731
  %v1758 = vpop.permute.xlu0 %1757
  %1761 = vset.pattern.permute.xlu0 0
  %1762 = vperm.xlu0 %1761, %v1732
  %v1763 = vpop.permute.xlu0 %1762
  %1766 = vset.pattern.permute.xlu0 0
  %1767 = vperm.xlu0 %1766, %v1733
  %v1768 = vpop.permute.xlu0 %1767
  %1771 = vset.pattern.permute.xlu0 0
  %1772 = vperm.xlu0 %1771, %v1734
  %v1773 = vpop.permute.xlu0 %1772
  %1776 = vset.pattern.permute.xlu0 0
  %1777 = vperm.xlu0 %1776, %v1735
  %v1778 = vpop.permute.xlu0 %1777
  %1781 = vset.pattern.permute.xlu0 0
  %1782 = vperm.xlu0 %1781, %v1736
  %v1783 = vpop.permute.xlu0 %1782
  %1786 = vset.pattern.permute.xlu0 0
  %1787 = vperm.xlu0 %1786, %v1737
  %v1788 = vpop.permute.xlu0 %1787
  %1791 = vset.pattern.permute.xlu0 0
  %1792 = vperm.xlu0 %1791, %v1738
  %v1793 = vpop.permute.xlu0 %1792
  %1796 = vset.pattern.permute.xlu0 0
  %1797 = vperm.xlu0 %1796, %v1739
  %v1798 = vpop.permute.xlu0 %1797
  %1801 = vset.pattern.permute.xlu0 0
  %1802 = vperm.xlu0 %1801, %v1740
  %v1803 = vpop.permute.xlu0 %1802
  %1806 = vset.pattern.permute.xlu0 0
  %1807 = vperm.xlu0 %1806, %v1741
  %v1808 = vpop.permute.xlu0 %1807
  %1811 = vset.pattern.permute.xlu0 0
  %1812 = vperm.xlu0 %1811, %v1742
  %v1813 = vpop.permute.xlu0 %1812
  %1816 = vset.pattern.permute.xlu0 0
  %1817 = vperm.xlu0 %1816, %v1743
  %v1818 = vpop.permute.xlu0 %1817
  %1821 = vset.pattern.permute.xlu0 0
  %1822 = vperm.xlu0 %1821, %v1744
  %v1823 = vpop.permute.xlu0 %1822
  %v1825 = vmul.f32 %v626, %v1748
  %v1826 = vmul.f32 %v627, %v1753
  %v1827 = vmul.f32 %v628, %v1758
  %v1828 = vmul.f32 %v629, %v1763
  %v1829 = vmul.f32 %v630, %v1768
  %v1830 = vmul.f32 %v631, %v1773
  %v1831 = vmul.f32 %v632, %v1778
  %v1832 = vmul.f32 %v633, %v1783
  %v1833 = vmul.f32 %v634, %v1788
  %v1834 = vmul.f32 %v635, %v1793
  %v1835 = vmul.f32 %v636, %v1798
  %v1836 = vmul.f32 %v637, %v1803
  %v1837 = vmul.f32 %v638, %v1808
  %v1838 = vmul.f32 %v639, %v1813
  %v1839 = vmul.f32 %v640, %v1818
  %v1840 = vmul.f32 %v641, %v1823
  %v1841 = vpack.c.bf16 %v1826, %v1825
  %v1842 = vpack.c.bf16 %v1828, %v1827
  %v1843 = vpack.c.bf16 %v1830, %v1829
  %v1844 = vpack.c.bf16 %v1832, %v1831
  %v1845 = vpack.c.bf16 %v1834, %v1833
  %v1846 = vpack.c.bf16 %v1836, %v1835
  %v1847 = vpack.c.bf16 %v1838, %v1837
  %v1848 = vpack.c.bf16 %v1840, %v1839
  %s1849 = scalar_lea.vmem %s2, 8
  %v1850 = vld [vmem:[%s1849] sm:$0x3]
  %v1852 = vsel %vm105, %v1841, 0
  %v1855 = vsel %vm105, %v1842, 0
  %v1858 = vsel %vm105, %v1843, 0
  %v1861 = vsel %vm105, %v1844, 0
  %v1864 = vsel %vm105, %v1845, 0
  %v1867 = vsel %vm105, %v1846, 0
  %v1870 = vsel %vm105, %v1847, 0
  %v1873 = vsel %vm105, %v1848, 0
  %v1876 = vsel %vm130, %v1850, 0
  %1878 = vmatprep.subr.bf16.mxu0 0
  %1879 = vmatpush1.bf16.msra.mxu0 %v1876
  %1880 = vmatprep.subr.bf16.mxu0 0
  %1881 = vmatpush1.bf16.msra.mxu0 0
  %1882 = vmatprep.subr.bf16.mxu0 0
  %1883 = vmatpush1.bf16.msra.mxu0 0
  %1884 = vmatprep.subr.bf16.mxu0 0
  %1885 = vmatpush1.bf16.msra.mxu0 0
  %1886 = vmatprep.subr.bf16.mxu0 0
  %1887 = vmatpush1.bf16.msra.mxu0 0
  %1888 = vmatprep.subr.bf16.mxu0 0
  %1889 = vmatpush1.bf16.msra.mxu0 0
  %1890 = vmatprep.subr.bf16.mxu0 0
  %1891 = vmatpush1.bf16.msra.mxu0 0
  %1892 = vmatprep.subr.bf16.mxu0 0
  %1893 = vmatpush1.bf16.msra.mxu0 0
  %1894 = vmatprep.subr.bf16.mxu0 0
  %1895 = vmatpush1.bf16.msra.mxu0 0
  %1896 = vmatprep.subr.bf16.mxu0 0
  %1897 = vmatpush1.bf16.msra.mxu0 0
  %1898 = vmatprep.subr.bf16.mxu0 0
  %1899 = vmatpush1.bf16.msra.mxu0 0
  %1900 = vmatprep.subr.bf16.mxu0 0
  %1901 = vmatpush1.bf16.msra.mxu0 0
  %1902 = vmatprep.subr.bf16.mxu0 0
  %1903 = vmatpush1.bf16.msra.mxu0 0
  %1904 = vmatprep.subr.bf16.mxu0 0
  %1905 = vmatpush1.bf16.msra.mxu0 0
  %1906 = vmatprep.subr.bf16.mxu0 0
  %1907 = vmatpush1.bf16.msra.mxu0 0
  %1908 = vmatprep.subr.bf16.mxu0 0
  %1909 = vmatpush1.bf16.msra.mxu0 0
  %1910 = vmatprep.mubr.bf16.mxu0 0
  %1911 = vmatmul.mubr.bf16.gmra.mrb[0].mxu0 %v1852
  %v1912 = vpop.f32.mrb[0].mxu0
  %v1913 = vadd.f32 0.0, %v1912
  %v1914 = vpop.f32.mrb[0].mxu0
  %v1915 = vpop.f32.mrb[0].mxu0
  %v1916 = vadd.f32 0.0, %v1915
  %v1917 = vpop.f32.mrb[0].mxu0
  %1918 = vmatprep.mubr.bf16.mxu0 0
  %1919 = vmatmul.mubr.bf16.gmra.mrb[0].mxu0 %v1855
  %v1920 = vpop.f32.mrb[0].mxu0
  %v1921 = vadd.f32 0.0, %v1920
  %v1922 = vpop.f32.mrb[0].mxu0
  %v1923 = vpop.f32.mrb[0].mxu0
  %v1924 = vadd.f32 0.0, %v1923
  %v1925 = vpop.f32.mrb[0].mxu0
  %1926 = vmatprep.mubr.bf16.mxu0 0
  %1927 = vmatmul.mubr.bf16.gmra.mrb[0].mxu0 %v1858
  %v1928 = vpop.f32.mrb[0].mxu0
  %v1929 = vadd.f32 0.0, %v1928
  %v1930 = vpop.f32.mrb[0].mxu0
  %v1931 = vpop.f32.mrb[0].mxu0
  %v1932 = vadd.f32 0.0, %v1931
  %v1933 = vpop.f32.mrb[0].mxu0
  %1934 = vmatprep.mubr.bf16.mxu0 0
  %1935 = vmatmul.mubr.bf16.gmra.mrb[0].mxu0 %v1861
  %v1936 = vpop.f32.mrb[0].mxu0
  %v1937 = vadd.f32 0.0, %v1936
  %v1938 = vpop.f32.mrb[0].mxu0
  %v1939 = vpop.f32.mrb[0].mxu0
  %v1940 = vadd.f32 0.0, %v1939
  %v1941 = vpop.f32.mrb[0].mxu0
  %1942 = vmatprep.mubr.bf16.mxu0 0
  %1943 = vmatmul.mubr.bf16.gmra.mrb[0].mxu0 %v1864
  %v1944 = vpop.f32.mrb[0].mxu0
  %v1945 = vadd.f32 0.0, %v1944
  %v1946 = vpop.f32.mrb[0].mxu0
  %v1947 = vpop.f32.mrb[0].mxu0
  %v1948 = vadd.f32 0.0, %v1947
  %v1949 = vpop.f32.mrb[0].mxu0
  %1950 = vmatprep.mubr.bf16.mxu0 0
  %1951 = vmatmul.mubr.bf16.gmra.mrb[0].mxu0 %v1867
  %v1952 = vpop.f32.mrb[0].mxu0
  %v1953 = vadd.f32 0.0, %v1952
  %v1954 = vpop.f32.mrb[0].mxu0
  %v1955 = vpop.f32.mrb[0].mxu0
  %v1956 = vadd.f32 0.0, %v1955
  %v1957 = vpop.f32.mrb[0].mxu0
  %1958 = vmatprep.mubr.bf16.mxu0 0
  %1959 = vmatmul.mubr.bf16.gmra.mrb[0].mxu0 %v1870
  %v1960 = vpop.f32.mrb[0].mxu0
  %v1961 = vadd.f32 0.0, %v1960
  %v1962 = vpop.f32.mrb[0].mxu0
  %v1963 = vpop.f32.mrb[0].mxu0
  %v1964 = vadd.f32 0.0, %v1963
  %v1965 = vpop.f32.mrb[0].mxu0
  %1966 = vmatprep.mubr.bf16.mxu0 0
  %1967 = vmatmul.mubr.bf16.gmra.mrb[0].mxu0 %v1873
  %v1968 = vpop.f32.mrb[0].mxu0
  %v1969 = vadd.f32 0.0, %v1968
  %v1970 = vpop.f32.mrb[0].mxu0
  %v1971 = vpop.f32.mrb[0].mxu0
  %v1972 = vadd.f32 0.0, %v1971
  %v1973 = vpop.f32.mrb[0].mxu0
  %1974 = vdwg.mxu0
  %v1975 = vadd.f32 %v1712, %v1913
  %v1976 = vadd.f32 %v1713, %v1916
  %v1977 = vadd.f32 %v1714, %v1921
  %v1978 = vadd.f32 %v1715, %v1924
  %v1979 = vadd.f32 %v1716, %v1929
  %v1980 = vadd.f32 %v1717, %v1932
  %v1981 = vadd.f32 %v1718, %v1937
  %v1982 = vadd.f32 %v1719, %v1940
  %v1983 = vadd.f32 %v1720, %v1945
  %v1984 = vadd.f32 %v1721, %v1948
  %v1985 = vadd.f32 %v1722, %v1953
  %v1986 = vadd.f32 %v1723, %v1956
  %v1987 = vadd.f32 %v1724, %v1961
  %v1988 = vadd.f32 %v1725, %v1964
  %v1989 = vadd.f32 %v1726, %v1969
  %v1990 = vadd.f32 %v1727, %v1972
  %s1991 = scalar_lea.vmem %s5, 640
  %v1992 = vld [vmem:[%s1991] sm:$0xff]
  %v1993 = vld [vmem:[%s1991 + $0x8] sm:$0xff]
  %v1994 = vld [vmem:[%s1991 + $0x10] sm:$0xff]
  %v1995 = vld [vmem:[%s1991 + $0x18] sm:$0xff]
  %v1996 = vld [vmem:[%s1991 + $0x20] sm:$0xff]
  %v1997 = vld [vmem:[%s1991 + $0x28] sm:$0xff]
  %v1998 = vld [vmem:[%s1991 + $0x30] sm:$0xff]
  %v1999 = vld [vmem:[%s1991 + $0x38] sm:$0xff]
  %v2000 = vld [vmem:[%s1991 + $0x40] sm:$0xff]
  %v2001 = vld [vmem:[%s1991 + $0x48] sm:$0xff]
  %v2002 = vld [vmem:[%s1991 + $0x50] sm:$0xff]
  %v2003 = vld [vmem:[%s1991 + $0x58] sm:$0xff]
  %v2004 = vld [vmem:[%s1991 + $0x60] sm:$0xff]
  %v2005 = vld [vmem:[%s1991 + $0x68] sm:$0xff]
  %v2006 = vld [vmem:[%s1991 + $0x70] sm:$0xff]
  %v2007 = vld [vmem:[%s1991 + $0x78] sm:$0xff]
  %2009 = vset.pattern.permute.xlu0 0
  %2010 = vperm.xlu0 %2009, %v1992
  %v2011 = vpop.permute.xlu0 %2010
  %2014 = vset.pattern.permute.xlu0 0
  %2015 = vperm.xlu0 %2014, %v1993
  %v2016 = vpop.permute.xlu0 %2015
  %2019 = vset.pattern.permute.xlu0 0
  %2020 = vperm.xlu0 %2019, %v1994
  %v2021 = vpop.permute.xlu0 %2020
  %2024 = vset.pattern.permute.xlu0 0
  %2025 = vperm.xlu0 %2024, %v1995
  %v2026 = vpop.permute.xlu0 %2025
  %2029 = vset.pattern.permute.xlu0 0
  %2030 = vperm.xlu0 %2029, %v1996
  %v2031 = vpop.permute.xlu0 %2030
  %2034 = vset.pattern.permute.xlu0 0
  %2035 = vperm.xlu0 %2034, %v1997
  %v2036 = vpop.permute.xlu0 %2035
  %2039 = vset.pattern.permute.xlu0 0
  %2040 = vperm.xlu0 %2039, %v1998
  %v2041 = vpop.permute.xlu0 %2040
  %2044 = vset.pattern.permute.xlu0 0
  %2045 = vperm.xlu0 %2044, %v1999
  %v2046 = vpop.permute.xlu0 %2045
  %2049 = vset.pattern.permute.xlu0 0
  %2050 = vperm.xlu0 %2049, %v2000
  %v2051 = vpop.permute.xlu0 %2050
  %2054 = vset.pattern.permute.xlu0 0
  %2055 = vperm.xlu0 %2054, %v2001
  %v2056 = vpop.permute.xlu0 %2055
  %2059 = vset.pattern.permute.xlu0 0
  %2060 = vperm.xlu0 %2059, %v2002
  %v2061 = vpop.permute.xlu0 %2060
  %2064 = vset.pattern.permute.xlu0 0
  %2065 = vperm.xlu0 %2064, %v2003
  %v2066 = vpop.permute.xlu0 %2065
  %2069 = vset.pattern.permute.xlu0 0
  %2070 = vperm.xlu0 %2069, %v2004
  %v2071 = vpop.permute.xlu0 %2070
  %2074 = vset.pattern.permute.xlu0 0
  %2075 = vperm.xlu0 %2074, %v2005
  %v2076 = vpop.permute.xlu0 %2075
  %2079 = vset.pattern.permute.xlu0 0
  %2080 = vperm.xlu0 %2079, %v2006
  %v2081 = vpop.permute.xlu0 %2080
  %2084 = vset.pattern.permute.xlu0 0
  %2085 = vperm.xlu0 %2084, %v2007
  %v2086 = vpop.permute.xlu0 %2085
  %v2088 = vmul.f32 %v1200, %v2011
  %v2089 = vmul.f32 %v1199, %v2016
  %v2090 = vmul.f32 %v1198, %v2021
  %v2091 = vmul.f32 %v1197, %v2026
  %v2092 = vmul.f32 %v1196, %v2031
  %v2093 = vmul.f32 %v1195, %v2036
  %v2094 = vmul.f32 %v1194, %v2041
  %v2095 = vmul.f32 %v1193, %v2046
  %v2096 = vmul.f32 %v1192, %v2051
  %v2097 = vmul.f32 %v1191, %v2056
  %v2098 = vmul.f32 %v1190, %v2061
  %v2099 = vmul.f32 %v1189, %v2066
  %v2100 = vmul.f32 %v1188, %v2071
  %v2101 = vmul.f32 %v1187, %v2076
  %v2102 = vmul.f32 %v1186, %v2081
  %v2103 = vmul.f32 %v1201, %v2086
  %v2104 = vpack.c.bf16 %v2089, %v2088
  %v2105 = vpack.c.bf16 %v2091, %v2090
  %v2106 = vpack.c.bf16 %v2093, %v2092
  %v2107 = vpack.c.bf16 %v2095, %v2094
  %v2108 = vpack.c.bf16 %v2097, %v2096
  %v2109 = vpack.c.bf16 %v2099, %v2098
  %v2110 = vpack.c.bf16 %v2101, %v2100
  %v2111 = vpack.c.bf16 %v2103, %v2102
  %s2112 = scalar_lea.vmem %s2, 10
  %v2113 = vld [vmem:[%s2112] sm:$0x3]
  %v2115 = vsel %vm105, %v2104, 0
  %v2118 = vsel %vm105, %v2105, 0
  %v2121 = vsel %vm105, %v2106, 0
  %v2124 = vsel %vm105, %v2107, 0
  %v2127 = vsel %vm105, %v2108, 0
  %v2130 = vsel %vm105, %v2109, 0
  %v2133 = vsel %vm105, %v2110, 0
  %v2136 = vsel %vm105, %v2111, 0
  %v2139 = vsel %vm130, %v2113, 0
  %2141 = vmatprep.subr.bf16.mxu0 0
  %2142 = vmatpush1.bf16.msra.mxu0 %v2139
  %2143 = vmatprep.subr.bf16.mxu0 0
  %2144 = vmatpush1.bf16.msra.mxu0 0
  %2145 = vmatprep.subr.bf16.mxu0 0
  %2146 = vmatpush1.bf16.msra.mxu0 0
  %2147 = vmatprep.subr.bf16.mxu0 0
  %2148 = vmatpush1.bf16.msra.mxu0 0
  %2149 = vmatprep.subr.bf16.mxu0 0
  %2150 = vmatpush1.bf16.msra.mxu0 0
  %2151 = vmatprep.subr.bf16.mxu0 0
  %2152 = vmatpush1.bf16.msra.mxu0 0
  %2153 = vmatprep.subr.bf16.mxu0 0
  %2154 = vmatpush1.bf16.msra.mxu0 0
  %2155 = vmatprep.subr.bf16.mxu0 0
  %2156 = vmatpush1.bf16.msra.mxu0 0
  %2157 = vmatprep.subr.bf16.mxu0 0
  %2158 = vmatpush1.bf16.msra.mxu0 0
  %2159 = vmatprep.subr.bf16.mxu0 0
  %2160 = vmatpush1.bf16.msra.mxu0 0
  %2161 = vmatprep.subr.bf16.mxu0 0
  %2162 = vmatpush1.bf16.msra.mxu0 0
  %2163 = vmatprep.subr.bf16.mxu0 0
  %2164 = vmatpush1.bf16.msra.mxu0 0
  %2165 = vmatprep.subr.bf16.mxu0 0
  %2166 = vmatpush1.bf16.msra.mxu0 0
  %2167 = vmatprep.subr.bf16.mxu0 0
  %2168 = vmatpush1.bf16.msra.mxu0 0
  %2169 = vmatprep.subr.bf16.mxu0 0
  %2170 = vmatpush1.bf16.msra.mxu0 0
  %2171 = vmatprep.subr.bf16.mxu0 0
  %2172 = vmatpush1.bf16.msra.mxu0 0
  %2173 = vmatprep.mubr.bf16.mxu0 0
  %2174 = vmatmul.mubr.bf16.gmra.mrb[0].mxu0 %v2115
  %v2175 = vpop.f32.mrb[0].mxu0
  %v2176 = vadd.f32 0.0, %v2175
  %v2177 = vpop.f32.mrb[0].mxu0
  %v2178 = vpop.f32.mrb[0].mxu0
  %v2179 = vadd.f32 0.0, %v2178
  %v2180 = vpop.f32.mrb[0].mxu0
  %2181 = vmatprep.mubr.bf16.mxu0 0
  %2182 = vmatmul.mubr.bf16.gmra.mrb[0].mxu0 %v2118
  %v2183 = vpop.f32.mrb[0].mxu0
  %v2184 = vadd.f32 0.0, %v2183
  %v2185 = vpop.f32.mrb[0].mxu0
  %v2186 = vpop.f32.mrb[0].mxu0
  %v2187 = vadd.f32 0.0, %v2186
  %v2188 = vpop.f32.mrb[0].mxu0
  %2189 = vmatprep.mubr.bf16.mxu0 0
  %2190 = vmatmul.mubr.bf16.gmra.mrb[0].mxu0 %v2121
  %v2191 = vpop.f32.mrb[0].mxu0
  %v2192 = vadd.f32 0.0, %v2191
  %v2193 = vpop.f32.mrb[0].mxu0
  %v2194 = vpop.f32.mrb[0].mxu0
  %v2195 = vadd.f32 0.0, %v2194
  %v2196 = vpop.f32.mrb[0].mxu0
  %2197 = vmatprep.mubr.bf16.mxu0 0
  %2198 = vmatmul.mubr.bf16.gmra.mrb[0].mxu0 %v2124
  %v2199 = vpop.f32.mrb[0].mxu0
  %v2200 = vadd.f32 0.0, %v2199
  %v2201 = vpop.f32.mrb[0].mxu0
  %v2202 = vpop.f32.mrb[0].mxu0
  %v2203 = vadd.f32 0.0, %v2202
  %v2204 = vpop.f32.mrb[0].mxu0
  %2205 = vmatprep.mubr.bf16.mxu0 0
  %2206 = vmatmul.mubr.bf16.gmra.mrb[0].mxu0 %v2127
  %v2207 = vpop.f32.mrb[0].mxu0
  %v2208 = vadd.f32 0.0, %v2207
  %v2209 = vpop.f32.mrb[0].mxu0
  %v2210 = vpop.f32.mrb[0].mxu0
  %v2211 = vadd.f32 0.0, %v2210
  %v2212 = vpop.f32.mrb[0].mxu0
  %2213 = vmatprep.mubr.bf16.mxu0 0
  %2214 = vmatmul.mubr.bf16.gmra.mrb[0].mxu0 %v2130
  %v2215 = vpop.f32.mrb[0].mxu0
  %v2216 = vadd.f32 0.0, %v2215
  %v2217 = vpop.f32.mrb[0].mxu0
  %v2218 = vpop.f32.mrb[0].mxu0
  %v2219 = vadd.f32 0.0, %v2218
  %v2220 = vpop.f32.mrb[0].mxu0
  %2221 = vmatprep.mubr.bf16.mxu0 0
  %2222 = vmatmul.mubr.bf16.gmra.mrb[0].mxu0 %v2133
  %v2223 = vpop.f32.mrb[0].mxu0
  %v2224 = vadd.f32 0.0, %v2223
  %v2225 = vpop.f32.mrb[0].mxu0
  %v2226 = vpop.f32.mrb[0].mxu0
  %v2227 = vadd.f32 0.0, %v2226
  %v2228 = vpop.f32.mrb[0].mxu0
  %2229 = vmatprep.mubr.bf16.mxu0 0
  %2230 = vmatmul.mubr.bf16.gmra.mrb[0].mxu0 %v2136
  %v2231 = vpop.f32.mrb[0].mxu0
  %v2232 = vadd.f32 0.0, %v2231
  %v2233 = vpop.f32.mrb[0].mxu0
  %v2234 = vpop.f32.mrb[0].mxu0
  %v2235 = vadd.f32 0.0, %v2234
  %v2236 = vpop.f32.mrb[0].mxu0
  %2237 = vdwg.mxu0
  %v2238 = vadd.f32 %v1975, %v2176
  %v2239 = vadd.f32 %v1976, %v2179
  %v2240 = vadd.f32 %v1977, %v2184
  %v2241 = vadd.f32 %v1978, %v2187
  %v2242 = vadd.f32 %v1979, %v2192
  %v2243 = vadd.f32 %v1980, %v2195
  %v2244 = vadd.f32 %v1981, %v2200
  %v2245 = vadd.f32 %v1982, %v2203
  %v2246 = vadd.f32 %v1983, %v2208
  %v2247 = vadd.f32 %v1984, %v2211
  %v2248 = vadd.f32 %v1985, %v2216
  %v2249 = vadd.f32 %v1986, %v2219
  %v2250 = vadd.f32 %v1987, %v2224
  %v2251 = vadd.f32 %v1988, %v2227
  %v2252 = vadd.f32 %v1989, %v2232
  %v2253 = vadd.f32 %v1990, %v2235
  %s2254 = scalar_lea.vmem %s5, 768
  %v2255 = vld [vmem:[%s2254] sm:$0xff]
  %v2256 = vld [vmem:[%s2254 + $0x8] sm:$0xff]
  %v2257 = vld [vmem:[%s2254 + $0x10] sm:$0xff]
  %v2258 = vld [vmem:[%s2254 + $0x18] sm:$0xff]
  %v2259 = vld [vmem:[%s2254 + $0x20] sm:$0xff]
  %v2260 = vld [vmem:[%s2254 + $0x28] sm:$0xff]
  %v2261 = vld [vmem:[%s2254 + $0x30] sm:$0xff]
  %v2262 = vld [vmem:[%s2254 + $0x38] sm:$0xff]
  %v2263 = vld [vmem:[%s2254 + $0x40] sm:$0xff]
  %v2264 = vld [vmem:[%s2254 + $0x48] sm:$0xff]
  %v2265 = vld [vmem:[%s2254 + $0x50] sm:$0xff]
  %v2266 = vld [vmem:[%s2254 + $0x58] sm:$0xff]
  %v2267 = vld [vmem:[%s2254 + $0x60] sm:$0xff]
  %v2268 = vld [vmem:[%s2254 + $0x68] sm:$0xff]
  %v2269 = vld [vmem:[%s2254 + $0x70] sm:$0xff]
  %v2270 = vld [vmem:[%s2254 + $0x78] sm:$0xff]
  %2272 = vset.pattern.permute.xlu0 0
  %2273 = vperm.xlu0 %2272, %v2255
  %v2274 = vpop.permute.xlu0 %2273
  %2277 = vset.pattern.permute.xlu0 0
  %2278 = vperm.xlu0 %2277, %v2256
  %v2279 = vpop.permute.xlu0 %2278
  %2282 = vset.pattern.permute.xlu0 0
  %2283 = vperm.xlu0 %2282, %v2257
  %v2284 = vpop.permute.xlu0 %2283
  %2287 = vset.pattern.permute.xlu0 0
  %2288 = vperm.xlu0 %2287, %v2258
  %v2289 = vpop.permute.xlu0 %2288
  %2292 = vset.pattern.permute.xlu0 0
  %2293 = vperm.xlu0 %2292, %v2259
  %v2294 = vpop.permute.xlu0 %2293
  %2297 = vset.pattern.permute.xlu0 0
  %2298 = vperm.xlu0 %2297, %v2260
  %v2299 = vpop.permute.xlu0 %2298
  %2302 = vset.pattern.permute.xlu0 0
  %2303 = vperm.xlu0 %2302, %v2261
  %v2304 = vpop.permute.xlu0 %2303
  %2307 = vset.pattern.permute.xlu0 0
  %2308 = vperm.xlu0 %2307, %v2262
  %v2309 = vpop.permute.xlu0 %2308
  %2312 = vset.pattern.permute.xlu0 0
  %2313 = vperm.xlu0 %2312, %v2263
  %v2314 = vpop.permute.xlu0 %2313
  %2317 = vset.pattern.permute.xlu0 0
  %2318 = vperm.xlu0 %2317, %v2264
  %v2319 = vpop.permute.xlu0 %2318
  %2322 = vset.pattern.permute.xlu0 0
  %2323 = vperm.xlu0 %2322, %v2265
  %v2324 = vpop.permute.xlu0 %2323
  %2327 = vset.pattern.permute.xlu0 0
  %2328 = vperm.xlu0 %2327, %v2266
  %v2329 = vpop.permute.xlu0 %2328
  %2332 = vset.pattern.permute.xlu0 0
  %2333 = vperm.xlu0 %2332, %v2267
  %v2334 = vpop.permute.xlu0 %2333
  %2337 = vset.pattern.permute.xlu0 0
  %2338 = vperm.xlu0 %2337, %v2268
  %v2339 = vpop.permute.xlu0 %2338
  %2342 = vset.pattern.permute.xlu0 0
  %2343 = vperm.xlu0 %2342, %v2269
  %v2344 = vpop.permute.xlu0 %2343
  %2347 = vset.pattern.permute.xlu0 0
  %2348 = vperm.xlu0 %2347, %v2270
  %v2349 = vpop.permute.xlu0 %2348
  %v2351 = vmul.f32 %v675, %v2274
  %v2352 = vmul.f32 %v674, %v2279
  %v2353 = vmul.f32 %v673, %v2284
  %v2354 = vmul.f32 %v672, %v2289
  %v2355 = vmul.f32 %v671, %v2294
  %v2356 = vmul.f32 %v670, %v2299
  %v2357 = vmul.f32 %v669, %v2304
  %v2358 = vmul.f32 %v668, %v2309
  %v2359 = vmul.f32 %v667, %v2314
  %v2360 = vmul.f32 %v666, %v2319
  %v2361 = vmul.f32 %v665, %v2324
  %v2362 = vmul.f32 %v664, %v2329
  %v2363 = vmul.f32 %v663, %v2334
  %v2364 = vmul.f32 %v662, %v2339
  %v2365 = vmul.f32 %v661, %v2344
  %v2366 = vmul.f32 %v676, %v2349
  %v2367 = vpack.c.bf16 %v2352, %v2351
  %v2368 = vpack.c.bf16 %v2354, %v2353
  %v2369 = vpack.c.bf16 %v2356, %v2355
  %v2370 = vpack.c.bf16 %v2358, %v2357
  %v2371 = vpack.c.bf16 %v2360, %v2359
  %v2372 = vpack.c.bf16 %v2362, %v2361
  %v2373 = vpack.c.bf16 %v2364, %v2363
  %v2374 = vpack.c.bf16 %v2366, %v2365
  %s2375 = scalar_lea.vmem %s2, 12
  %v2376 = vld [vmem:[%s2375] sm:$0x3]
  %v2378 = vsel %vm105, %v2367, 0
  %v2381 = vsel %vm105, %v2368, 0
  %v2384 = vsel %vm105, %v2369, 0
  %v2387 = vsel %vm105, %v2370, 0
  %v2390 = vsel %vm105, %v2371, 0
  %v2393 = vsel %vm105, %v2372, 0
  %v2396 = vsel %vm105, %v2373, 0
  %v2399 = vsel %vm105, %v2374, 0
  %v2402 = vsel %vm130, %v2376, 0
  %2404 = vmatprep.subr.bf16.mxu0 0
  %2405 = vmatpush1.bf16.msra.mxu0 %v2402
  %2406 = vmatprep.subr.bf16.mxu0 0
  %2407 = vmatpush1.bf16.msra.mxu0 0
  %2408 = vmatprep.subr.bf16.mxu0 0
  %2409 = vmatpush1.bf16.msra.mxu0 0
  %2410 = vmatprep.subr.bf16.mxu0 0
  %2411 = vmatpush1.bf16.msra.mxu0 0
  %2412 = vmatprep.subr.bf16.mxu0 0
  %2413 = vmatpush1.bf16.msra.mxu0 0
  %2414 = vmatprep.subr.bf16.mxu0 0
  %2415 = vmatpush1.bf16.msra.mxu0 0
  %2416 = vmatprep.subr.bf16.mxu0 0
  %2417 = vmatpush1.bf16.msra.mxu0 0
  %2418 = vmatprep.subr.bf16.mxu0 0
  %2419 = vmatpush1.bf16.msra.mxu0 0
  %2420 = vmatprep.subr.bf16.mxu0 0
  %2421 = vmatpush1.bf16.msra.mxu0 0
  %2422 = vmatprep.subr.bf16.mxu0 0
  %2423 = vmatpush1.bf16.msra.mxu0 0
  %2424 = vmatprep.subr.bf16.mxu0 0
  %2425 = vmatpush1.bf16.msra.mxu0 0
  %2426 = vmatprep.subr.bf16.mxu0 0
  %2427 = vmatpush1.bf16.msra.mxu0 0
  %2428 = vmatprep.subr.bf16.mxu0 0
  %2429 = vmatpush1.bf16.msra.mxu0 0
  %2430 = vmatprep.subr.bf16.mxu0 0
  %2431 = vmatpush1.bf16.msra.mxu0 0
  %2432 = vmatprep.subr.bf16.mxu0 0
  %2433 = vmatpush1.bf16.msra.mxu0 0
  %2434 = vmatprep.subr.bf16.mxu0 0
  %2435 = vmatpush1.bf16.msra.mxu0 0
  %2436 = vmatprep.mubr.bf16.mxu0 0
  %2437 = vmatmul.mubr.bf16.gmra.mrb[0].mxu0 %v2378
  %v2438 = vpop.f32.mrb[0].mxu0
  %v2439 = vadd.f32 0.0, %v2438
  %v2440 = vpop.f32.mrb[0].mxu0
  %v2441 = vpop.f32.mrb[0].mxu0
  %v2442 = vadd.f32 0.0, %v2441
  %v2443 = vpop.f32.mrb[0].mxu0
  %2444 = vmatprep.mubr.bf16.mxu0 0
  %2445 = vmatmul.mubr.bf16.gmra.mrb[0].mxu0 %v2381
  %v2446 = vpop.f32.mrb[0].mxu0
  %v2447 = vadd.f32 0.0, %v2446
  %v2448 = vpop.f32.mrb[0].mxu0
  %v2449 = vpop.f32.mrb[0].mxu0
  %v2450 = vadd.f32 0.0, %v2449
  %v2451 = vpop.f32.mrb[0].mxu0
  %2452 = vmatprep.mubr.bf16.mxu0 0
  %2453 = vmatmul.mubr.bf16.gmra.mrb[0].mxu0 %v2384
  %v2454 = vpop.f32.mrb[0].mxu0
  %v2455 = vadd.f32 0.0, %v2454
  %v2456 = vpop.f32.mrb[0].mxu0
  %v2457 = vpop.f32.mrb[0].mxu0
  %v2458 = vadd.f32 0.0, %v2457
  %v2459 = vpop.f32.mrb[0].mxu0
  %2460 = vmatprep.mubr.bf16.mxu0 0
  %2461 = vmatmul.mubr.bf16.gmra.mrb[0].mxu0 %v2387
  %v2462 = vpop.f32.mrb[0].mxu0
  %v2463 = vadd.f32 0.0, %v2462
  %v2464 = vpop.f32.mrb[0].mxu0
  %v2465 = vpop.f32.mrb[0].mxu0
  %v2466 = vadd.f32 0.0, %v2465
  %v2467 = vpop.f32.mrb[0].mxu0
  %2468 = vmatprep.mubr.bf16.mxu0 0
  %2469 = vmatmul.mubr.bf16.gmra.mrb[0].mxu0 %v2390
  %v2470 = vpop.f32.mrb[0].mxu0
  %v2471 = vadd.f32 0.0, %v2470
  %v2472 = vpop.f32.mrb[0].mxu0
  %v2473 = vpop.f32.mrb[0].mxu0
  %v2474 = vadd.f32 0.0, %v2473
  %v2475 = vpop.f32.mrb[0].mxu0
  %2476 = vmatprep.mubr.bf16.mxu0 0
  %2477 = vmatmul.mubr.bf16.gmra.mrb[0].mxu0 %v2393
  %v2478 = vpop.f32.mrb[0].mxu0
  %v2479 = vadd.f32 0.0, %v2478
  %v2480 = vpop.f32.mrb[0].mxu0
  %v2481 = vpop.f32.mrb[0].mxu0
  %v2482 = vadd.f32 0.0, %v2481
  %v2483 = vpop.f32.mrb[0].mxu0
  %2484 = vmatprep.mubr.bf16.mxu0 0
  %2485 = vmatmul.mubr.bf16.gmra.mrb[0].mxu0 %v2396
  %v2486 = vpop.f32.mrb[0].mxu0
  %v2487 = vadd.f32 0.0, %v2486
  %v2488 = vpop.f32.mrb[0].mxu0
  %v2489 = vpop.f32.mrb[0].mxu0
  %v2490 = vadd.f32 0.0, %v2489
  %v2491 = vpop.f32.mrb[0].mxu0
  %2492 = vmatprep.mubr.bf16.mxu0 0
  %2493 = vmatmul.mubr.bf16.gmra.mrb[0].mxu0 %v2399
  %v2494 = vpop.f32.mrb[0].mxu0
  %v2495 = vadd.f32 0.0, %v2494
  %v2496 = vpop.f32.mrb[0].mxu0
  %v2497 = vpop.f32.mrb[0].mxu0
  %v2498 = vadd.f32 0.0, %v2497
  %v2499 = vpop.f32.mrb[0].mxu0
  %2500 = vdwg.mxu0
  %v2501 = vadd.f32 %v2238, %v2439
  %v2502 = vadd.f32 %v2239, %v2442
  %v2503 = vadd.f32 %v2240, %v2447
  %v2504 = vadd.f32 %v2241, %v2450
  %v2505 = vadd.f32 %v2242, %v2455
  %v2506 = vadd.f32 %v2243, %v2458
  %v2507 = vadd.f32 %v2244, %v2463
  %v2508 = vadd.f32 %v2245, %v2466
  %v2509 = vadd.f32 %v2246, %v2471
  %v2510 = vadd.f32 %v2247, %v2474
  %v2511 = vadd.f32 %v2248, %v2479
  %v2512 = vadd.f32 %v2249, %v2482
  %v2513 = vadd.f32 %v2250, %v2487
  %v2514 = vadd.f32 %v2251, %v2490
  %v2515 = vadd.f32 %v2252, %v2495
  %v2516 = vadd.f32 %v2253, %v2498
  %s2517 = scalar_lea.vmem %s5, 896
  %v2518 = vld [vmem:[%s2517] sm:$0xff]
  %v2519 = vld [vmem:[%s2517 + $0x8] sm:$0xff]
  %v2520 = vld [vmem:[%s2517 + $0x10] sm:$0xff]
  %v2521 = vld [vmem:[%s2517 + $0x18] sm:$0xff]
  %v2522 = vld [vmem:[%s2517 + $0x20] sm:$0xff]
  %v2523 = vld [vmem:[%s2517 + $0x28] sm:$0xff]
  %v2524 = vld [vmem:[%s2517 + $0x30] sm:$0xff]
  %v2525 = vld [vmem:[%s2517 + $0x38] sm:$0xff]
  %v2526 = vld [vmem:[%s2517 + $0x40] sm:$0xff]
  %v2527 = vld [vmem:[%s2517 + $0x48] sm:$0xff]
  %v2528 = vld [vmem:[%s2517 + $0x50] sm:$0xff]
  %v2529 = vld [vmem:[%s2517 + $0x58] sm:$0xff]
  %v2530 = vld [vmem:[%s2517 + $0x60] sm:$0xff]
  %v2531 = vld [vmem:[%s2517 + $0x68] sm:$0xff]
  %v2532 = vld [vmem:[%s2517 + $0x70] sm:$0xff]
  %v2533 = vld [vmem:[%s2517 + $0x78] sm:$0xff]
  %2535 = vset.pattern.permute.xlu0 0
  %2536 = vperm.xlu0 %2535, %v2518
  %v2537 = vpop.permute.xlu0 %2536
  %2540 = vset.pattern.permute.xlu0 0
  %2541 = vperm.xlu0 %2540, %v2519
  %v2542 = vpop.permute.xlu0 %2541
  %2545 = vset.pattern.permute.xlu0 0
  %2546 = vperm.xlu0 %2545, %v2520
  %v2547 = vpop.permute.xlu0 %2546
  %2550 = vset.pattern.permute.xlu0 0
  %2551 = vperm.xlu0 %2550, %v2521
  %v2552 = vpop.permute.xlu0 %2551
  %2555 = vset.pattern.permute.xlu0 0
  %2556 = vperm.xlu0 %2555, %v2522
  %v2557 = vpop.permute.xlu0 %2556
  %2560 = vset.pattern.permute.xlu0 0
  %2561 = vperm.xlu0 %2560, %v2523
  %v2562 = vpop.permute.xlu0 %2561
  %2565 = vset.pattern.permute.xlu0 0
  %2566 = vperm.xlu0 %2565, %v2524
  %v2567 = vpop.permute.xlu0 %2566
  %2570 = vset.pattern.permute.xlu0 0
  %2571 = vperm.xlu0 %2570, %v2525
  %v2572 = vpop.permute.xlu0 %2571
  %2575 = vset.pattern.permute.xlu0 0
  %2576 = vperm.xlu0 %2575, %v2526
  %v2577 = vpop.permute.xlu0 %2576
  %2580 = vset.pattern.permute.xlu0 0
  %2581 = vperm.xlu0 %2580, %v2527
  %v2582 = vpop.permute.xlu0 %2581
  %2585 = vset.pattern.permute.xlu0 0
  %2586 = vperm.xlu0 %2585, %v2528
  %v2587 = vpop.permute.xlu0 %2586
  %2590 = vset.pattern.permute.xlu0 0
  %2591 = vperm.xlu0 %2590, %v2529
  %v2592 = vpop.permute.xlu0 %2591
  %2595 = vset.pattern.permute.xlu0 0
  %2596 = vperm.xlu0 %2595, %v2530
  %v2597 = vpop.permute.xlu0 %2596
  %2600 = vset.pattern.permute.xlu0 0
  %2601 = vperm.xlu0 %2600, %v2531
  %v2602 = vpop.permute.xlu0 %2601
  %2605 = vset.pattern.permute.xlu0 0
  %2606 = vperm.xlu0 %2605, %v2532
  %v2607 = vpop.permute.xlu0 %2606
  %2610 = vset.pattern.permute.xlu0 0
  %2611 = vperm.xlu0 %2610, %v2533
  %v2612 = vpop.permute.xlu0 %2611
  %v2614 = vmul.f32 %v627, %v2537
  %v2615 = vmul.f32 %v628, %v2542
  %v2616 = vmul.f32 %v629, %v2547
  %v2617 = vmul.f32 %v630, %v2552
  %v2618 = vmul.f32 %v631, %v2557
  %v2619 = vmul.f32 %v632, %v2562
  %v2620 = vmul.f32 %v633, %v2567
  %v2621 = vmul.f32 %v634, %v2572
  %v2622 = vmul.f32 %v635, %v2577
  %v2623 = vmul.f32 %v636, %v2582
  %v2624 = vmul.f32 %v637, %v2587
  %v2625 = vmul.f32 %v638, %v2592
  %v2626 = vmul.f32 %v639, %v2597
  %v2627 = vmul.f32 %v640, %v2602
  %v2628 = vmul.f32 %v641, %v2607
  %v2629 = vmul.f32 %v626, %v2612
  %v2630 = vpack.c.bf16 %v2615, %v2614
  %v2631 = vpack.c.bf16 %v2617, %v2616
  %v2632 = vpack.c.bf16 %v2619, %v2618
  %v2633 = vpack.c.bf16 %v2621, %v2620
  %v2634 = vpack.c.bf16 %v2623, %v2622
  %v2635 = vpack.c.bf16 %v2625, %v2624
  %v2636 = vpack.c.bf16 %v2627, %v2626
  %v2637 = vpack.c.bf16 %v2629, %v2628
  %s2638 = scalar_lea.vmem %s2, 14
  %v2639 = vld [vmem:[%s2638] sm:$0x3]
  %v2641 = vsel %vm105, %v2630, 0
  %v2644 = vsel %vm105, %v2631, 0
  %v2647 = vsel %vm105, %v2632, 0
  %v2650 = vsel %vm105, %v2633, 0
  %v2653 = vsel %vm105, %v2634, 0
  %v2656 = vsel %vm105, %v2635, 0
  %v2659 = vsel %vm105, %v2636, 0
  %v2662 = vsel %vm105, %v2637, 0
  %v2665 = vsel %vm130, %v2639, 0
  %2667 = vmatprep.subr.bf16.mxu0 0
  %2668 = vmatpush1.bf16.msra.mxu0 %v2665
  %2669 = vmatprep.subr.bf16.mxu0 0
  %2670 = vmatpush1.bf16.msra.mxu0 0
  %2671 = vmatprep.subr.bf16.mxu0 0
  %2672 = vmatpush1.bf16.msra.mxu0 0
  %2673 = vmatprep.subr.bf16.mxu0 0
  %2674 = vmatpush1.bf16.msra.mxu0 0
  %2675 = vmatprep.subr.bf16.mxu0 0
  %2676 = vmatpush1.bf16.msra.mxu0 0
  %2677 = vmatprep.subr.bf16.mxu0 0
  %2678 = vmatpush1.bf16.msra.mxu0 0
  %2679 = vmatprep.subr.bf16.mxu0 0
  %2680 = vmatpush1.bf16.msra.mxu0 0
  %2681 = vmatprep.subr.bf16.mxu0 0
  %2682 = vmatpush1.bf16.msra.mxu0 0
  %2683 = vmatprep.subr.bf16.mxu0 0
  %2684 = vmatpush1.bf16.msra.mxu0 0
  %2685 = vmatprep.subr.bf16.mxu0 0
  %2686 = vmatpush1.bf16.msra.mxu0 0
  %2687 = vmatprep.subr.bf16.mxu0 0
  %2688 = vmatpush1.bf16.msra.mxu0 0
  %2689 = vmatprep.subr.bf16.mxu0 0
  %2690 = vmatpush1.bf16.msra.mxu0 0
  %2691 = vmatprep.subr.bf16.mxu0 0
  %2692 = vmatpush1.bf16.msra.mxu0 0
  %2693 = vmatprep.subr.bf16.mxu0 0
  %2694 = vmatpush1.bf16.msra.mxu0 0
  %2695 = vmatprep.subr.bf16.mxu0 0
  %2696 = vmatpush1.bf16.msra.mxu0 0
  %2697 = vmatprep.subr.bf16.mxu0 0
  %2698 = vmatpush1.bf16.msra.mxu0 0
  %2699 = vmatprep.mubr.bf16.mxu0 0
  %2700 = vmatmul.mubr.bf16.gmra.mrb[0].mxu0 %v2641
  %v2701 = vpop.f32.mrb[0].mxu0
  %v2702 = vadd.f32 0.0, %v2701
  %v2703 = vpop.f32.mrb[0].mxu0
  %v2704 = vpop.f32.mrb[0].mxu0
  %v2705 = vadd.f32 0.0, %v2704
  %v2706 = vpop.f32.mrb[0].mxu0
  %2707 = vmatprep.mubr.bf16.mxu0 0
  %2708 = vmatmul.mubr.bf16.gmra.mrb[0].mxu0 %v2644
  %v2709 = vpop.f32.mrb[0].mxu0
  %v2710 = vadd.f32 0.0, %v2709
  %v2711 = vpop.f32.mrb[0].mxu0
  %v2712 = vpop.f32.mrb[0].mxu0
  %v2713 = vadd.f32 0.0, %v2712
  %v2714 = vpop.f32.mrb[0].mxu0
  %2715 = vmatprep.mubr.bf16.mxu0 0
  %2716 = vmatmul.mubr.bf16.gmra.mrb[0].mxu0 %v2647
  %v2717 = vpop.f32.mrb[0].mxu0
  %v2718 = vadd.f32 0.0, %v2717
  %v2719 = vpop.f32.mrb[0].mxu0
  %v2720 = vpop.f32.mrb[0].mxu0
  %v2721 = vadd.f32 0.0, %v2720
  %v2722 = vpop.f32.mrb[0].mxu0
  %2723 = vmatprep.mubr.bf16.mxu0 0
  %2724 = vmatmul.mubr.bf16.gmra.mrb[0].mxu0 %v2650
  %v2725 = vpop.f32.mrb[0].mxu0
  %v2726 = vadd.f32 0.0, %v2725
  %v2727 = vpop.f32.mrb[0].mxu0
  %v2728 = vpop.f32.mrb[0].mxu0
  %v2729 = vadd.f32 0.0, %v2728
  %v2730 = vpop.f32.mrb[0].mxu0
  %2731 = vmatprep.mubr.bf16.mxu0 0
  %2732 = vmatmul.mubr.bf16.gmra.mrb[0].mxu0 %v2653
  %v2733 = vpop.f32.mrb[0].mxu0
  %v2734 = vadd.f32 0.0, %v2733
  %v2735 = vpop.f32.mrb[0].mxu0
  %v2736 = vpop.f32.mrb[0].mxu0
  %v2737 = vadd.f32 0.0, %v2736
  %v2738 = vpop.f32.mrb[0].mxu0
  %2739 = vmatprep.mubr.bf16.mxu0 0
  %2740 = vmatmul.mubr.bf16.gmra.mrb[0].mxu0 %v2656
  %v2741 = vpop.f32.mrb[0].mxu0
  %v2742 = vadd.f32 0.0, %v2741
  %v2743 = vpop.f32.mrb[0].mxu0
  %v2744 = vpop.f32.mrb[0].mxu0
  %v2745 = vadd.f32 0.0, %v2744
  %v2746 = vpop.f32.mrb[0].mxu0
  %2747 = vmatprep.mubr.bf16.mxu0 0
  %2748 = vmatmul.mubr.bf16.gmra.mrb[0].mxu0 %v2659
  %v2749 = vpop.f32.mrb[0].mxu0
  %v2750 = vadd.f32 0.0, %v2749
  %v2751 = vpop.f32.mrb[0].mxu0
  %v2752 = vpop.f32.mrb[0].mxu0
  %v2753 = vadd.f32 0.0, %v2752
  %v2754 = vpop.f32.mrb[0].mxu0
  %2755 = vmatprep.mubr.bf16.mxu0 0
  %2756 = vmatmul.mubr.bf16.gmra.mrb[0].mxu0 %v2662
  %v2757 = vpop.f32.mrb[0].mxu0
  %v2758 = vadd.f32 0.0, %v2757
  %v2759 = vpop.f32.mrb[0].mxu0
  %v2760 = vpop.f32.mrb[0].mxu0
  %v2761 = vadd.f32 0.0, %v2760
  %v2762 = vpop.f32.mrb[0].mxu0
  %2763 = vdwg.mxu0
  %v2764 = vadd.f32 %v2501, %v2702
  %v2765 = vadd.f32 %v2502, %v2705
  %v2766 = vadd.f32 %v2503, %v2710
  %v2767 = vadd.f32 %v2504, %v2713
  %v2768 = vadd.f32 %v2505, %v2718
  %v2769 = vadd.f32 %v2506, %v2721
  %v2770 = vadd.f32 %v2507, %v2726
  %v2771 = vadd.f32 %v2508, %v2729
  %v2772 = vadd.f32 %v2509, %v2734
  %v2773 = vadd.f32 %v2510, %v2737
  %v2774 = vadd.f32 %v2511, %v2742
  %v2775 = vadd.f32 %v2512, %v2745
  %v2776 = vadd.f32 %v2513, %v2750
  %v2777 = vadd.f32 %v2514, %v2753
  %v2778 = vadd.f32 %v2515, %v2758
  %v2779 = vadd.f32 %v2516, %v2761
  %s2780 = scalar_lea.vmem %s5, 1024
  %v2781 = vld [vmem:[%s2780] sm:$0xff]
  %v2782 = vld [vmem:[%s2780 + $0x8] sm:$0xff]
  %v2783 = vld [vmem:[%s2780 + $0x10] sm:$0xff]
  %v2784 = vld [vmem:[%s2780 + $0x18] sm:$0xff]
  %v2785 = vld [vmem:[%s2780 + $0x20] sm:$0xff]
  %v2786 = vld [vmem:[%s2780 + $0x28] sm:$0xff]
  %v2787 = vld [vmem:[%s2780 + $0x30] sm:$0xff]
  %v2788 = vld [vmem:[%s2780 + $0x38] sm:$0xff]
  %v2789 = vld [vmem:[%s2780 + $0x40] sm:$0xff]
  %v2790 = vld [vmem:[%s2780 + $0x48] sm:$0xff]
  %v2791 = vld [vmem:[%s2780 + $0x50] sm:$0xff]
  %v2792 = vld [vmem:[%s2780 + $0x58] sm:$0xff]
  %v2793 = vld [vmem:[%s2780 + $0x60] sm:$0xff]
  %v2794 = vld [vmem:[%s2780 + $0x68] sm:$0xff]
  %v2795 = vld [vmem:[%s2780 + $0x70] sm:$0xff]
  %v2796 = vld [vmem:[%s2780 + $0x78] sm:$0xff]
  %2798 = vset.pattern.permute.xlu0 0
  %2799 = vperm.xlu0 %2798, %v2781
  %v2800 = vpop.permute.xlu0 %2799
  %2803 = vset.pattern.permute.xlu0 0
  %2804 = vperm.xlu0 %2803, %v2782
  %v2805 = vpop.permute.xlu0 %2804
  %2808 = vset.pattern.permute.xlu0 0
  %2809 = vperm.xlu0 %2808, %v2783
  %v2810 = vpop.permute.xlu0 %2809
  %2813 = vset.pattern.permute.xlu0 0
  %2814 = vperm.xlu0 %2813, %v2784
  %v2815 = vpop.permute.xlu0 %2814
  %2818 = vset.pattern.permute.xlu0 0
  %2819 = vperm.xlu0 %2818, %v2785
  %v2820 = vpop.permute.xlu0 %2819
  %2823 = vset.pattern.permute.xlu0 0
  %2824 = vperm.xlu0 %2823, %v2786
  %v2825 = vpop.permute.xlu0 %2824
  %2828 = vset.pattern.permute.xlu0 0
  %2829 = vperm.xlu0 %2828, %v2787
  %v2830 = vpop.permute.xlu0 %2829
  %2833 = vset.pattern.permute.xlu0 0
  %2834 = vperm.xlu0 %2833, %v2788
  %v2835 = vpop.permute.xlu0 %2834
  %2838 = vset.pattern.permute.xlu0 0
  %2839 = vperm.xlu0 %2838, %v2789
  %v2840 = vpop.permute.xlu0 %2839
  %2843 = vset.pattern.permute.xlu0 0
  %2844 = vperm.xlu0 %2843, %v2790
  %v2845 = vpop.permute.xlu0 %2844
  %2848 = vset.pattern.permute.xlu0 0
  %2849 = vperm.xlu0 %2848, %v2791
  %v2850 = vpop.permute.xlu0 %2849
  %2853 = vset.pattern.permute.xlu0 0
  %2854 = vperm.xlu0 %2853, %v2792
  %v2855 = vpop.permute.xlu0 %2854
  %2858 = vset.pattern.permute.xlu0 0
  %2859 = vperm.xlu0 %2858, %v2793
  %v2860 = vpop.permute.xlu0 %2859
  %2863 = vset.pattern.permute.xlu0 0
  %2864 = vperm.xlu0 %2863, %v2794
  %v2865 = vpop.permute.xlu0 %2864
  %2868 = vset.pattern.permute.xlu0 0
  %2869 = vperm.xlu0 %2868, %v2795
  %v2870 = vpop.permute.xlu0 %2869
  %2873 = vset.pattern.permute.xlu0 0
  %2874 = vperm.xlu0 %2873, %v2796
  %v2875 = vpop.permute.xlu0 %2874
  %v2877 = vmul.f32 %v1199, %v2800
  %v2878 = vmul.f32 %v1198, %v2805
  %v2879 = vmul.f32 %v1197, %v2810
  %v2880 = vmul.f32 %v1196, %v2815
  %v2881 = vmul.f32 %v1195, %v2820
  %v2882 = vmul.f32 %v1194, %v2825
  %v2883 = vmul.f32 %v1193, %v2830
  %v2884 = vmul.f32 %v1192, %v2835
  %v2885 = vmul.f32 %v1191, %v2840
  %v2886 = vmul.f32 %v1190, %v2845
  %v2887 = vmul.f32 %v1189, %v2850
  %v2888 = vmul.f32 %v1188, %v2855
  %v2889 = vmul.f32 %v1187, %v2860
  %v2890 = vmul.f32 %v1186, %v2865
  %v2891 = vmul.f32 %v1201, %v2870
  %v2892 = vmul.f32 %v1200, %v2875
  %v2893 = vpack.c.bf16 %v2878, %v2877
  %v2894 = vpack.c.bf16 %v2880, %v2879
  %v2895 = vpack.c.bf16 %v2882, %v2881
  %v2896 = vpack.c.bf16 %v2884, %v2883
  %v2897 = vpack.c.bf16 %v2886, %v2885
  %v2898 = vpack.c.bf16 %v2888, %v2887
  %v2899 = vpack.c.bf16 %v2890, %v2889
  %v2900 = vpack.c.bf16 %v2892, %v2891
  %s2901 = scalar_lea.vmem %s2, 16
  %v2902 = vld [vmem:[%s2901] sm:$0x3]
  %v2904 = vsel %vm105, %v2893, 0
  %v2907 = vsel %vm105, %v2894, 0
  %v2910 = vsel %vm105, %v2895, 0
  %v2913 = vsel %vm105, %v2896, 0
  %v2916 = vsel %vm105, %v2897, 0
  %v2919 = vsel %vm105, %v2898, 0
  %v2922 = vsel %vm105, %v2899, 0
  %v2925 = vsel %vm105, %v2900, 0
  %v2928 = vsel %vm130, %v2902, 0
  %2930 = vmatprep.subr.bf16.mxu0 0
  %2931 = vmatpush1.bf16.msra.mxu0 %v2928
  %2932 = vmatprep.subr.bf16.mxu0 0
  %2933 = vmatpush1.bf16.msra.mxu0 0
  %2934 = vmatprep.subr.bf16.mxu0 0
  %2935 = vmatpush1.bf16.msra.mxu0 0
  %2936 = vmatprep.subr.bf16.mxu0 0
  %2937 = vmatpush1.bf16.msra.mxu0 0
  %2938 = vmatprep.subr.bf16.mxu0 0
  %2939 = vmatpush1.bf16.msra.mxu0 0
  %2940 = vmatprep.subr.bf16.mxu0 0
  %2941 = vmatpush1.bf16.msra.mxu0 0
  %2942 = vmatprep.subr.bf16.mxu0 0
  %2943 = vmatpush1.bf16.msra.mxu0 0
  %2944 = vmatprep.subr.bf16.mxu0 0
  %2945 = vmatpush1.bf16.msra.mxu0 0
  %2946 = vmatprep.subr.bf16.mxu0 0
  %2947 = vmatpush1.bf16.msra.mxu0 0
  %2948 = vmatprep.subr.bf16.mxu0 0
  %2949 = vmatpush1.bf16.msra.mxu0 0
  %2950 = vmatprep.subr.bf16.mxu0 0
  %2951 = vmatpush1.bf16.msra.mxu0 0
  %2952 = vmatprep.subr.bf16.mxu0 0
  %2953 = vmatpush1.bf16.msra.mxu0 0
  %2954 = vmatprep.subr.bf16.mxu0 0
  %2955 = vmatpush1.bf16.msra.mxu0 0
  %2956 = vmatprep.subr.bf16.mxu0 0
  %2957 = vmatpush1.bf16.msra.mxu0 0
  %2958 = vmatprep.subr.bf16.mxu0 0
  %2959 = vmatpush1.bf16.msra.mxu0 0
  %2960 = vmatprep.subr.bf16.mxu0 0
  %2961 = vmatpush1.bf16.msra.mxu0 0
  %2962 = vmatprep.mubr.bf16.mxu0 0
  %2963 = vmatmul.mubr.bf16.gmra.mrb[0].mxu0 %v2904
  %v2964 = vpop.f32.mrb[0].mxu0
  %v2965 = vadd.f32 0.0, %v2964
  %v2966 = vpop.f32.mrb[0].mxu0
  %v2967 = vpop.f32.mrb[0].mxu0
  %v2968 = vadd.f32 0.0, %v2967
  %v2969 = vpop.f32.mrb[0].mxu0
  %2970 = vmatprep.mubr.bf16.mxu0 0
  %2971 = vmatmul.mubr.bf16.gmra.mrb[0].mxu0 %v2907
  %v2972 = vpop.f32.mrb[0].mxu0
  %v2973 = vadd.f32 0.0, %v2972
  %v2974 = vpop.f32.mrb[0].mxu0
  %v2975 = vpop.f32.mrb[0].mxu0
  %v2976 = vadd.f32 0.0, %v2975
  %v2977 = vpop.f32.mrb[0].mxu0
  %2978 = vmatprep.mubr.bf16.mxu0 0
  %2979 = vmatmul.mubr.bf16.gmra.mrb[0].mxu0 %v2910
  %v2980 = vpop.f32.mrb[0].mxu0
  %v2981 = vadd.f32 0.0, %v2980
  %v2982 = vpop.f32.mrb[0].mxu0
  %v2983 = vpop.f32.mrb[0].mxu0
  %v2984 = vadd.f32 0.0, %v2983
  %v2985 = vpop.f32.mrb[0].mxu0
  %2986 = vmatprep.mubr.bf16.mxu0 0
  %2987 = vmatmul.mubr.bf16.gmra.mrb[0].mxu0 %v2913
  %v2988 = vpop.f32.mrb[0].mxu0
  %v2989 = vadd.f32 0.0, %v2988
  %v2990 = vpop.f32.mrb[0].mxu0
  %v2991 = vpop.f32.mrb[0].mxu0
  %v2992 = vadd.f32 0.0, %v2991
  %v2993 = vpop.f32.mrb[0].mxu0
  %2994 = vmatprep.mubr.bf16.mxu0 0
  %2995 = vmatmul.mubr.bf16.gmra.mrb[0].mxu0 %v2916
  %v2996 = vpop.f32.mrb[0].mxu0
  %v2997 = vadd.f32 0.0, %v2996
  %v2998 = vpop.f32.mrb[0].mxu0
  %v2999 = vpop.f32.mrb[0].mxu0
  %v3000 = vadd.f32 0.0, %v2999
  %v3001 = vpop.f32.mrb[0].mxu0
  %3002 = vmatprep.mubr.bf16.mxu0 0
  %3003 = vmatmul.mubr.bf16.gmra.mrb[0].mxu0 %v2919
  %v3004 = vpop.f32.mrb[0].mxu0
  %v3005 = vadd.f32 0.0, %v3004
  %v3006 = vpop.f32.mrb[0].mxu0
  %v3007 = vpop.f32.mrb[0].mxu0
  %v3008 = vadd.f32 0.0, %v3007
  %v3009 = vpop.f32.mrb[0].mxu0
  %3010 = vmatprep.mubr.bf16.mxu0 0
  %3011 = vmatmul.mubr.bf16.gmra.mrb[0].mxu0 %v2922
  %v3012 = vpop.f32.mrb[0].mxu0
  %v3013 = vadd.f32 0.0, %v3012
  %v3014 = vpop.f32.mrb[0].mxu0
  %v3015 = vpop.f32.mrb[0].mxu0
  %v3016 = vadd.f32 0.0, %v3015
  %v3017 = vpop.f32.mrb[0].mxu0
  %3018 = vmatprep.mubr.bf16.mxu0 0
  %3019 = vmatmul.mubr.bf16.gmra.mrb[0].mxu0 %v2925
  %v3020 = vpop.f32.mrb[0].mxu0
  %v3021 = vadd.f32 0.0, %v3020
  %v3022 = vpop.f32.mrb[0].mxu0
  %v3023 = vpop.f32.mrb[0].mxu0
  %v3024 = vadd.f32 0.0, %v3023
  %v3025 = vpop.f32.mrb[0].mxu0
  %3026 = vdwg.mxu0
  %v3027 = vadd.f32 %v2764, %v2965
  %v3028 = vadd.f32 %v2765, %v2968
  %v3029 = vadd.f32 %v2766, %v2973
  %v3030 = vadd.f32 %v2767, %v2976
  %v3031 = vadd.f32 %v2768, %v2981
  %v3032 = vadd.f32 %v2769, %v2984
  %v3033 = vadd.f32 %v2770, %v2989
  %v3034 = vadd.f32 %v2771, %v2992
  %v3035 = vadd.f32 %v2772, %v2997
  %v3036 = vadd.f32 %v2773, %v3000
  %v3037 = vadd.f32 %v2774, %v3005
  %v3038 = vadd.f32 %v2775, %v3008
  %v3039 = vadd.f32 %v2776, %v3013
  %v3040 = vadd.f32 %v2777, %v3016
  %v3041 = vadd.f32 %v2778, %v3021
  %v3042 = vadd.f32 %v2779, %v3024
  %v3043 = vsel %vm105, %v3027, 0.0
  %v3044 = vsel %vm105, %v3028, 0.0
  %v3045 = vadd.f32 %v3043, %v3044
  %v3046 = vsel %vm105, %v3029, 0.0
  %v3047 = vadd.f32 %v3045, %v3046
  %v3048 = vsel %vm105, %v3030, 0.0
  %v3049 = vadd.f32 %v3047, %v3048
  %v3050 = vsel %vm105, %v3031, 0.0
  %v3051 = vadd.f32 %v3049, %v3050
  %v3052 = vsel %vm105, %v3032, 0.0
  %v3053 = vadd.f32 %v3051, %v3052
  %v3054 = vsel %vm105, %v3033, 0.0
  %v3055 = vadd.f32 %v3053, %v3054
  %v3056 = vsel %vm105, %v3034, 0.0
  %v3057 = vadd.f32 %v3055, %v3056
  %v3058 = vsel %vm105, %v3035, 0.0
  %v3059 = vadd.f32 %v3057, %v3058
  %v3060 = vsel %vm105, %v3036, 0.0
  %v3061 = vadd.f32 %v3059, %v3060
  %v3062 = vsel %vm105, %v3037, 0.0
  %v3063 = vadd.f32 %v3061, %v3062
  %v3064 = vsel %vm105, %v3038, 0.0
  %v3065 = vadd.f32 %v3063, %v3064
  %v3066 = vsel %vm105, %v3039, 0.0
  %v3067 = vadd.f32 %v3065, %v3066
  %v3068 = vsel %vm105, %v3040, 0.0
  %v3069 = vadd.f32 %v3067, %v3068
  %v3070 = vsel %vm105, %v3041, 0.0
  %v3071 = vadd.f32 %v3069, %v3070
  %v3072 = vsel %vm105, %v3042, 0.0
  %v3073 = vadd.f32 %v3071, %v3072
  %v3074 = vrot.slane %v3073, 4
  %v3075 = vadd.f32 %v3073, %v3074
  %v3076 = vrot.slane %v3075, 2
  %v3077 = vadd.f32 %v3075, %v3076
  %v3078 = vrot.slane %v3077, 1
  %v3079 = vadd.f32 %v3077, %v3078
  %v3080 = vmul.f32 %v3079, %v269
  %v3081 = vmul.f32 %v3027, %v3027
  %v3082 = vmul.f32 %v3028, %v3028
  %v3083 = vmul.f32 %v3029, %v3029
  %v3084 = vmul.f32 %v3030, %v3030
  %v3085 = vmul.f32 %v3031, %v3031
  %v3086 = vmul.f32 %v3032, %v3032
  %v3087 = vmul.f32 %v3033, %v3033
  %v3088 = vmul.f32 %v3034, %v3034
  %v3089 = vmul.f32 %v3035, %v3035
  %v3090 = vmul.f32 %v3036, %v3036
  %v3091 = vmul.f32 %v3037, %v3037
  %v3092 = vmul.f32 %v3038, %v3038
  %v3093 = vmul.f32 %v3039, %v3039
  %v3094 = vmul.f32 %v3040, %v3040
  %v3095 = vmul.f32 %v3041, %v3041
  %v3096 = vmul.f32 %v3042, %v3042
  %v3097 = vsel %vm105, %v3081, 0.0
  %v3098 = vsel %vm105, %v3082, 0.0
  %v3099 = vadd.f32 %v3097, %v3098
  %v3100 = vsel %vm105, %v3083, 0.0
  %v3101 = vadd.f32 %v3099, %v3100
  %v3102 = vsel %vm105, %v3084, 0.0
  %v3103 = vadd.f32 %v3101, %v3102
  %v3104 = vsel %vm105, %v3085, 0.0
  %v3105 = vadd.f32 %v3103, %v3104
  %v3106 = vsel %vm105, %v3086, 0.0
  %v3107 = vadd.f32 %v3105, %v3106
  %v3108 = vsel %vm105, %v3087, 0.0
  %v3109 = vadd.f32 %v3107, %v3108
  %v3110 = vsel %vm105, %v3088, 0.0
  %v3111 = vadd.f32 %v3109, %v3110
  %v3112 = vsel %vm105, %v3089, 0.0
  %v3113 = vadd.f32 %v3111, %v3112
  %v3114 = vsel %vm105, %v3090, 0.0
  %v3115 = vadd.f32 %v3113, %v3114
  %v3116 = vsel %vm105, %v3091, 0.0
  %v3117 = vadd.f32 %v3115, %v3116
  %v3118 = vsel %vm105, %v3092, 0.0
  %v3119 = vadd.f32 %v3117, %v3118
  %v3120 = vsel %vm105, %v3093, 0.0
  %v3121 = vadd.f32 %v3119, %v3120
  %v3122 = vsel %vm105, %v3094, 0.0
  %v3123 = vadd.f32 %v3121, %v3122
  %v3124 = vsel %vm105, %v3095, 0.0
  %v3125 = vadd.f32 %v3123, %v3124
  %v3126 = vsel %vm105, %v3096, 0.0
  %v3127 = vadd.f32 %v3125, %v3126
  %v3128 = vrot.slane %v3127, 4
  %v3129 = vadd.f32 %v3127, %v3128
  %v3130 = vrot.slane %v3129, 2
  %v3131 = vadd.f32 %v3129, %v3130
  %v3132 = vrot.slane %v3131, 1
  %v3133 = vadd.f32 %v3131, %v3132
  %v3134 = vmul.f32 %v3133, %v269
  %v3135 = vmul.f32 %v3080, %v3080
  %v3136 = vsub.f32 %v3134, %v3135
  %v3137 = vmax.f32 %v3136, 0.0
  %v3138 = vld [vmem:[%s8] sm:$0x1]
  %v3139 = vadd.f32 %v3137, 1e-05
  %v3140 = vrsqrt.pop %v3139
  %v3141 = vmul.f32 %v3138, %v3140
  %v3142 = vld [vmem:[%s9] sm:$0x1]
  %v3143 = vmul.f32 %v3080, %v3141
  %v3144 = vsub.f32 %v3142, %v3143
  %v3146 = vlaneseq
  %v3147 = vshrl.u32 %v3146, 7
  %v3148 = vsub.s32 0, %v3147
  %v3149 = vrot.slane %v3141, %v3148
  %v3151 = vmul.f32 %v3027, %v3149
  %v3152 = vmul.f32 %v3028, %v3149
  %v3153 = vmul.f32 %v3029, %v3149
  %v3154 = vmul.f32 %v3030, %v3149
  %v3155 = vmul.f32 %v3031, %v3149
  %v3156 = vmul.f32 %v3032, %v3149
  %v3157 = vmul.f32 %v3033, %v3149
  %v3158 = vmul.f32 %v3034, %v3149
  %v3159 = vmul.f32 %v3035, %v3149
  %v3160 = vmul.f32 %v3036, %v3149
  %v3161 = vmul.f32 %v3037, %v3149
  %v3162 = vmul.f32 %v3038, %v3149
  %v3163 = vmul.f32 %v3039, %v3149
  %v3164 = vmul.f32 %v3040, %v3149
  %v3165 = vmul.f32 %v3041, %v3149
  %v3166 = vmul.f32 %v3042, %v3149
  %v3168 = vlaneseq
  %v3169 = vshrl.u32 %v3168, 7
  %v3170 = vsub.s32 0, %v3169
  %v3171 = vrot.slane %v3144, %v3170
  %v3173 = vadd.f32 %v3151, %v3171
  %v3174 = vadd.f32 %v3152, %v3171
  %v3175 = vadd.f32 %v3153, %v3171
  %v3176 = vadd.f32 %v3154, %v3171
  %v3177 = vadd.f32 %v3155, %v3171
  %v3178 = vadd.f32 %v3156, %v3171
  %v3179 = vadd.f32 %v3157, %v3171
  %v3180 = vadd.f32 %v3158, %v3171
  %v3181 = vadd.f32 %v3159, %v3171
  %v3182 = vadd.f32 %v3160, %v3171
  %v3183 = vadd.f32 %v3161, %v3171
  %v3184 = vadd.f32 %v3162, %v3171
  %v3185 = vadd.f32 %v3163, %v3171
  %v3186 = vadd.f32 %v3164, %v3171
  %v3187 = vadd.f32 %v3165, %v3171
  %v3188 = vadd.f32 %v3166, %v3171
  %v3189 = vmax.f32 %v3173, 0.0
  %v3190 = vmax.f32 %v3174, 0.0
  %v3191 = vmax.f32 %v3175, 0.0
  %v3192 = vmax.f32 %v3176, 0.0
  %v3193 = vmax.f32 %v3177, 0.0
  %v3194 = vmax.f32 %v3178, 0.0
  %v3195 = vmax.f32 %v3179, 0.0
  %v3196 = vmax.f32 %v3180, 0.0
  %v3197 = vmax.f32 %v3181, 0.0
  %v3198 = vmax.f32 %v3182, 0.0
  %v3199 = vmax.f32 %v3183, 0.0
  %v3200 = vmax.f32 %v3184, 0.0
  %v3201 = vmax.f32 %v3185, 0.0
  %v3202 = vmax.f32 %v3186, 0.0
  %v3203 = vmax.f32 %v3187, 0.0
  %v3204 = vmax.f32 %v3188, 0.0
  %v3205 = vpack.c.bf16 %v3190, %v3189
  %v3206 = vpack.c.bf16 %v3192, %v3191
  %v3207 = vpack.c.bf16 %v3194, %v3193
  %v3208 = vpack.c.bf16 %v3196, %v3195
  %v3209 = vpack.c.bf16 %v3198, %v3197
  %v3210 = vpack.c.bf16 %v3200, %v3199
  %v3211 = vpack.c.bf16 %v3202, %v3201
  %v3212 = vpack.c.bf16 %v3204, %v3203
  %v3213 = vld [vmem:[%s3] sm:$0x3]
  %v3215 = vsel %vm105, %v3205, 0
  %v3218 = vsel %vm105, %v3206, 0
  %v3221 = vsel %vm105, %v3207, 0
  %v3224 = vsel %vm105, %v3208, 0
  %v3227 = vsel %vm105, %v3209, 0
  %v3230 = vsel %vm105, %v3210, 0
  %v3233 = vsel %vm105, %v3211, 0
  %v3236 = vsel %vm105, %v3212, 0
  %v3239 = vsel %vm130, %v3213, 0
  %3241 = vmatprep.subr.bf16.mxu0 0
  %3242 = vmatpush1.bf16.msra.mxu0 %v3239
  %3243 = vmatprep.subr.bf16.mxu0 0
  %3244 = vmatpush1.bf16.msra.mxu0 0
  %3245 = vmatprep.subr.bf16.mxu0 0
  %3246 = vmatpush1.bf16.msra.mxu0 0
  %3247 = vmatprep.subr.bf16.mxu0 0
  %3248 = vmatpush1.bf16.msra.mxu0 0
  %3249 = vmatprep.subr.bf16.mxu0 0
  %3250 = vmatpush1.bf16.msra.mxu0 0
  %3251 = vmatprep.subr.bf16.mxu0 0
  %3252 = vmatpush1.bf16.msra.mxu0 0
  %3253 = vmatprep.subr.bf16.mxu0 0
  %3254 = vmatpush1.bf16.msra.mxu0 0
  %3255 = vmatprep.subr.bf16.mxu0 0
  %3256 = vmatpush1.bf16.msra.mxu0 0
  %3257 = vmatprep.subr.bf16.mxu0 0
  %3258 = vmatpush1.bf16.msra.mxu0 0
  %3259 = vmatprep.subr.bf16.mxu0 0
  %3260 = vmatpush1.bf16.msra.mxu0 0
  %3261 = vmatprep.subr.bf16.mxu0 0
  %3262 = vmatpush1.bf16.msra.mxu0 0
  %3263 = vmatprep.subr.bf16.mxu0 0
  %3264 = vmatpush1.bf16.msra.mxu0 0
  %3265 = vmatprep.subr.bf16.mxu0 0
  %3266 = vmatpush1.bf16.msra.mxu0 0
  %3267 = vmatprep.subr.bf16.mxu0 0
  %3268 = vmatpush1.bf16.msra.mxu0 0
  %3269 = vmatprep.subr.bf16.mxu0 0
  %3270 = vmatpush1.bf16.msra.mxu0 0
  %3271 = vmatprep.subr.bf16.mxu0 0
  %3272 = vmatpush1.bf16.msra.mxu0 0
  %3273 = vmatprep.mubr.bf16.mxu0 0
  %3274 = vmatmul.mubr.bf16.gmra.mrb[0].mxu0 %v3215
  %v3275 = vpop.f32.mrb[0].mxu0
  %v3276 = vadd.f32 0.0, %v3275
  %v3277 = vpop.f32.mrb[0].mxu0
  %v3278 = vpop.f32.mrb[0].mxu0
  %v3279 = vadd.f32 0.0, %v3278
  %v3280 = vpop.f32.mrb[0].mxu0
  %3281 = vmatprep.mubr.bf16.mxu0 0
  %3282 = vmatmul.mubr.bf16.gmra.mrb[0].mxu0 %v3218
  %v3283 = vpop.f32.mrb[0].mxu0
  %v3284 = vadd.f32 0.0, %v3283
  %v3285 = vpop.f32.mrb[0].mxu0
  %v3286 = vpop.f32.mrb[0].mxu0
  %v3287 = vadd.f32 0.0, %v3286
  %v3288 = vpop.f32.mrb[0].mxu0
  %3289 = vmatprep.mubr.bf16.mxu0 0
  %3290 = vmatmul.mubr.bf16.gmra.mrb[0].mxu0 %v3221
  %v3291 = vpop.f32.mrb[0].mxu0
  %v3292 = vadd.f32 0.0, %v3291
  %v3293 = vpop.f32.mrb[0].mxu0
  %v3294 = vpop.f32.mrb[0].mxu0
  %v3295 = vadd.f32 0.0, %v3294
  %v3296 = vpop.f32.mrb[0].mxu0
  %3297 = vmatprep.mubr.bf16.mxu0 0
  %3298 = vmatmul.mubr.bf16.gmra.mrb[0].mxu0 %v3224
  %v3299 = vpop.f32.mrb[0].mxu0
  %v3300 = vadd.f32 0.0, %v3299
  %v3301 = vpop.f32.mrb[0].mxu0
  %v3302 = vpop.f32.mrb[0].mxu0
  %v3303 = vadd.f32 0.0, %v3302
  %v3304 = vpop.f32.mrb[0].mxu0
  %3305 = vmatprep.mubr.bf16.mxu0 0
  %3306 = vmatmul.mubr.bf16.gmra.mrb[0].mxu0 %v3227
  %v3307 = vpop.f32.mrb[0].mxu0
  %v3308 = vadd.f32 0.0, %v3307
  %v3309 = vpop.f32.mrb[0].mxu0
  %v3310 = vpop.f32.mrb[0].mxu0
  %v3311 = vadd.f32 0.0, %v3310
  %v3312 = vpop.f32.mrb[0].mxu0
  %3313 = vmatprep.mubr.bf16.mxu0 0
  %3314 = vmatmul.mubr.bf16.gmra.mrb[0].mxu0 %v3230
  %v3315 = vpop.f32.mrb[0].mxu0
  %v3316 = vadd.f32 0.0, %v3315
  %v3317 = vpop.f32.mrb[0].mxu0
  %v3318 = vpop.f32.mrb[0].mxu0
  %v3319 = vadd.f32 0.0, %v3318
  %v3320 = vpop.f32.mrb[0].mxu0
  %3321 = vmatprep.mubr.bf16.mxu0 0
  %3322 = vmatmul.mubr.bf16.gmra.mrb[0].mxu0 %v3233
  %v3323 = vpop.f32.mrb[0].mxu0
  %v3324 = vadd.f32 0.0, %v3323
  %v3325 = vpop.f32.mrb[0].mxu0
  %v3326 = vpop.f32.mrb[0].mxu0
  %v3327 = vadd.f32 0.0, %v3326
  %v3328 = vpop.f32.mrb[0].mxu0
  %3329 = vmatprep.mubr.bf16.mxu0 0
  %3330 = vmatmul.mubr.bf16.gmra.mrb[0].mxu0 %v3236
  %v3331 = vpop.f32.mrb[0].mxu0
  %v3332 = vadd.f32 0.0, %v3331
  %v3333 = vpop.f32.mrb[0].mxu0
  %v3334 = vpop.f32.mrb[0].mxu0
  %v3335 = vadd.f32 0.0, %v3334
  %v3336 = vpop.f32.mrb[0].mxu0
  %3337 = vdwg.mxu0
  %v3338 = vsel %vm231, %v3276, 0.0
  %v3339 = vsel %vm231, %v3279, 0.0
  %v3340 = vadd.f32 %v3338, %v3339
  %v3341 = vsel %vm231, %v3284, 0.0
  %v3342 = vadd.f32 %v3340, %v3341
  %v3343 = vsel %vm231, %v3287, 0.0
  %v3344 = vadd.f32 %v3342, %v3343
  %v3345 = vsel %vm231, %v3292, 0.0
  %v3346 = vadd.f32 %v3344, %v3345
  %v3347 = vsel %vm231, %v3295, 0.0
  %v3348 = vadd.f32 %v3346, %v3347
  %v3349 = vsel %vm231, %v3300, 0.0
  %v3350 = vadd.f32 %v3348, %v3349
  %v3351 = vsel %vm231, %v3303, 0.0
  %v3352 = vadd.f32 %v3350, %v3351
  %v3353 = vsel %vm231, %v3308, 0.0
  %v3354 = vadd.f32 %v3352, %v3353
  %v3355 = vsel %vm231, %v3311, 0.0
  %v3356 = vadd.f32 %v3354, %v3355
  %v3357 = vsel %vm231, %v3316, 0.0
  %v3358 = vadd.f32 %v3356, %v3357
  %v3359 = vsel %vm231, %v3319, 0.0
  %v3360 = vadd.f32 %v3358, %v3359
  %v3361 = vsel %vm231, %v3324, 0.0
  %v3362 = vadd.f32 %v3360, %v3361
  %v3363 = vsel %vm231, %v3327, 0.0
  %v3364 = vadd.f32 %v3362, %v3363
  %v3365 = vsel %vm231, %v3332, 0.0
  %v3366 = vadd.f32 %v3364, %v3365
  %v3367 = vsel %vm231, %v3335, 0.0
  %v3368 = vadd.f32 %v3366, %v3367
  %v3369 = vrot.slane %v3368, 4
  %v3370 = vadd.f32 %v3368, %v3369
  %v3371 = vrot.slane %v3370, 2
  %v3372 = vadd.f32 %v3370, %v3371
  %v3373 = vrot.slane %v3372, 1
  %v3374 = vadd.f32 %v3372, %v3373
  %v3375 = vmul.f32 %v3374, %v269
  %v3376 = vmul.f32 %v3276, %v3276
  %v3377 = vmul.f32 %v3279, %v3279
  %v3378 = vmul.f32 %v3284, %v3284
  %v3379 = vmul.f32 %v3287, %v3287
  %v3380 = vmul.f32 %v3292, %v3292
  %v3381 = vmul.f32 %v3295, %v3295
  %v3382 = vmul.f32 %v3300, %v3300
  %v3383 = vmul.f32 %v3303, %v3303
  %v3384 = vmul.f32 %v3308, %v3308
  %v3385 = vmul.f32 %v3311, %v3311
  %v3386 = vmul.f32 %v3316, %v3316
  %v3387 = vmul.f32 %v3319, %v3319
  %v3388 = vmul.f32 %v3324, %v3324
  %v3389 = vmul.f32 %v3327, %v3327
  %v3390 = vmul.f32 %v3332, %v3332
  %v3391 = vmul.f32 %v3335, %v3335
  %v3392 = vsel %vm231, %v3376, 0.0
  %v3393 = vsel %vm231, %v3377, 0.0
  %v3394 = vadd.f32 %v3392, %v3393
  %v3395 = vsel %vm231, %v3378, 0.0
  %v3396 = vadd.f32 %v3394, %v3395
  %v3397 = vsel %vm231, %v3379, 0.0
  %v3398 = vadd.f32 %v3396, %v3397
  %v3399 = vsel %vm231, %v3380, 0.0
  %v3400 = vadd.f32 %v3398, %v3399
  %v3401 = vsel %vm231, %v3381, 0.0
  %v3402 = vadd.f32 %v3400, %v3401
  %v3403 = vsel %vm231, %v3382, 0.0
  %v3404 = vadd.f32 %v3402, %v3403
  %v3405 = vsel %vm231, %v3383, 0.0
  %v3406 = vadd.f32 %v3404, %v3405
  %v3407 = vsel %vm231, %v3384, 0.0
  %v3408 = vadd.f32 %v3406, %v3407
  %v3409 = vsel %vm231, %v3385, 0.0
  %v3410 = vadd.f32 %v3408, %v3409
  %v3411 = vsel %vm231, %v3386, 0.0
  %v3412 = vadd.f32 %v3410, %v3411
  %v3413 = vsel %vm231, %v3387, 0.0
  %v3414 = vadd.f32 %v3412, %v3413
  %v3415 = vsel %vm231, %v3388, 0.0
  %v3416 = vadd.f32 %v3414, %v3415
  %v3417 = vsel %vm231, %v3389, 0.0
  %v3418 = vadd.f32 %v3416, %v3417
  %v3419 = vsel %vm231, %v3390, 0.0
  %v3420 = vadd.f32 %v3418, %v3419
  %v3421 = vsel %vm231, %v3391, 0.0
  %v3422 = vadd.f32 %v3420, %v3421
  %v3423 = vrot.slane %v3422, 4
  %v3424 = vadd.f32 %v3422, %v3423
  %v3425 = vrot.slane %v3424, 2
  %v3426 = vadd.f32 %v3424, %v3425
  %v3427 = vrot.slane %v3426, 1
  %v3428 = vadd.f32 %v3426, %v3427
  %v3429 = vmul.f32 %v3428, %v269
  %v3430 = vmul.f32 %v3375, %v3375
  %v3431 = vsub.f32 %v3429, %v3430
  %v3432 = vmax.f32 %v3431, 0.0
  %v3433 = vld [vmem:[%s10] sm:$0x1]
  %v3434 = vadd.f32 %v3432, 1e-05
  %v3435 = vrsqrt.pop %v3434
  %v3436 = vmul.f32 %v3433, %v3435
  %v3437 = vld [vmem:[%s11] sm:$0x1]
  %v3438 = vmul.f32 %v3375, %v3436
  %v3439 = vsub.f32 %v3437, %v3438
  %v3441 = vlaneseq
  %v3442 = vshrl.u32 %v3441, 7
  %v3443 = vsub.s32 0, %v3442
  %v3444 = vrot.slane %v3436, %v3443
  %v3446 = vmul.f32 %v3276, %v3444
  %v3447 = vmul.f32 %v3279, %v3444
  %v3448 = vmul.f32 %v3284, %v3444
  %v3449 = vmul.f32 %v3287, %v3444
  %v3450 = vmul.f32 %v3292, %v3444
  %v3451 = vmul.f32 %v3295, %v3444
  %v3452 = vmul.f32 %v3300, %v3444
  %v3453 = vmul.f32 %v3303, %v3444
  %v3454 = vmul.f32 %v3308, %v3444
  %v3455 = vmul.f32 %v3311, %v3444
  %v3456 = vmul.f32 %v3316, %v3444
  %v3457 = vmul.f32 %v3319, %v3444
  %v3458 = vmul.f32 %v3324, %v3444
  %v3459 = vmul.f32 %v3327, %v3444
  %v3460 = vmul.f32 %v3332, %v3444
  %v3461 = vmul.f32 %v3335, %v3444
  %v3463 = vlaneseq
  %v3464 = vshrl.u32 %v3463, 7
  %v3465 = vsub.s32 0, %v3464
  %v3466 = vrot.slane %v3439, %v3465
  %v3468 = vadd.f32 %v3446, %v3466
  %v3469 = vadd.f32 %v3447, %v3466
  %v3470 = vadd.f32 %v3448, %v3466
  %v3471 = vadd.f32 %v3449, %v3466
  %v3472 = vadd.f32 %v3450, %v3466
  %v3473 = vadd.f32 %v3451, %v3466
  %v3474 = vadd.f32 %v3452, %v3466
  %v3475 = vadd.f32 %v3453, %v3466
  %v3476 = vadd.f32 %v3454, %v3466
  %v3477 = vadd.f32 %v3455, %v3466
  %v3478 = vadd.f32 %v3456, %v3466
  %v3479 = vadd.f32 %v3457, %v3466
  %v3480 = vadd.f32 %v3458, %v3466
  %v3481 = vadd.f32 %v3459, %v3466
  %v3482 = vadd.f32 %v3460, %v3466
  %v3483 = vadd.f32 %v3461, %v3466
  %v3484 = vadd.f32 %v3468, %v363
  %v3485 = vadd.f32 %v3469, %v364
  %v3486 = vadd.f32 %v3470, %v365
  %v3487 = vadd.f32 %v3471, %v366
  %v3488 = vadd.f32 %v3472, %v367
  %v3489 = vadd.f32 %v3473, %v368
  %v3490 = vadd.f32 %v3474, %v369
  %v3491 = vadd.f32 %v3475, %v370
  %v3492 = vadd.f32 %v3476, %v371
  %v3493 = vadd.f32 %v3477, %v372
  %v3494 = vadd.f32 %v3478, %v373
  %v3495 = vadd.f32 %v3479, %v374
  %v3496 = vadd.f32 %v3480, %v375
  %v3497 = vadd.f32 %v3481, %v376
  %v3498 = vadd.f32 %v3482, %v377
  %v3499 = vadd.f32 %v3483, %v378
  %v3500 = vmax.f32 %v3484, 0.0
  %v3501 = vmax.f32 %v3485, 0.0
  %v3502 = vmax.f32 %v3486, 0.0
  %v3503 = vmax.f32 %v3487, 0.0
  %v3504 = vmax.f32 %v3488, 0.0
  %v3505 = vmax.f32 %v3489, 0.0
  %v3506 = vmax.f32 %v3490, 0.0
  %v3507 = vmax.f32 %v3491, 0.0
  %v3508 = vmax.f32 %v3492, 0.0
  %v3509 = vmax.f32 %v3493, 0.0
  %v3510 = vmax.f32 %v3494, 0.0
  %v3511 = vmax.f32 %v3495, 0.0
  %v3512 = vmax.f32 %v3496, 0.0
  %v3513 = vmax.f32 %v3497, 0.0
  %v3514 = vmax.f32 %v3498, 0.0
  %v3515 = vmax.f32 %v3499, 0.0
  %3516 = vst.msk [vmem:[%s14] sm:$0xff] %vm231, %v3500
  %3517 = vst.msk [vmem:[%s14 + $0x8] sm:$0xff] %vm231, %v3501
  %3518 = vst.msk [vmem:[%s14 + $0x10] sm:$0xff] %vm231, %v3502
  %3519 = vst.msk [vmem:[%s14 + $0x18] sm:$0xff] %vm231, %v3503
  %3520 = vst.msk [vmem:[%s14 + $0x20] sm:$0xff] %vm231, %v3504
  %3521 = vst.msk [vmem:[%s14 + $0x28] sm:$0xff] %vm231, %v3505
  %3522 = vst.msk [vmem:[%s14 + $0x30] sm:$0xff] %vm231, %v3506
  %3523 = vst.msk [vmem:[%s14 + $0x38] sm:$0xff] %vm231, %v3507
  %3524 = vst.msk [vmem:[%s14 + $0x40] sm:$0xff] %vm231, %v3508
  %3525 = vst.msk [vmem:[%s14 + $0x48] sm:$0xff] %vm231, %v3509
  %3526 = vst.msk [vmem:[%s14 + $0x50] sm:$0xff] %vm231, %v3510
  %3527 = vst.msk [vmem:[%s14 + $0x58] sm:$0xff] %vm231, %v3511
  %3528 = vst.msk [vmem:[%s14 + $0x60] sm:$0xff] %vm231, %v3512
  %3529 = vst.msk [vmem:[%s14 + $0x68] sm:$0xff] %vm231, %v3513
  %3530 = vst.msk [vmem:[%s14 + $0x70] sm:$0xff] %vm231, %v3514
  %3531 = vst.msk [vmem:[%s14 + $0x78] sm:$0xff] %vm231, %v3515
  // Predicated region
  $region58: #{conv_block_forward.1} parent=0 // pred_check
    _
  $region59: #{conv_block_forward.1} parent=0 // pred_check_branch
    %3533 = sbr.rel (0) target = $region61
  $region60: #{conv_block_forward.1} parent=0 // pred_region
    _
  $region61: #{conv_block_forward.1} parent=0 // pred_fallthru
    _
  // Predicated region
  $region62: #{conv_block_forward.1} parent=0 // pred_check
    _
  $region63: #{conv_block_forward.1} parent=0 // pred_check_branch
    %3535 = sbr.rel (0) target = $region65
  $region64: #{conv_block_forward.1} parent=0 // pred_region
    _
  $region65: #{conv_block_forward.1} parent=0 // pred_fallthru
    _

</llo_original>
